<compile_context>
chip_gen: v6e
topology: v6e:2x2x1
jax: 0.10.0
libtpu: 0.0.40
codegen_flags: <defaults>
</compile_context>

<pallas_src>
import math
import numpy as np
import jax
import jax.numpy as jnp
from jax.experimental import pallas as pl
from jax.experimental.pallas import tpu as pltpu


def _leaky(x, slope=0.2):
    # valid for slope < 1: max(x, slope*x) == LeakyReLU(slope)(x)
    return jnp.maximum(x, slope * x)


def _taps(o, n_in):
    """Contributing (kernel_tap, input_index) pairs of ConvT(k=4, s=2, p=1)
    along one spatial axis, for output index `o` with `n_in` input pixels."""
    return [(o - 2 * i + 1, i) for i in range(n_in) if 0 <= o - 2 * i + 1 < 4]


def mvp_kernel(x_ref, w1_ref, b1_ref, wa_ref, ba_ref, wb_ref, bb_ref, out_ref):
    bf16, f32 = jnp.bfloat16, jnp.float32
    _, hout, wout, _ = out_ref.shape
    hin, win = hout // 2, wout // 2          # input grid of the last deconv
    ch1 = ba_ref.shape[-1]

    # LinearELR(inch, ch0) + LeakyReLU(0.2)
    h0 = jnp.dot(x_ref[...].astype(bf16), w1_ref[...],
                 preferred_element_type=f32) + b1_ref[...]
    h0 = _leaky(h0).astype(bf16)

    # Reshape(-1, ch0, 1, 1) is a no-op here (square primitive grid).
    # ConvTranspose2dELR(ch0, ch1, 4, 2, 1) on the 1x1 input + LeakyReLU(0.2):
    # sub-pixel form -> one matmul, columns ordered (output parity, channel).
    y = jnp.dot(h0, wa_ref[...], preferred_element_type=f32)
    h1 = []                                   # h1[hi*win + wi] : [Bblk, ch1]
    for s in range(hin * win):
        h1.append(_leaky(y[:, s * ch1:(s + 1) * ch1] + ba_ref[...]).astype(bf16))

    # ConvTranspose2dELR(ch1, outch, 4, 2, 1), no activation: per output pixel,
    # gather its <=2x2 contributing input pixels with per-tap [ch1,outch] dots.
    for ho in range(hout):
        taps_h = _taps(ho, hin)
        for wo in range(wout):
            taps_w = _taps(wo, win)
            acc = None
            for a, hi in taps_h:
                for c, wi in taps_w:
                    t = jnp.dot(h1[hi * win + wi], wb_ref[a, c],
                                preferred_element_type=f32)
                    acc = t if acc is None else acc + t
            out_ref[:, ho, wo, :] = acc + bb_ref[...]


def deconv_motion_forward(encoding, params, nprims, *, block_b=8):
    """Returns (primposdelta, primrvecdelta, primscaledelta), each [B, nprims, 3]."""
    w1, b1, wa, ba, wb, bb = params
    B, inch = encoding.shape
    outch = bb.shape[-1]
    side = int(math.isqrt(nprims))
    assert side * side == nprims
    assert B % block_b == 0
    grid = (B // block_b,)

    out = pl.pallas_call(
        mvp_kernel,
        out_shape=jax.ShapeDtypeStruct((B, side, side, outch), jnp.float32),
        grid=grid,
        in_specs=[
            pl.BlockSpec((block_b, inch), lambda i: (i, 0)),     # encoding (batch-blocked)
            pl.BlockSpec(w1.shape, lambda i: (0, 0)),            # grid-invariant weights
            pl.BlockSpec(b1.shape, lambda i: (0, 0)),
            pl.BlockSpec(wa.shape, lambda i: (0, 0)),
            pl.BlockSpec(ba.shape, lambda i: (0, 0)),
            pl.BlockSpec(wb.shape, lambda i: (0, 0, 0, 0)),
            pl.BlockSpec(bb.shape, lambda i: (0, 0)),
        ],
        out_specs=pl.BlockSpec((block_b, side, side, outch),
                               lambda i: (i, 0, 0, 0)),
        compiler_params=pltpu.CompilerParams(
            dimension_semantics=("parallel",)),                  # megacore/v7x dual-TC
    )(encoding, w1, b1, wa, ba, wb, bb)

    # Channels-last output already is (prim, channel) order -> free reshape.
    out = out.reshape(B, nprims, outch)
    return out[:, :, 0:3], out[:, :, 3:6], out[:, :, 6:9]


# ----------------------------- setup glue -----------------------------------
def init_params(key, nprims, inch, outch, chstart):
    nprimy = int(math.sqrt(nprims))
    nprimx = nprims // nprimy
    assert nprims == nprimx * nprimy
    nlayers = int(math.log2(min(nprimx, nprimy)))
    assert nlayers == 2, "this synthetic script instantiates the 2-deconv-layer case"
    assert nprimx // nprimy == 1, "square primitive grid (1x1 input to first deconv)"
    ch0, ch1 = chstart, chstart // 2

    ks = jax.random.split(key, 6)
    # TODO(synk): LinearELR/ConvTranspose2dELR class definitions were not provided;
    # the equalized-lr weight scale (1/sqrt(fan_in)) is folded into the init here.
    w1 = jax.random.normal(ks[0], (inch, ch0), jnp.float32) / math.sqrt(inch)
    b1 = jax.random.normal(ks[1], (1, ch0), jnp.float32) * 0.1
    wc1 = jax.random.normal(ks[2], (ch0, ch1, 4, 4), jnp.float32) / math.sqrt(ch0 * 16)
    bc1 = jax.random.normal(ks[3], (ch1,), jnp.float32) * 0.1
    wc2 = jax.random.normal(ks[4], (ch1, outch, 4, 4), jnp.float32) / math.sqrt(ch1 * 16)
    bc2 = jax.random.normal(ks[5], (outch,), jnp.float32) * 0.1

    w1_np, b1_np = np.asarray(w1), np.asarray(b1)
    wc1_np, bc1_np = np.asarray(wc1), np.asarray(bc1)
    wc2_np, bc2_np = np.asarray(wc2), np.asarray(bc2)

    # Structured (sub-pixel) weights for the 1x1->2x2 deconv: only the inner
    # 2x2 taps matter; 4 output parities along the columns, (parity, co)-order.
    wa_np = np.concatenate(
        [wc1_np[:, :, 1 + ph, 1 + pw] for ph in range(2) for pw in range(2)],
        axis=1)                                            # [ch0, 4*ch1]
    ba_np = bc1_np[None, :]                                # [1, ch1]
    # Second deconv keeps its raw 4x4 taps, tap-major layout for per-tap dots.
    wb_np = np.transpose(wc2_np, (2, 3, 0, 1)).copy()      # [4, 4, ch1, outch]
    bb_np = bc2_np[None, :]                                # [1, outch]

    kernel_params = (
        jnp.asarray(w1_np, jnp.bfloat16), jnp.asarray(b1_np, jnp.float32),
        jnp.asarray(wa_np, jnp.bfloat16), jnp.asarray(ba_np, jnp.float32),
        jnp.asarray(wb_np, jnp.bfloat16), jnp.asarray(bb_np, jnp.float32),
    )
    raw_params = (w1_np, b1_np, wc1_np, bc1_np, wc2_np, bc2_np)
    return kernel_params, raw_params


# --------------------------- numpy reference ---------------------------------
def _convT_np(x, W, b, stride=2, pad=1):
    B, Cin, Hin, Win = x.shape
    _, Cout, kh, kw = W.shape
    Hout = (Hin - 1) * stride - 2 * pad + kh
    Wout = (Win - 1) * stride - 2 * pad + kw
    out = np.zeros((B, Cout, Hout, Wout), np.float32)
    for hi in range(Hin):
        for wi in range(Win):
            for a in range(kh):
                for c in range(kw):
                    ho = hi * stride - pad + a
                    wo = wi * stride - pad + c
                    if 0 <= ho < Hout and 0 <= wo < Wout:
                        out[:, :, ho, wo] += np.einsum(
                            "bi,io->bo", x[:, :, hi, wi], W[:, :, a, c])
    return out + b[None, :, None, None]


def reference_forward(x, w1, b1, wc1, bc1, wc2, bc2, nprimx, nprimy):
    h = x @ w1 + b1
    h = np.where(h > 0, h, 0.2 * h)
    B = x.shape[0]
    h = h.reshape(B, -1, 1, nprimx // nprimy)
    h = _convT_np(h, wc1, bc1)
    h = np.where(h > 0, h, 0.2 * h)
    h = _convT_np(h, wc2, bc2)
    out = h.reshape(B, 9, -1).transpose(0, 2, 1)
    return out[:, :, 0:3], out[:, :, 3:6], out[:, :, 6:9]


if __name__ == "__main__":
    # nprims=16 -> 4x4 primitive grid, 2 deconv layers; outch must be 9
    # (pos/rvec/scale deltas, 3 each).  Batch=16 so the (parallel) grid has
    # two batch blocks of 8 rows each.
    nprims, inch, outch, chstart = 16, 16, 9, 32
    B = 16

    key = jax.random.PRNGKey(0)
    kx, kp = jax.random.split(key)
    encoding = jax.random.normal(kx, (B, inch), jnp.float32)

    kernel_params, raw_params = init_params(kp, nprims, inch, outch, chstart)

    pos, rvec, scale = deconv_motion_forward(encoding, kernel_params, nprims,
                                             block_b=8)
    jax.block_until_ready((pos, rvec, scale))

    ref = reference_forward(np.asarray(encoding), *raw_params, nprimx=4, nprimy=4)
    for got, want in zip((pos, rvec, scale), ref):
        assert got.shape == (B, nprims, 3)
        # bf16 weights/activations on the MXU, f32 accumulation -> loosened tol.
        np.testing.assert_allclose(np.asarray(got), want, rtol=5e-2, atol=2e-2)

    print("KERNEL_OK")
</pallas_src>

<mosaic_0001>
module attributes {stable_mosaic.version = 11 : i64} {
  func.func @mvp_kernel(%arg0: i32, %arg1: memref<8x16xf32, #tpu.memory_space<vmem>>, %arg2: memref<16x32xbf16, #tpu.memory_space<vmem>>, %arg3: memref<1x32xf32, #tpu.memory_space<vmem>>, %arg4: memref<32x64xbf16, #tpu.memory_space<vmem>>, %arg5: memref<1x16xf32, #tpu.memory_space<vmem>>, %arg6: memref<4x4x16x9xbf16, #tpu.memory_space<vmem>>, %arg7: memref<1x9xf32, #tpu.memory_space<vmem>>, %arg8: memref<8x4x4x9xf32, #tpu.memory_space<vmem>>) attributes {dimension_semantics = [#tpu.dimension_semantics<parallel>], iteration_bounds = array<i64: 2>, scalar_prefetch = 0 : i64, scratch_operands = 0 : i64, tpu.core_type = #tpu.core_type<tc>, window_params = [{transform_indices = @transform_0, window_bounds = array<i64: 8, 16>}, {pipeline_mode = #tpu.pipeline_mode<synchronous>, transform_indices = @transform_1, window_bounds = array<i64: 16, 32>}, {pipeline_mode = #tpu.pipeline_mode<synchronous>, transform_indices = @transform_2, window_bounds = array<i64: 1, 32>}, {pipeline_mode = #tpu.pipeline_mode<synchronous>, transform_indices = @transform_3, window_bounds = array<i64: 32, 64>}, {pipeline_mode = #tpu.pipeline_mode<synchronous>, transform_indices = @transform_4, window_bounds = array<i64: 1, 16>}, {pipeline_mode = #tpu.pipeline_mode<synchronous>, transform_indices = @transform_5, window_bounds = array<i64: 4, 4, 16, 9>}, {pipeline_mode = #tpu.pipeline_mode<synchronous>, transform_indices = @transform_6, window_bounds = array<i64: 1, 9>}, {transform_indices = @transform_7, window_bounds = array<i64: 8, 4, 4, 9>}]} {
    %c0 = arith.constant 0 : index
    %c0_0 = arith.constant 0 : index
    %0 = vector.load %arg1[%c0, %c0_0] : memref<8x16xf32, #tpu.memory_space<vmem>>, vector<8x16xf32>
    %1 = arith.truncf %0 : vector<8x16xf32> to vector<8x16xbf16>
    %c0_1 = arith.constant 0 : index
    %c0_2 = arith.constant 0 : index
    %2 = vector.load %arg2[%c0_1, %c0_2] : memref<16x32xbf16, #tpu.memory_space<vmem>>, vector<16x32xbf16>
    %cst = arith.constant dense<0.000000e+00> : vector<8x32xf32>
    %3 = tpu.matmul %1, %2, %cst {dimension_numbers = #tpu.dot_dimension_numbers<[1], [0], [0], [1], [0, 0, 1, 1], [], []>} : vector<8x16xbf16>, vector<16x32xbf16>, vector<8x32xf32> -> vector<8x32xf32>
    %c0_3 = arith.constant 0 : index
    %c0_4 = arith.constant 0 : index
    %4 = vector.load %arg3[%c0_3, %c0_4] : memref<1x32xf32, #tpu.memory_space<vmem>>, vector<1x32xf32>
    %5 = vector.broadcast %4 : vector<1x32xf32> to vector<8x32xf32>
    %6 = arith.addf %3, %5 : vector<8x32xf32>
    %cst_5 = arith.constant 2.000000e-01 : f32
    %7 = vector.broadcast %cst_5 : f32 to vector<8x32xf32>
    %8 = arith.mulf %7, %6 : vector<8x32xf32>
    %9 = arith.maximumf %6, %8 : vector<8x32xf32>
    %10 = arith.truncf %9 : vector<8x32xf32> to vector<8x32xbf16>
    %c0_6 = arith.constant 0 : index
    %c0_7 = arith.constant 0 : index
    %11 = vector.load %arg4[%c0_6, %c0_7] : memref<32x64xbf16, #tpu.memory_space<vmem>>, vector<32x64xbf16>
    %cst_8 = arith.constant dense<0.000000e+00> : vector<8x64xf32>
    %12 = tpu.matmul %10, %11, %cst_8 {dimension_numbers = #tpu.dot_dimension_numbers<[1], [0], [0], [1], [0, 0, 1, 1], [], []>} : vector<8x32xbf16>, vector<32x64xbf16>, vector<8x64xf32> -> vector<8x64xf32>
    %13 = vector.extract_strided_slice %12 {offsets = [0, 0], sizes = [8, 16], strides = [1, 1]} : vector<8x64xf32> to vector<8x16xf32>
    %c0_9 = arith.constant 0 : index
    %c0_10 = arith.constant 0 : index
    %14 = vector.load %arg5[%c0_9, %c0_10] : memref<1x16xf32, #tpu.memory_space<vmem>>, vector<1x16xf32>
    %15 = vector.broadcast %14 : vector<1x16xf32> to vector<8x16xf32>
    %16 = arith.addf %13, %15 : vector<8x16xf32>
    %cst_11 = arith.constant 2.000000e-01 : f32
    %17 = vector.broadcast %cst_11 : f32 to vector<8x16xf32>
    %18 = arith.mulf %17, %16 : vector<8x16xf32>
    %19 = arith.maximumf %16, %18 : vector<8x16xf32>
    %20 = arith.truncf %19 : vector<8x16xf32> to vector<8x16xbf16>
    %21 = vector.extract_strided_slice %12 {offsets = [0, 16], sizes = [8, 16], strides = [1, 1]} : vector<8x64xf32> to vector<8x16xf32>
    %c0_12 = arith.constant 0 : index
    %c0_13 = arith.constant 0 : index
    %22 = vector.load %arg5[%c0_12, %c0_13] : memref<1x16xf32, #tpu.memory_space<vmem>>, vector<1x16xf32>
    %23 = vector.broadcast %22 : vector<1x16xf32> to vector<8x16xf32>
    %24 = arith.addf %21, %23 : vector<8x16xf32>
    %cst_14 = arith.constant 2.000000e-01 : f32
    %25 = vector.broadcast %cst_14 : f32 to vector<8x16xf32>
    %26 = arith.mulf %25, %24 : vector<8x16xf32>
    %27 = arith.maximumf %24, %26 : vector<8x16xf32>
    %28 = arith.truncf %27 : vector<8x16xf32> to vector<8x16xbf16>
    %29 = vector.extract_strided_slice %12 {offsets = [0, 32], sizes = [8, 16], strides = [1, 1]} : vector<8x64xf32> to vector<8x16xf32>
    %c0_15 = arith.constant 0 : index
    %c0_16 = arith.constant 0 : index
    %30 = vector.load %arg5[%c0_15, %c0_16] : memref<1x16xf32, #tpu.memory_space<vmem>>, vector<1x16xf32>
    %31 = vector.broadcast %30 : vector<1x16xf32> to vector<8x16xf32>
    %32 = arith.addf %29, %31 : vector<8x16xf32>
    %cst_17 = arith.constant 2.000000e-01 : f32
    %33 = vector.broadcast %cst_17 : f32 to vector<8x16xf32>
    %34 = arith.mulf %33, %32 : vector<8x16xf32>
    %35 = arith.maximumf %32, %34 : vector<8x16xf32>
    %36 = arith.truncf %35 : vector<8x16xf32> to vector<8x16xbf16>
    %37 = vector.extract_strided_slice %12 {offsets = [0, 48], sizes = [8, 16], strides = [1, 1]} : vector<8x64xf32> to vector<8x16xf32>
    %c0_18 = arith.constant 0 : index
    %c0_19 = arith.constant 0 : index
    %38 = vector.load %arg5[%c0_18, %c0_19] : memref<1x16xf32, #tpu.memory_space<vmem>>, vector<1x16xf32>
    %39 = vector.broadcast %38 : vector<1x16xf32> to vector<8x16xf32>
    %40 = arith.addf %37, %39 : vector<8x16xf32>
    %cst_20 = arith.constant 2.000000e-01 : f32
    %41 = vector.broadcast %cst_20 : f32 to vector<8x16xf32>
    %42 = arith.mulf %41, %40 : vector<8x16xf32>
    %43 = arith.maximumf %40, %42 : vector<8x16xf32>
    %44 = arith.truncf %43 : vector<8x16xf32> to vector<8x16xbf16>
    %c1 = arith.constant 1 : index
    %c1_21 = arith.constant 1 : index
    %c0_22 = arith.constant 0 : index
    %c0_23 = arith.constant 0 : index
    %45 = vector.load %arg6[%c1, %c1_21, %c0_22, %c0_23] : memref<4x4x16x9xbf16, #tpu.memory_space<vmem>>, vector<1x1x16x9xbf16>
    %46 = vector.shape_cast %45 : vector<1x1x16x9xbf16> to vector<16x9xbf16>
    %cst_24 = arith.constant dense<0.000000e+00> : vector<8x9xf32>
    %47 = tpu.matmul %20, %46, %cst_24 {dimension_numbers = #tpu.dot_dimension_numbers<[1], [0], [0], [1], [0, 0, 1, 1], [], []>} : vector<8x16xbf16>, vector<16x9xbf16>, vector<8x9xf32> -> vector<8x9xf32>
    %c0_25 = arith.constant 0 : index
    %c0_26 = arith.constant 0 : index
    %48 = vector.load %arg7[%c0_25, %c0_26] : memref<1x9xf32, #tpu.memory_space<vmem>>, vector<1x9xf32>
    %49 = vector.broadcast %48 : vector<1x9xf32> to vector<8x9xf32>
    %50 = arith.addf %47, %49 : vector<8x9xf32>
    %c0_27 = arith.constant 0 : index
    %c0_28 = arith.constant 0 : index
    %c0_29 = arith.constant 0 : index
    %c0_30 = arith.constant 0 : index
    %51 = vector.load %arg8[%c0_27, %c0_28, %c0_29, %c0_30] : memref<8x4x4x9xf32, #tpu.memory_space<vmem>>, vector<8x1x1x9xf32>
    %52 = vector.shape_cast %51 : vector<8x1x1x9xf32> to vector<8x9xf32>
    %53 = vector.shape_cast %50 : vector<8x9xf32> to vector<8x1x1x9xf32>
    tpu.vector_store %arg8[%c0_27, %c0_28, %c0_29, %c0_30], %53 {strides = array<i32>} : memref<8x4x4x9xf32, #tpu.memory_space<vmem>>, vector<8x1x1x9xf32>,
    %c1_31 = arith.constant 1 : index
    %c2 = arith.constant 2 : index
    %c0_32 = arith.constant 0 : index
    %c0_33 = arith.constant 0 : index
    %54 = vector.load %arg6[%c1_31, %c2, %c0_32, %c0_33] : memref<4x4x16x9xbf16, #tpu.memory_space<vmem>>, vector<1x1x16x9xbf16>
    %55 = vector.shape_cast %54 : vector<1x1x16x9xbf16> to vector<16x9xbf16>
    %cst_34 = arith.constant dense<0.000000e+00> : vector<8x9xf32>
    %56 = tpu.matmul %20, %55, %cst_34 {dimension_numbers = #tpu.dot_dimension_numbers<[1], [0], [0], [1], [0, 0, 1, 1], [], []>} : vector<8x16xbf16>, vector<16x9xbf16>, vector<8x9xf32> -> vector<8x9xf32>
    %c1_35 = arith.constant 1 : index
    %c0_36 = arith.constant 0 : index
    %c0_37 = arith.constant 0 : index
    %c0_38 = arith.constant 0 : index
    %57 = vector.load %arg6[%c1_35, %c0_36, %c0_37, %c0_38] : memref<4x4x16x9xbf16, #tpu.memory_space<vmem>>, vector<1x1x16x9xbf16>
    %58 = vector.shape_cast %57 : vector<1x1x16x9xbf16> to vector<16x9xbf16>
    %cst_39 = arith.constant dense<0.000000e+00> : vector<8x9xf32>
    %59 = tpu.matmul %28, %58, %cst_39 {dimension_numbers = #tpu.dot_dimension_numbers<[1], [0], [0], [1], [0, 0, 1, 1], [], []>} : vector<8x16xbf16>, vector<16x9xbf16>, vector<8x9xf32> -> vector<8x9xf32>
    %60 = arith.addf %56, %59 : vector<8x9xf32>
    %c0_40 = arith.constant 0 : index
    %c0_41 = arith.constant 0 : index
    %61 = vector.load %arg7[%c0_40, %c0_41] : memref<1x9xf32, #tpu.memory_space<vmem>>, vector<1x9xf32>
    %62 = vector.broadcast %61 : vector<1x9xf32> to vector<8x9xf32>
    %63 = arith.addf %60, %62 : vector<8x9xf32>
    %c0_42 = arith.constant 0 : index
    %c0_43 = arith.constant 0 : index
    %c1_44 = arith.constant 1 : index
    %c0_45 = arith.constant 0 : index
    %64 = vector.load %arg8[%c0_42, %c0_43, %c1_44, %c0_45] : memref<8x4x4x9xf32, #tpu.memory_space<vmem>>, vector<8x1x1x9xf32>
    %65 = vector.shape_cast %64 : vector<8x1x1x9xf32> to vector<8x9xf32>
    %66 = vector.shape_cast %63 : vector<8x9xf32> to vector<8x1x1x9xf32>
    tpu.vector_store %arg8[%c0_42, %c0_43, %c1_44, %c0_45], %66 {strides = array<i32>} : memref<8x4x4x9xf32, #tpu.memory_space<vmem>>, vector<8x1x1x9xf32>,
    %c1_46 = arith.constant 1 : index
    %c3 = arith.constant 3 : index
    %c0_47 = arith.constant 0 : index
    %c0_48 = arith.constant 0 : index
    %67 = vector.load %arg6[%c1_46, %c3, %c0_47, %c0_48] : memref<4x4x16x9xbf16, #tpu.memory_space<vmem>>, vector<1x1x16x9xbf16>
    %68 = vector.shape_cast %67 : vector<1x1x16x9xbf16> to vector<16x9xbf16>
    %cst_49 = arith.constant dense<0.000000e+00> : vector<8x9xf32>
    %69 = tpu.matmul %20, %68, %cst_49 {dimension_numbers = #tpu.dot_dimension_numbers<[1], [0], [0], [1], [0, 0, 1, 1], [], []>} : vector<8x16xbf16>, vector<16x9xbf16>, vector<8x9xf32> -> vector<8x9xf32>
    %c1_50 = arith.constant 1 : index
    %c1_51 = arith.constant 1 : index
    %c0_52 = arith.constant 0 : index
    %c0_53 = arith.constant 0 : index
    %70 = vector.load %arg6[%c1_50, %c1_51, %c0_52, %c0_53] : memref<4x4x16x9xbf16, #tpu.memory_space<vmem>>, vector<1x1x16x9xbf16>
    %71 = vector.shape_cast %70 : vector<1x1x16x9xbf16> to vector<16x9xbf16>
    %cst_54 = arith.constant dense<0.000000e+00> : vector<8x9xf32>
    %72 = tpu.matmul %28, %71, %cst_54 {dimension_numbers = #tpu.dot_dimension_numbers<[1], [0], [0], [1], [0, 0, 1, 1], [], []>} : vector<8x16xbf16>, vector<16x9xbf16>, vector<8x9xf32> -> vector<8x9xf32>
    %73 = arith.addf %69, %72 : vector<8x9xf32>
    %c0_55 = arith.constant 0 : index
    %c0_56 = arith.constant 0 : index
    %74 = vector.load %arg7[%c0_55, %c0_56] : memref<1x9xf32, #tpu.memory_space<vmem>>, vector<1x9xf32>
    %75 = vector.broadcast %74 : vector<1x9xf32> to vector<8x9xf32>
    %76 = arith.addf %73, %75 : vector<8x9xf32>
    %c0_57 = arith.constant 0 : index
    %c0_58 = arith.constant 0 : index
    %c2_59 = arith.constant 2 : index
    %c0_60 = arith.constant 0 : index
    %77 = vector.load %arg8[%c0_57, %c0_58, %c2_59, %c0_60] : memref<8x4x4x9xf32, #tpu.memory_space<vmem>>, vector<8x1x1x9xf32>
    %78 = vector.shape_cast %77 : vector<8x1x1x9xf32> to vector<8x9xf32>
    %79 = vector.shape_cast %76 : vector<8x9xf32> to vector<8x1x1x9xf32>
    tpu.vector_store %arg8[%c0_57, %c0_58, %c2_59, %c0_60], %79 {strides = array<i32>} : memref<8x4x4x9xf32, #tpu.memory_space<vmem>>, vector<8x1x1x9xf32>,
    %c1_61 = arith.constant 1 : index
    %c2_62 = arith.constant 2 : index
    %c0_63 = arith.constant 0 : index
    %c0_64 = arith.constant 0 : index
    %80 = vector.load %arg6[%c1_61, %c2_62, %c0_63, %c0_64] : memref<4x4x16x9xbf16, #tpu.memory_space<vmem>>, vector<1x1x16x9xbf16>
    %81 = vector.shape_cast %80 : vector<1x1x16x9xbf16> to vector<16x9xbf16>
    %cst_65 = arith.constant dense<0.000000e+00> : vector<8x9xf32>
    %82 = tpu.matmul %28, %81, %cst_65 {dimension_numbers = #tpu.dot_dimension_numbers<[1], [0], [0], [1], [0, 0, 1, 1], [], []>} : vector<8x16xbf16>, vector<16x9xbf16>, vector<8x9xf32> -> vector<8x9xf32>
    %c0_66 = arith.constant 0 : index
    %c0_67 = arith.constant 0 : index
    %83 = vector.load %arg7[%c0_66, %c0_67] : memref<1x9xf32, #tpu.memory_space<vmem>>, vector<1x9xf32>
    %84 = vector.broadcast %83 : vector<1x9xf32> to vector<8x9xf32>
    %85 = arith.addf %82, %84 : vector<8x9xf32>
    %c0_68 = arith.constant 0 : index
    %c0_69 = arith.constant 0 : index
    %c3_70 = arith.constant 3 : index
    %c0_71 = arith.constant 0 : index
    %86 = vector.load %arg8[%c0_68, %c0_69, %c3_70, %c0_71] : memref<8x4x4x9xf32, #tpu.memory_space<vmem>>, vector<8x1x1x9xf32>
    %87 = vector.shape_cast %86 : vector<8x1x1x9xf32> to vector<8x9xf32>
    %88 = vector.shape_cast %85 : vector<8x9xf32> to vector<8x1x1x9xf32>
    tpu.vector_store %arg8[%c0_68, %c0_69, %c3_70, %c0_71], %88 {strides = array<i32>} : memref<8x4x4x9xf32, #tpu.memory_space<vmem>>, vector<8x1x1x9xf32>,
    %c2_72 = arith.constant 2 : index
    %c1_73 = arith.constant 1 : index
    %c0_74 = arith.constant 0 : index
    %c0_75 = arith.constant 0 : index
    %89 = vector.load %arg6[%c2_72, %c1_73, %c0_74, %c0_75] : memref<4x4x16x9xbf16, #tpu.memory_space<vmem>>, vector<1x1x16x9xbf16>
    %90 = vector.shape_cast %89 : vector<1x1x16x9xbf16> to vector<16x9xbf16>
    %cst_76 = arith.constant dense<0.000000e+00> : vector<8x9xf32>
    %91 = tpu.matmul %20, %90, %cst_76 {dimension_numbers = #tpu.dot_dimension_numbers<[1], [0], [0], [1], [0, 0, 1, 1], [], []>} : vector<8x16xbf16>, vector<16x9xbf16>, vector<8x9xf32> -> vector<8x9xf32>
    %c0_77 = arith.constant 0 : index
    %c1_78 = arith.constant 1 : index
    %c0_79 = arith.constant 0 : index
    %c0_80 = arith.constant 0 : index
    %92 = vector.load %arg6[%c0_77, %c1_78, %c0_79, %c0_80] : memref<4x4x16x9xbf16, #tpu.memory_space<vmem>>, vector<1x1x16x9xbf16>
    %93 = vector.shape_cast %92 : vector<1x1x16x9xbf16> to vector<16x9xbf16>
    %cst_81 = arith.constant dense<0.000000e+00> : vector<8x9xf32>
    %94 = tpu.matmul %36, %93, %cst_81 {dimension_numbers = #tpu.dot_dimension_numbers<[1], [0], [0], [1], [0, 0, 1, 1], [], []>} : vector<8x16xbf16>, vector<16x9xbf16>, vector<8x9xf32> -> vector<8x9xf32>
    %95 = arith.addf %91, %94 : vector<8x9xf32>
    %c0_82 = arith.constant 0 : index
    %c0_83 = arith.constant 0 : index
    %96 = vector.load %arg7[%c0_82, %c0_83] : memref<1x9xf32, #tpu.memory_space<vmem>>, vector<1x9xf32>
    %97 = vector.broadcast %96 : vector<1x9xf32> to vector<8x9xf32>
    %98 = arith.addf %95, %97 : vector<8x9xf32>
    %c0_84 = arith.constant 0 : index
    %c1_85 = arith.constant 1 : index
    %c0_86 = arith.constant 0 : index
    %c0_87 = arith.constant 0 : index
    %99 = vector.load %arg8[%c0_84, %c1_85, %c0_86, %c0_87] : memref<8x4x4x9xf32, #tpu.memory_space<vmem>>, vector<8x1x1x9xf32>
    %100 = vector.shape_cast %99 : vector<8x1x1x9xf32> to vector<8x9xf32>
    %101 = vector.shape_cast %98 : vector<8x9xf32> to vector<8x1x1x9xf32>
    tpu.vector_store %arg8[%c0_84, %c1_85, %c0_86, %c0_87], %101 {strides = array<i32>} : memref<8x4x4x9xf32, #tpu.memory_space<vmem>>, vector<8x1x1x9xf32>,
    %c2_88 = arith.constant 2 : index
    %c2_89 = arith.constant 2 : index
    %c0_90 = arith.constant 0 : index
    %c0_91 = arith.constant 0 : index
    %102 = vector.load %arg6[%c2_88, %c2_89, %c0_90, %c0_91] : memref<4x4x16x9xbf16, #tpu.memory_space<vmem>>, vector<1x1x16x9xbf16>
    %103 = vector.shape_cast %102 : vector<1x1x16x9xbf16> to vector<16x9xbf16>
    %cst_92 = arith.constant dense<0.000000e+00> : vector<8x9xf32>
    %104 = tpu.matmul %20, %103, %cst_92 {dimension_numbers = #tpu.dot_dimension_numbers<[1], [0], [0], [1], [0, 0, 1, 1], [], []>} : vector<8x16xbf16>, vector<16x9xbf16>, vector<8x9xf32> -> vector<8x9xf32>
    %c2_93 = arith.constant 2 : index
    %c0_94 = arith.constant 0 : index
    %c0_95 = arith.constant 0 : index
    %c0_96 = arith.constant 0 : index
    %105 = vector.load %arg6[%c2_93, %c0_94, %c0_95, %c0_96] : memref<4x4x16x9xbf16, #tpu.memory_space<vmem>>, vector<1x1x16x9xbf16>
    %106 = vector.shape_cast %105 : vector<1x1x16x9xbf16> to vector<16x9xbf16>
    %cst_97 = arith.constant dense<0.000000e+00> : vector<8x9xf32>
    %107 = tpu.matmul %28, %106, %cst_97 {dimension_numbers = #tpu.dot_dimension_numbers<[1], [0], [0], [1], [0, 0, 1, 1], [], []>} : vector<8x16xbf16>, vector<16x9xbf16>, vector<8x9xf32> -> vector<8x9xf32>
    %108 = arith.addf %104, %107 : vector<8x9xf32>
    %c0_98 = arith.constant 0 : index
    %c2_99 = arith.constant 2 : index
    %c0_100 = arith.constant 0 : index
    %c0_101 = arith.constant 0 : index
    %109 = vector.load %arg6[%c0_98, %c2_99, %c0_100, %c0_101] : memref<4x4x16x9xbf16, #tpu.memory_space<vmem>>, vector<1x1x16x9xbf16>
    %110 = vector.shape_cast %109 : vector<1x1x16x9xbf16> to vector<16x9xbf16>
    %cst_102 = arith.constant dense<0.000000e+00> : vector<8x9xf32>
    %111 = tpu.matmul %36, %110, %cst_102 {dimension_numbers = #tpu.dot_dimension_numbers<[1], [0], [0], [1], [0, 0, 1, 1], [], []>} : vector<8x16xbf16>, vector<16x9xbf16>, vector<8x9xf32> -> vector<8x9xf32>
    %112 = arith.addf %108, %111 : vector<8x9xf32>
    %c0_103 = arith.constant 0 : index
    %c0_104 = arith.constant 0 : index
    %c0_105 = arith.constant 0 : index
    %c0_106 = arith.constant 0 : index
    %113 = vector.load %arg6[%c0_103, %c0_104, %c0_105, %c0_106] : memref<4x4x16x9xbf16, #tpu.memory_space<vmem>>, vector<1x1x16x9xbf16>
    %114 = vector.shape_cast %113 : vector<1x1x16x9xbf16> to vector<16x9xbf16>
    %cst_107 = arith.constant dense<0.000000e+00> : vector<8x9xf32>
    %115 = tpu.matmul %44, %114, %cst_107 {dimension_numbers = #tpu.dot_dimension_numbers<[1], [0], [0], [1], [0, 0, 1, 1], [], []>} : vector<8x16xbf16>, vector<16x9xbf16>, vector<8x9xf32> -> vector<8x9xf32>
    %116 = arith.addf %112, %115 : vector<8x9xf32>
    %c0_108 = arith.constant 0 : index
    %c0_109 = arith.constant 0 : index
    %117 = vector.load %arg7[%c0_108, %c0_109] : memref<1x9xf32, #tpu.memory_space<vmem>>, vector<1x9xf32>
    %118 = vector.broadcast %117 : vector<1x9xf32> to vector<8x9xf32>
    %119 = arith.addf %116, %118 : vector<8x9xf32>
    %c0_110 = arith.constant 0 : index
    %c1_111 = arith.constant 1 : index
    %c1_112 = arith.constant 1 : index
    %c0_113 = arith.constant 0 : index
    %120 = vector.load %arg8[%c0_110, %c1_111, %c1_112, %c0_113] : memref<8x4x4x9xf32, #tpu.memory_space<vmem>>, vector<8x1x1x9xf32>
    %121 = vector.shape_cast %120 : vector<8x1x1x9xf32> to vector<8x9xf32>
    %122 = vector.shape_cast %119 : vector<8x9xf32> to vector<8x1x1x9xf32>
    tpu.vector_store %arg8[%c0_110, %c1_111, %c1_112, %c0_113], %122 {strides = array<i32>} : memref<8x4x4x9xf32, #tpu.memory_space<vmem>>, vector<8x1x1x9xf32>,
    %c2_114 = arith.constant 2 : index
    %c3_115 = arith.constant 3 : index
    %c0_116 = arith.constant 0 : index
    %c0_117 = arith.constant 0 : index
    %123 = vector.load %arg6[%c2_114, %c3_115, %c0_116, %c0_117] : memref<4x4x16x9xbf16, #tpu.memory_space<vmem>>, vector<1x1x16x9xbf16>
    %124 = vector.shape_cast %123 : vector<1x1x16x9xbf16> to vector<16x9xbf16>
    %cst_118 = arith.constant dense<0.000000e+00> : vector<8x9xf32>
    %125 = tpu.matmul %20, %124, %cst_118 {dimension_numbers = #tpu.dot_dimension_numbers<[1], [0], [0], [1], [0, 0, 1, 1], [], []>} : vector<8x16xbf16>, vector<16x9xbf16>, vector<8x9xf32> -> vector<8x9xf32>
    %c2_119 = arith.constant 2 : index
    %c1_120 = arith.constant 1 : index
    %c0_121 = arith.constant 0 : index
    %c0_122 = arith.constant 0 : index
    %126 = vector.load %arg6[%c2_119, %c1_120, %c0_121, %c0_122] : memref<4x4x16x9xbf16, #tpu.memory_space<vmem>>, vector<1x1x16x9xbf16>
    %127 = vector.shape_cast %126 : vector<1x1x16x9xbf16> to vector<16x9xbf16>
    %cst_123 = arith.constant dense<0.000000e+00> : vector<8x9xf32>
    %128 = tpu.matmul %28, %127, %cst_123 {dimension_numbers = #tpu.dot_dimension_numbers<[1], [0], [0], [1], [0, 0, 1, 1], [], []>} : vector<8x16xbf16>, vector<16x9xbf16>, vector<8x9xf32> -> vector<8x9xf32>
    %129 = arith.addf %125, %128 : vector<8x9xf32>
    %c0_124 = arith.constant 0 : index
    %c3_125 = arith.constant 3 : index
    %c0_126 = arith.constant 0 : index
    %c0_127 = arith.constant 0 : index
    %130 = vector.load %arg6[%c0_124, %c3_125, %c0_126, %c0_127] : memref<4x4x16x9xbf16, #tpu.memory_space<vmem>>, vector<1x1x16x9xbf16>
    %131 = vector.shape_cast %130 : vector<1x1x16x9xbf16> to vector<16x9xbf16>
    %cst_128 = arith.constant dense<0.000000e+00> : vector<8x9xf32>
    %132 = tpu.matmul %36, %131, %cst_128 {dimension_numbers = #tpu.dot_dimension_numbers<[1], [0], [0], [1], [0, 0, 1, 1], [], []>} : vector<8x16xbf16>, vector<16x9xbf16>, vector<8x9xf32> -> vector<8x9xf32>
    %133 = arith.addf %129, %132 : vector<8x9xf32>
    %c0_129 = arith.constant 0 : index
    %c1_130 = arith.constant 1 : index
    %c0_131 = arith.constant 0 : index
    %c0_132 = arith.constant 0 : index
    %134 = vector.load %arg6[%c0_129, %c1_130, %c0_131, %c0_132] : memref<4x4x16x9xbf16, #tpu.memory_space<vmem>>, vector<1x1x16x9xbf16>
    %135 = vector.shape_cast %134 : vector<1x1x16x9xbf16> to vector<16x9xbf16>
    %cst_133 = arith.constant dense<0.000000e+00> : vector<8x9xf32>
    %136 = tpu.matmul %44, %135, %cst_133 {dimension_numbers = #tpu.dot_dimension_numbers<[1], [0], [0], [1], [0, 0, 1, 1], [], []>} : vector<8x16xbf16>, vector<16x9xbf16>, vector<8x9xf32> -> vector<8x9xf32>
    %137 = arith.addf %133, %136 : vector<8x9xf32>
    %c0_134 = arith.constant 0 : index
    %c0_135 = arith.constant 0 : index
    %138 = vector.load %arg7[%c0_134, %c0_135] : memref<1x9xf32, #tpu.memory_space<vmem>>, vector<1x9xf32>
    %139 = vector.broadcast %138 : vector<1x9xf32> to vector<8x9xf32>
    %140 = arith.addf %137, %139 : vector<8x9xf32>
    %c0_136 = arith.constant 0 : index
    %c1_137 = arith.constant 1 : index
    %c2_138 = arith.constant 2 : index
    %c0_139 = arith.constant 0 : index
    %141 = vector.load %arg8[%c0_136, %c1_137, %c2_138, %c0_139] : memref<8x4x4x9xf32, #tpu.memory_space<vmem>>, vector<8x1x1x9xf32>
    %142 = vector.shape_cast %141 : vector<8x1x1x9xf32> to vector<8x9xf32>
    %143 = vector.shape_cast %140 : vector<8x9xf32> to vector<8x1x1x9xf32>
    tpu.vector_store %arg8[%c0_136, %c1_137, %c2_138, %c0_139], %143 {strides = array<i32>} : memref<8x4x4x9xf32, #tpu.memory_space<vmem>>, vector<8x1x1x9xf32>,
    %c2_140 = arith.constant 2 : index
    %c2_141 = arith.constant 2 : index
    %c0_142 = arith.constant 0 : index
    %c0_143 = arith.constant 0 : index
    %144 = vector.load %arg6[%c2_140, %c2_141, %c0_142, %c0_143] : memref<4x4x16x9xbf16, #tpu.memory_space<vmem>>, vector<1x1x16x9xbf16>
    %145 = vector.shape_cast %144 : vector<1x1x16x9xbf16> to vector<16x9xbf16>
    %cst_144 = arith.constant dense<0.000000e+00> : vector<8x9xf32>
    %146 = tpu.matmul %28, %145, %cst_144 {dimension_numbers = #tpu.dot_dimension_numbers<[1], [0], [0], [1], [0, 0, 1, 1], [], []>} : vector<8x16xbf16>, vector<16x9xbf16>, vector<8x9xf32> -> vector<8x9xf32>
    %c0_145 = arith.constant 0 : index
    %c2_146 = arith.constant 2 : index
    %c0_147 = arith.constant 0 : index
    %c0_148 = arith.constant 0 : index
    %147 = vector.load %arg6[%c0_145, %c2_146, %c0_147, %c0_148] : memref<4x4x16x9xbf16, #tpu.memory_space<vmem>>, vector<1x1x16x9xbf16>
    %148 = vector.shape_cast %147 : vector<1x1x16x9xbf16> to vector<16x9xbf16>
    %cst_149 = arith.constant dense<0.000000e+00> : vector<8x9xf32>
    %149 = tpu.matmul %44, %148, %cst_149 {dimension_numbers = #tpu.dot_dimension_numbers<[1], [0], [0], [1], [0, 0, 1, 1], [], []>} : vector<8x16xbf16>, vector<16x9xbf16>, vector<8x9xf32> -> vector<8x9xf32>
    %150 = arith.addf %146, %149 : vector<8x9xf32>
    %c0_150 = arith.constant 0 : index
    %c0_151 = arith.constant 0 : index
    %151 = vector.load %arg7[%c0_150, %c0_151] : memref<1x9xf32, #tpu.memory_space<vmem>>, vector<1x9xf32>
    %152 = vector.broadcast %151 : vector<1x9xf32> to vector<8x9xf32>
    %153 = arith.addf %150, %152 : vector<8x9xf32>
    %c0_152 = arith.constant 0 : index
    %c1_153 = arith.constant 1 : index
    %c3_154 = arith.constant 3 : index
    %c0_155 = arith.constant 0 : index
    %154 = vector.load %arg8[%c0_152, %c1_153, %c3_154, %c0_155] : memref<8x4x4x9xf32, #tpu.memory_space<vmem>>, vector<8x1x1x9xf32>
    %155 = vector.shape_cast %154 : vector<8x1x1x9xf32> to vector<8x9xf32>
    %156 = vector.shape_cast %153 : vector<8x9xf32> to vector<8x1x1x9xf32>
    tpu.vector_store %arg8[%c0_152, %c1_153, %c3_154, %c0_155], %156 {strides = array<i32>} : memref<8x4x4x9xf32, #tpu.memory_space<vmem>>, vector<8x1x1x9xf32>,
    %c3_156 = arith.constant 3 : index
    %c1_157 = arith.constant 1 : index
    %c0_158 = arith.constant 0 : index
    %c0_159 = arith.constant 0 : index
    %157 = vector.load %arg6[%c3_156, %c1_157, %c0_158, %c0_159] : memref<4x4x16x9xbf16, #tpu.memory_space<vmem>>, vector<1x1x16x9xbf16>
    %158 = vector.shape_cast %157 : vector<1x1x16x9xbf16> to vector<16x9xbf16>
    %cst_160 = arith.constant dense<0.000000e+00> : vector<8x9xf32>
    %159 = tpu.matmul %20, %158, %cst_160 {dimension_numbers = #tpu.dot_dimension_numbers<[1], [0], [0], [1], [0, 0, 1, 1], [], []>} : vector<8x16xbf16>, vector<16x9xbf16>, vector<8x9xf32> -> vector<8x9xf32>
    %c1_161 = arith.constant 1 : index
    %c1_162 = arith.constant 1 : index
    %c0_163 = arith.constant 0 : index
    %c0_164 = arith.constant 0 : index
    %160 = vector.load %arg6[%c1_161, %c1_162, %c0_163, %c0_164] : memref<4x4x16x9xbf16, #tpu.memory_space<vmem>>, vector<1x1x16x9xbf16>
    %161 = vector.shape_cast %160 : vector<1x1x16x9xbf16> to vector<16x9xbf16>
    %cst_165 = arith.constant dense<0.000000e+00> : vector<8x9xf32>
    %162 = tpu.matmul %36, %161, %cst_165 {dimension_numbers = #tpu.dot_dimension_numbers<[1], [0], [0], [1], [0, 0, 1, 1], [], []>} : vector<8x16xbf16>, vector<16x9xbf16>, vector<8x9xf32> -> vector<8x9xf32>
    %163 = arith.addf %159, %162 : vector<8x9xf32>
    %c0_166 = arith.constant 0 : index
    %c0_167 = arith.constant 0 : index
    %164 = vector.load %arg7[%c0_166, %c0_167] : memref<1x9xf32, #tpu.memory_space<vmem>>, vector<1x9xf32>
    %165 = vector.broadcast %164 : vector<1x9xf32> to vector<8x9xf32>
    %166 = arith.addf %163, %165 : vector<8x9xf32>
    %c0_168 = arith.constant 0 : index
    %c2_169 = arith.constant 2 : index
    %c0_170 = arith.constant 0 : index
    %c0_171 = arith.constant 0 : index
    %167 = vector.load %arg8[%c0_168, %c2_169, %c0_170, %c0_171] : memref<8x4x4x9xf32, #tpu.memory_space<vmem>>, vector<8x1x1x9xf32>
    %168 = vector.shape_cast %167 : vector<8x1x1x9xf32> to vector<8x9xf32>
    %169 = vector.shape_cast %166 : vector<8x9xf32> to vector<8x1x1x9xf32>
    tpu.vector_store %arg8[%c0_168, %c2_169, %c0_170, %c0_171], %169 {strides = array<i32>} : memref<8x4x4x9xf32, #tpu.memory_space<vmem>>, vector<8x1x1x9xf32>,
    %c3_172 = arith.constant 3 : index
    %c2_173 = arith.constant 2 : index
    %c0_174 = arith.constant 0 : index
    %c0_175 = arith.constant 0 : index
    %170 = vector.load %arg6[%c3_172, %c2_173, %c0_174, %c0_175] : memref<4x4x16x9xbf16, #tpu.memory_space<vmem>>, vector<1x1x16x9xbf16>
    %171 = vector.shape_cast %170 : vector<1x1x16x9xbf16> to vector<16x9xbf16>
    %cst_176 = arith.constant dense<0.000000e+00> : vector<8x9xf32>
    %172 = tpu.matmul %20, %171, %cst_176 {dimension_numbers = #tpu.dot_dimension_numbers<[1], [0], [0], [1], [0, 0, 1, 1], [], []>} : vector<8x16xbf16>, vector<16x9xbf16>, vector<8x9xf32> -> vector<8x9xf32>
    %c3_177 = arith.constant 3 : index
    %c0_178 = arith.constant 0 : index
    %c0_179 = arith.constant 0 : index
    %c0_180 = arith.constant 0 : index
    %173 = vector.load %arg6[%c3_177, %c0_178, %c0_179, %c0_180] : memref<4x4x16x9xbf16, #tpu.memory_space<vmem>>, vector<1x1x16x9xbf16>
    %174 = vector.shape_cast %173 : vector<1x1x16x9xbf16> to vector<16x9xbf16>
    %cst_181 = arith.constant dense<0.000000e+00> : vector<8x9xf32>
    %175 = tpu.matmul %28, %174, %cst_181 {dimension_numbers = #tpu.dot_dimension_numbers<[1], [0], [0], [1], [0, 0, 1, 1], [], []>} : vector<8x16xbf16>, vector<16x9xbf16>, vector<8x9xf32> -> vector<8x9xf32>
    %176 = arith.addf %172, %175 : vector<8x9xf32>
    %c1_182 = arith.constant 1 : index
    %c2_183 = arith.constant 2 : index
    %c0_184 = arith.constant 0 : index
    %c0_185 = arith.constant 0 : index
    %177 = vector.load %arg6[%c1_182, %c2_183, %c0_184, %c0_185] : memref<4x4x16x9xbf16, #tpu.memory_space<vmem>>, vector<1x1x16x9xbf16>
    %178 = vector.shape_cast %177 : vector<1x1x16x9xbf16> to vector<16x9xbf16>
    %cst_186 = arith.constant dense<0.000000e+00> : vector<8x9xf32>
    %179 = tpu.matmul %36, %178, %cst_186 {dimension_numbers = #tpu.dot_dimension_numbers<[1], [0], [0], [1], [0, 0, 1, 1], [], []>} : vector<8x16xbf16>, vector<16x9xbf16>, vector<8x9xf32> -> vector<8x9xf32>
    %180 = arith.addf %176, %179 : vector<8x9xf32>
    %c1_187 = arith.constant 1 : index
    %c0_188 = arith.constant 0 : index
    %c0_189 = arith.constant 0 : index
    %c0_190 = arith.constant 0 : index
    %181 = vector.load %arg6[%c1_187, %c0_188, %c0_189, %c0_190] : memref<4x4x16x9xbf16, #tpu.memory_space<vmem>>, vector<1x1x16x9xbf16>
    %182 = vector.shape_cast %181 : vector<1x1x16x9xbf16> to vector<16x9xbf16>
    %cst_191 = arith.constant dense<0.000000e+00> : vector<8x9xf32>
    %183 = tpu.matmul %44, %182, %cst_191 {dimension_numbers = #tpu.dot_dimension_numbers<[1], [0], [0], [1], [0, 0, 1, 1], [], []>} : vector<8x16xbf16>, vector<16x9xbf16>, vector<8x9xf32> -> vector<8x9xf32>
    %184 = arith.addf %180, %183 : vector<8x9xf32>
    %c0_192 = arith.constant 0 : index
    %c0_193 = arith.constant 0 : index
    %185 = vector.load %arg7[%c0_192, %c0_193] : memref<1x9xf32, #tpu.memory_space<vmem>>, vector<1x9xf32>
    %186 = vector.broadcast %185 : vector<1x9xf32> to vector<8x9xf32>
    %187 = arith.addf %184, %186 : vector<8x9xf32>
    %c0_194 = arith.constant 0 : index
    %c2_195 = arith.constant 2 : index
    %c1_196 = arith.constant 1 : index
    %c0_197 = arith.constant 0 : index
    %188 = vector.load %arg8[%c0_194, %c2_195, %c1_196, %c0_197] : memref<8x4x4x9xf32, #tpu.memory_space<vmem>>, vector<8x1x1x9xf32>
    %189 = vector.shape_cast %188 : vector<8x1x1x9xf32> to vector<8x9xf32>
    %190 = vector.shape_cast %187 : vector<8x9xf32> to vector<8x1x1x9xf32>
    tpu.vector_store %arg8[%c0_194, %c2_195, %c1_196, %c0_197], %190 {strides = array<i32>} : memref<8x4x4x9xf32, #tpu.memory_space<vmem>>, vector<8x1x1x9xf32>,
    %c3_198 = arith.constant 3 : index
    %c3_199 = arith.constant 3 : index
    %c0_200 = arith.constant 0 : index
    %c0_201 = arith.constant 0 : index
    %191 = vector.load %arg6[%c3_198, %c3_199, %c0_200, %c0_201] : memref<4x4x16x9xbf16, #tpu.memory_space<vmem>>, vector<1x1x16x9xbf16>
    %192 = vector.shape_cast %191 : vector<1x1x16x9xbf16> to vector<16x9xbf16>
    %cst_202 = arith.constant dense<0.000000e+00> : vector<8x9xf32>
    %193 = tpu.matmul %20, %192, %cst_202 {dimension_numbers = #tpu.dot_dimension_numbers<[1], [0], [0], [1], [0, 0, 1, 1], [], []>} : vector<8x16xbf16>, vector<16x9xbf16>, vector<8x9xf32> -> vector<8x9xf32>
    %c3_203 = arith.constant 3 : index
    %c1_204 = arith.constant 1 : index
    %c0_205 = arith.constant 0 : index
    %c0_206 = arith.constant 0 : index
    %194 = vector.load %arg6[%c3_203, %c1_204, %c0_205, %c0_206] : memref<4x4x16x9xbf16, #tpu.memory_space<vmem>>, vector<1x1x16x9xbf16>
    %195 = vector.shape_cast %194 : vector<1x1x16x9xbf16> to vector<16x9xbf16>
    %cst_207 = arith.constant dense<0.000000e+00> : vector<8x9xf32>
    %196 = tpu.matmul %28, %195, %cst_207 {dimension_numbers = #tpu.dot_dimension_numbers<[1], [0], [0], [1], [0, 0, 1, 1], [], []>} : vector<8x16xbf16>, vector<16x9xbf16>, vector<8x9xf32> -> vector<8x9xf32>
    %197 = arith.addf %193, %196 : vector<8x9xf32>
    %c1_208 = arith.constant 1 : index
    %c3_209 = arith.constant 3 : index
    %c0_210 = arith.constant 0 : index
    %c0_211 = arith.constant 0 : index
    %198 = vector.load %arg6[%c1_208, %c3_209, %c0_210, %c0_211] : memref<4x4x16x9xbf16, #tpu.memory_space<vmem>>, vector<1x1x16x9xbf16>
    %199 = vector.shape_cast %198 : vector<1x1x16x9xbf16> to vector<16x9xbf16>
    %cst_212 = arith.constant dense<0.000000e+00> : vector<8x9xf32>
    %200 = tpu.matmul %36, %199, %cst_212 {dimension_numbers = #tpu.dot_dimension_numbers<[1], [0], [0], [1], [0, 0, 1, 1], [], []>} : vector<8x16xbf16>, vector<16x9xbf16>, vector<8x9xf32> -> vector<8x9xf32>
    %201 = arith.addf %197, %200 : vector<8x9xf32>
    %c1_213 = arith.constant 1 : index
    %c1_214 = arith.constant 1 : index
    %c0_215 = arith.constant 0 : index
    %c0_216 = arith.constant 0 : index
    %202 = vector.load %arg6[%c1_213, %c1_214, %c0_215, %c0_216] : memref<4x4x16x9xbf16, #tpu.memory_space<vmem>>, vector<1x1x16x9xbf16>
    %203 = vector.shape_cast %202 : vector<1x1x16x9xbf16> to vector<16x9xbf16>
    %cst_217 = arith.constant dense<0.000000e+00> : vector<8x9xf32>
    %204 = tpu.matmul %44, %203, %cst_217 {dimension_numbers = #tpu.dot_dimension_numbers<[1], [0], [0], [1], [0, 0, 1, 1], [], []>} : vector<8x16xbf16>, vector<16x9xbf16>, vector<8x9xf32> -> vector<8x9xf32>
    %205 = arith.addf %201, %204 : vector<8x9xf32>
    %c0_218 = arith.constant 0 : index
    %c0_219 = arith.constant 0 : index
    %206 = vector.load %arg7[%c0_218, %c0_219] : memref<1x9xf32, #tpu.memory_space<vmem>>, vector<1x9xf32>
    %207 = vector.broadcast %206 : vector<1x9xf32> to vector<8x9xf32>
    %208 = arith.addf %205, %207 : vector<8x9xf32>
    %c0_220 = arith.constant 0 : index
    %c2_221 = arith.constant 2 : index
    %c2_222 = arith.constant 2 : index
    %c0_223 = arith.constant 0 : index
    %209 = vector.load %arg8[%c0_220, %c2_221, %c2_222, %c0_223] : memref<8x4x4x9xf32, #tpu.memory_space<vmem>>, vector<8x1x1x9xf32>
    %210 = vector.shape_cast %209 : vector<8x1x1x9xf32> to vector<8x9xf32>
    %211 = vector.shape_cast %208 : vector<8x9xf32> to vector<8x1x1x9xf32>
    tpu.vector_store %arg8[%c0_220, %c2_221, %c2_222, %c0_223], %211 {strides = array<i32>} : memref<8x4x4x9xf32, #tpu.memory_space<vmem>>, vector<8x1x1x9xf32>,
    %c3_224 = arith.constant 3 : index
    %c2_225 = arith.constant 2 : index
    %c0_226 = arith.constant 0 : index
    %c0_227 = arith.constant 0 : index
    %212 = vector.load %arg6[%c3_224, %c2_225, %c0_226, %c0_227] : memref<4x4x16x9xbf16, #tpu.memory_space<vmem>>, vector<1x1x16x9xbf16>
    %213 = vector.shape_cast %212 : vector<1x1x16x9xbf16> to vector<16x9xbf16>
    %cst_228 = arith.constant dense<0.000000e+00> : vector<8x9xf32>
    %214 = tpu.matmul %28, %213, %cst_228 {dimension_numbers = #tpu.dot_dimension_numbers<[1], [0], [0], [1], [0, 0, 1, 1], [], []>} : vector<8x16xbf16>, vector<16x9xbf16>, vector<8x9xf32> -> vector<8x9xf32>
    %c1_229 = arith.constant 1 : index
    %c2_230 = arith.constant 2 : index
    %c0_231 = arith.constant 0 : index
    %c0_232 = arith.constant 0 : index
    %215 = vector.load %arg6[%c1_229, %c2_230, %c0_231, %c0_232] : memref<4x4x16x9xbf16, #tpu.memory_space<vmem>>, vector<1x1x16x9xbf16>
    %216 = vector.shape_cast %215 : vector<1x1x16x9xbf16> to vector<16x9xbf16>
    %cst_233 = arith.constant dense<0.000000e+00> : vector<8x9xf32>
    %217 = tpu.matmul %44, %216, %cst_233 {dimension_numbers = #tpu.dot_dimension_numbers<[1], [0], [0], [1], [0, 0, 1, 1], [], []>} : vector<8x16xbf16>, vector<16x9xbf16>, vector<8x9xf32> -> vector<8x9xf32>
    %218 = arith.addf %214, %217 : vector<8x9xf32>
    %c0_234 = arith.constant 0 : index
    %c0_235 = arith.constant 0 : index
    %219 = vector.load %arg7[%c0_234, %c0_235] : memref<1x9xf32, #tpu.memory_space<vmem>>, vector<1x9xf32>
    %220 = vector.broadcast %219 : vector<1x9xf32> to vector<8x9xf32>
    %221 = arith.addf %218, %220 : vector<8x9xf32>
    %c0_236 = arith.constant 0 : index
    %c2_237 = arith.constant 2 : index
    %c3_238 = arith.constant 3 : index
    %c0_239 = arith.constant 0 : index
    %222 = vector.load %arg8[%c0_236, %c2_237, %c3_238, %c0_239] : memref<8x4x4x9xf32, #tpu.memory_space<vmem>>, vector<8x1x1x9xf32>
    %223 = vector.shape_cast %222 : vector<8x1x1x9xf32> to vector<8x9xf32>
    %224 = vector.shape_cast %221 : vector<8x9xf32> to vector<8x1x1x9xf32>
    tpu.vector_store %arg8[%c0_236, %c2_237, %c3_238, %c0_239], %224 {strides = array<i32>} : memref<8x4x4x9xf32, #tpu.memory_space<vmem>>, vector<8x1x1x9xf32>,
    %c2_240 = arith.constant 2 : index
    %c1_241 = arith.constant 1 : index
    %c0_242 = arith.constant 0 : index
    %c0_243 = arith.constant 0 : index
    %225 = vector.load %arg6[%c2_240, %c1_241, %c0_242, %c0_243] : memref<4x4x16x9xbf16, #tpu.memory_space<vmem>>, vector<1x1x16x9xbf16>
    %226 = vector.shape_cast %225 : vector<1x1x16x9xbf16> to vector<16x9xbf16>
    %cst_244 = arith.constant dense<0.000000e+00> : vector<8x9xf32>
    %227 = tpu.matmul %36, %226, %cst_244 {dimension_numbers = #tpu.dot_dimension_numbers<[1], [0], [0], [1], [0, 0, 1, 1], [], []>} : vector<8x16xbf16>, vector<16x9xbf16>, vector<8x9xf32> -> vector<8x9xf32>
    %c0_245 = arith.constant 0 : index
    %c0_246 = arith.constant 0 : index
    %228 = vector.load %arg7[%c0_245, %c0_246] : memref<1x9xf32, #tpu.memory_space<vmem>>, vector<1x9xf32>
    %229 = vector.broadcast %228 : vector<1x9xf32> to vector<8x9xf32>
    %230 = arith.addf %227, %229 : vector<8x9xf32>
    %c0_247 = arith.constant 0 : index
    %c3_248 = arith.constant 3 : index
    %c0_249 = arith.constant 0 : index
    %c0_250 = arith.constant 0 : index
    %231 = vector.load %arg8[%c0_247, %c3_248, %c0_249, %c0_250] : memref<8x4x4x9xf32, #tpu.memory_space<vmem>>, vector<8x1x1x9xf32>
    %232 = vector.shape_cast %231 : vector<8x1x1x9xf32> to vector<8x9xf32>
    %233 = vector.shape_cast %230 : vector<8x9xf32> to vector<8x1x1x9xf32>
    tpu.vector_store %arg8[%c0_247, %c3_248, %c0_249, %c0_250], %233 {strides = array<i32>} : memref<8x4x4x9xf32, #tpu.memory_space<vmem>>, vector<8x1x1x9xf32>,
    %c2_251 = arith.constant 2 : index
    %c2_252 = arith.constant 2 : index
    %c0_253 = arith.constant 0 : index
    %c0_254 = arith.constant 0 : index
    %234 = vector.load %arg6[%c2_251, %c2_252, %c0_253, %c0_254] : memref<4x4x16x9xbf16, #tpu.memory_space<vmem>>, vector<1x1x16x9xbf16>
    %235 = vector.shape_cast %234 : vector<1x1x16x9xbf16> to vector<16x9xbf16>
    %cst_255 = arith.constant dense<0.000000e+00> : vector<8x9xf32>
    %236 = tpu.matmul %36, %235, %cst_255 {dimension_numbers = #tpu.dot_dimension_numbers<[1], [0], [0], [1], [0, 0, 1, 1], [], []>} : vector<8x16xbf16>, vector<16x9xbf16>, vector<8x9xf32> -> vector<8x9xf32>
    %c2_256 = arith.constant 2 : index
    %c0_257 = arith.constant 0 : index
    %c0_258 = arith.constant 0 : index
    %c0_259 = arith.constant 0 : index
    %237 = vector.load %arg6[%c2_256, %c0_257, %c0_258, %c0_259] : memref<4x4x16x9xbf16, #tpu.memory_space<vmem>>, vector<1x1x16x9xbf16>
    %238 = vector.shape_cast %237 : vector<1x1x16x9xbf16> to vector<16x9xbf16>
    %cst_260 = arith.constant dense<0.000000e+00> : vector<8x9xf32>
    %239 = tpu.matmul %44, %238, %cst_260 {dimension_numbers = #tpu.dot_dimension_numbers<[1], [0], [0], [1], [0, 0, 1, 1], [], []>} : vector<8x16xbf16>, vector<16x9xbf16>, vector<8x9xf32> -> vector<8x9xf32>
    %240 = arith.addf %236, %239 : vector<8x9xf32>
    %c0_261 = arith.constant 0 : index
    %c0_262 = arith.constant 0 : index
    %241 = vector.load %arg7[%c0_261, %c0_262] : memref<1x9xf32, #tpu.memory_space<vmem>>, vector<1x9xf32>
    %242 = vector.broadcast %241 : vector<1x9xf32> to vector<8x9xf32>
    %243 = arith.addf %240, %242 : vector<8x9xf32>
    %c0_263 = arith.constant 0 : index
    %c3_264 = arith.constant 3 : index
    %c1_265 = arith.constant 1 : index
    %c0_266 = arith.constant 0 : index
    %244 = vector.load %arg8[%c0_263, %c3_264, %c1_265, %c0_266] : memref<8x4x4x9xf32, #tpu.memory_space<vmem>>, vector<8x1x1x9xf32>
    %245 = vector.shape_cast %244 : vector<8x1x1x9xf32> to vector<8x9xf32>
    %246 = vector.shape_cast %243 : vector<8x9xf32> to vector<8x1x1x9xf32>
    tpu.vector_store %arg8[%c0_263, %c3_264, %c1_265, %c0_266], %246 {strides = array<i32>} : memref<8x4x4x9xf32, #tpu.memory_space<vmem>>, vector<8x1x1x9xf32>,
    %c2_267 = arith.constant 2 : index
    %c3_268 = arith.constant 3 : index
    %c0_269 = arith.constant 0 : index
    %c0_270 = arith.constant 0 : index
    %247 = vector.load %arg6[%c2_267, %c3_268, %c0_269, %c0_270] : memref<4x4x16x9xbf16, #tpu.memory_space<vmem>>, vector<1x1x16x9xbf16>
    %248 = vector.shape_cast %247 : vector<1x1x16x9xbf16> to vector<16x9xbf16>
    %cst_271 = arith.constant dense<0.000000e+00> : vector<8x9xf32>
    %249 = tpu.matmul %36, %248, %cst_271 {dimension_numbers = #tpu.dot_dimension_numbers<[1], [0], [0], [1], [0, 0, 1, 1], [], []>} : vector<8x16xbf16>, vector<16x9xbf16>, vector<8x9xf32> -> vector<8x9xf32>
    %c2_272 = arith.constant 2 : index
    %c1_273 = arith.constant 1 : index
    %c0_274 = arith.constant 0 : index
    %c0_275 = arith.constant 0 : index
    %250 = vector.load %arg6[%c2_272, %c1_273, %c0_274, %c0_275] : memref<4x4x16x9xbf16, #tpu.memory_space<vmem>>, vector<1x1x16x9xbf16>
    %251 = vector.shape_cast %250 : vector<1x1x16x9xbf16> to vector<16x9xbf16>
    %cst_276 = arith.constant dense<0.000000e+00> : vector<8x9xf32>
    %252 = tpu.matmul %44, %251, %cst_276 {dimension_numbers = #tpu.dot_dimension_numbers<[1], [0], [0], [1], [0, 0, 1, 1], [], []>} : vector<8x16xbf16>, vector<16x9xbf16>, vector<8x9xf32> -> vector<8x9xf32>
    %253 = arith.addf %249, %252 : vector<8x9xf32>
    %c0_277 = arith.constant 0 : index
    %c0_278 = arith.constant 0 : index
    %254 = vector.load %arg7[%c0_277, %c0_278] : memref<1x9xf32, #tpu.memory_space<vmem>>, vector<1x9xf32>
    %255 = vector.broadcast %254 : vector<1x9xf32> to vector<8x9xf32>
    %256 = arith.addf %253, %255 : vector<8x9xf32>
    %c0_279 = arith.constant 0 : index
    %c3_280 = arith.constant 3 : index
    %c2_281 = arith.constant 2 : index
    %c0_282 = arith.constant 0 : index
    %257 = vector.load %arg8[%c0_279, %c3_280, %c2_281, %c0_282] : memref<8x4x4x9xf32, #tpu.memory_space<vmem>>, vector<8x1x1x9xf32>
    %258 = vector.shape_cast %257 : vector<8x1x1x9xf32> to vector<8x9xf32>
    %259 = vector.shape_cast %256 : vector<8x9xf32> to vector<8x1x1x9xf32>
    tpu.vector_store %arg8[%c0_279, %c3_280, %c2_281, %c0_282], %259 {strides = array<i32>} : memref<8x4x4x9xf32, #tpu.memory_space<vmem>>, vector<8x1x1x9xf32>,
    %c2_283 = arith.constant 2 : index
    %c2_284 = arith.constant 2 : index
    %c0_285 = arith.constant 0 : index
    %c0_286 = arith.constant 0 : index
    %260 = vector.load %arg6[%c2_283, %c2_284, %c0_285, %c0_286] : memref<4x4x16x9xbf16, #tpu.memory_space<vmem>>, vector<1x1x16x9xbf16>
    %261 = vector.shape_cast %260 : vector<1x1x16x9xbf16> to vector<16x9xbf16>
    %cst_287 = arith.constant dense<0.000000e+00> : vector<8x9xf32>
    %262 = tpu.matmul %44, %261, %cst_287 {dimension_numbers = #tpu.dot_dimension_numbers<[1], [0], [0], [1], [0, 0, 1, 1], [], []>} : vector<8x16xbf16>, vector<16x9xbf16>, vector<8x9xf32> -> vector<8x9xf32>
    %c0_288 = arith.constant 0 : index
    %c0_289 = arith.constant 0 : index
    %263 = vector.load %arg7[%c0_288, %c0_289] : memref<1x9xf32, #tpu.memory_space<vmem>>, vector<1x9xf32>
    %264 = vector.broadcast %263 : vector<1x9xf32> to vector<8x9xf32>
    %265 = arith.addf %262, %264 : vector<8x9xf32>
    %c0_290 = arith.constant 0 : index
    %c3_291 = arith.constant 3 : index
    %c3_292 = arith.constant 3 : index
    %c0_293 = arith.constant 0 : index
    %266 = vector.load %arg8[%c0_290, %c3_291, %c3_292, %c0_293] : memref<8x4x4x9xf32, #tpu.memory_space<vmem>>, vector<8x1x1x9xf32>
    %267 = vector.shape_cast %266 : vector<8x1x1x9xf32> to vector<8x9xf32>
    %268 = vector.shape_cast %265 : vector<8x9xf32> to vector<8x1x1x9xf32>
    tpu.vector_store %arg8[%c0_290, %c3_291, %c3_292, %c0_293], %268 {strides = array<i32>} : memref<8x4x4x9xf32, #tpu.memory_space<vmem>>, vector<8x1x1x9xf32>,
    return
  }
  func.func @transform_0(%arg0: i32) -> (i32, i32) {
    %c0_i32 = arith.constant 0 : i32
    %c0_i32_0 = arith.constant 0 : i32
    return %arg0, %c0_i32 : i32, i32
  }
  func.func @transform_1(%arg0: i32) -> (i32, i32) {
    %c0_i32 = arith.constant 0 : i32
    %c0_i32_0 = arith.constant 0 : i32
    %c0_i32_1 = arith.constant 0 : i32
    return %c0_i32, %c0_i32_0 : i32, i32
  }
  func.func @transform_2(%arg0: i32) -> (i32, i32) {
    %c0_i32 = arith.constant 0 : i32
    %c0_i32_0 = arith.constant 0 : i32
    %c0_i32_1 = arith.constant 0 : i32
    return %c0_i32, %c0_i32_0 : i32, i32
  }
  func.func @transform_3(%arg0: i32) -> (i32, i32) {
    %c0_i32 = arith.constant 0 : i32
    %c0_i32_0 = arith.constant 0 : i32
    %c0_i32_1 = arith.constant 0 : i32
    return %c0_i32, %c0_i32_0 : i32, i32
  }
  func.func @transform_4(%arg0: i32) -> (i32, i32) {
    %c0_i32 = arith.constant 0 : i32
    %c0_i32_0 = arith.constant 0 : i32
    %c0_i32_1 = arith.constant 0 : i32
    return %c0_i32, %c0_i32_0 : i32, i32
  }
  func.func @transform_5(%arg0: i32) -> (i32, i32, i32, i32) {
    %c0_i32 = arith.constant 0 : i32
    %c0_i32_0 = arith.constant 0 : i32
    %c0_i32_1 = arith.constant 0 : i32
    %c0_i32_2 = arith.constant 0 : i32
    %c0_i32_3 = arith.constant 0 : i32
    return %c0_i32, %c0_i32_0, %c0_i32_1, %c0_i32_2 : i32, i32, i32, i32
  }
  func.func @transform_6(%arg0: i32) -> (i32, i32) {
    %c0_i32 = arith.constant 0 : i32
    %c0_i32_0 = arith.constant 0 : i32
    %c0_i32_1 = arith.constant 0 : i32
    return %c0_i32, %c0_i32_0 : i32, i32
  }
  func.func @transform_7(%arg0: i32) -> (i32, i32, i32, i32) {
    %c0_i32 = arith.constant 0 : i32
    %c0_i32_0 = arith.constant 0 : i32
    %c0_i32_1 = arith.constant 0 : i32
    %c0_i32_2 = arith.constant 0 : i32
    return %arg0, %c0_i32, %c0_i32_0, %c0_i32_1 : i32, i32, i32, i32
  }
}

</mosaic_0001>

<llo_original>
// kernel: tpu_custom_call.1
$region0: #{tpu_custom_call.1}
  #allocation0 [shape = 'u32[]', space=smem, size = 0x4, offset = 0x4, fixed_abs, tag = 'smem constant byte address 0x4 - core index']
  #allocation1 [shape = 'u32[144,128]{1,0:T(1,128)}', space=vmem, size = 0x12000, scoped, tag = 'internal scratch']
  %s0 = inlined_call_operand.vmem [shape: f32[16,16], index: 0, kind: input, shape index: {}]
  %s1 = inlined_call_operand.vmem [shape: bf16[16,32], index: 1, kind: input, shape index: {}]
  %s2 = inlined_call_operand.vmem [shape: f32[1,32], index: 2, kind: input, shape index: {}]
  %s3 = inlined_call_operand.vmem [shape: bf16[32,64], index: 3, kind: input, shape index: {}]
  %s4 = inlined_call_operand.vmem [shape: f32[1,16], index: 4, kind: input, shape index: {}]
  %s5 = inlined_call_operand.vmem [shape: bf16[4,4,16,9], index: 5, kind: input, shape index: {}]
  %s6 = inlined_call_operand.vmem [shape: f32[1,9], index: 6, kind: input, shape index: {}]
  %s7 = inlined_call_operand.vmem [shape: f32[16,4,4,9], index: 7, kind: output, shape index: {}]
  %s8 = sld [smem:[#allocation0]]
  $region61: #{tpu_custom_call.1} parent=0
    _
  %s10 = ssub.s32 1, %s8
  %s11 = scalar_select 0, %s10, %s8
  loop: start=0, step=1, limit=4
  $region2: #{tpu_custom_call.1} parent=0 // loop_pre_header
    _
  $region3: #{tpu_custom_call.1} parent=0 // loop_header
    %s13 = sphi 0, %s17
    %p14 = scmp.ge.s32.totalorder %s13, 4
    %s23 = sphi 0, %s25
    %s26 = sphi 0, %s23
    %s27 = sphi 0, %s26
    %s43 = sphi 0, %s27
    %s47 = sphi 0, %s47
    %s49 = sphi 0, %s47
    %s50 = sphi 0, %s49
    %s64 = sphi 0, %s50
    %s68 = sphi 0, %s68
    %s70 = sphi 0, %s68
    %s71 = sphi 0, %s70
    %s85 = sphi 0, %s71
    %s89 = sphi 0, %s89
    %s91 = sphi 0, %s89
    %s92 = sphi 0, %s91
    %s106 = sphi 0, %s92
    %s110 = sphi 0, %s110
    %s112 = sphi 0, %s110
    %s113 = sphi 0, %s112
    %s127 = sphi 0, %s113
    %s131 = sphi 0, %s131
    %s133 = sphi 0, %s131
    %s134 = sphi 0, %s133
    %s148 = sphi 0, %s134
    %s152 = sphi 0, %s152
    %s154 = sphi 0, %s152
    %s155 = sphi 0, %s154
    %s169 = sphi 0, %s155
    %s175 = sphi 0, %s177
    %s178 = sphi 0, %s175
    %s179 = sphi 0, %s178
    %s195 = sphi 0, %s179
  $region4: #{tpu_custom_call.1} parent=0 // loop_header_branch
    %16 = sbr.rel (%p14) target = $region8
  $region5: #{tpu_custom_call.1} parent=0 // loop_body
    %s18 = ssub.s32 %s13, 1
    %s19 = ssub.s32 %s13, 2
    %s20 = sadd.s32 %s13, 1
    %s21 = ssub.s32 %s13, %s20
    %p22 = scmp.eq.s32.totalorder %s21, 0
    %s24 = sadd.s32 %s23, 1
    %s25 = scalar_select %p22, %s23, %s24
    %p28 = pneg %p22
    %p29 = scmp.eq.s32.totalorder %s13, 1
    %p30 = por %p28, %p29
    %p31 = scmp.ne.s32.totalorder %s23, %s26
    %p32 = scmp.eq.s32.totalorder %s13, 0
    %p33 = por %p31, %p32
    %p34 = scmp.ne.s32.totalorder %s23, %s26
    %p35 = scmp.eq.s32.totalorder %s18, 1
    %p36 = por %p34, %p35
    %p37 = scmp.ne.s32.totalorder %s26, %s27
    %p38 = scmp.eq.s32.totalorder %s18, 0
    %p39 = por %p37, %p38
    %p40 = scmp.ne.s32.totalorder %s26, %s27
    %p41 = scmp.eq.s32.totalorder %s19, 1
    %p42 = por %p40, %p41
    %p44 = scmp.ne.s32.totalorder %s27, %s43
    %p45 = scmp.eq.s32.totalorder %s19, 0
    %p46 = por %p44, %p45
    %s48 = sadd.s32 %s47, 1
    %p51 = scmp.eq.s32.totalorder %s13, 1
    %p52 = scmp.ne.s32.totalorder %s47, %s49
    %p53 = scmp.eq.s32.totalorder %s13, 0
    %p54 = por %p52, %p53
    %p55 = scmp.ne.s32.totalorder %s47, %s49
    %p56 = scmp.eq.s32.totalorder %s18, 1
    %p57 = por %p55, %p56
    %p58 = scmp.ne.s32.totalorder %s49, %s50
    %p59 = scmp.eq.s32.totalorder %s18, 0
    %p60 = por %p58, %p59
    %p61 = scmp.ne.s32.totalorder %s49, %s50
    %p62 = scmp.eq.s32.totalorder %s19, 1
    %p63 = por %p61, %p62
    %p65 = scmp.ne.s32.totalorder %s50, %s64
    %p66 = scmp.eq.s32.totalorder %s19, 0
    %p67 = por %p65, %p66
    %s69 = sadd.s32 %s68, 1
    %p72 = scmp.eq.s32.totalorder %s13, 1
    %p73 = scmp.ne.s32.totalorder %s68, %s70
    %p74 = scmp.eq.s32.totalorder %s13, 0
    %p75 = por %p73, %p74
    %p76 = scmp.ne.s32.totalorder %s68, %s70
    %p77 = scmp.eq.s32.totalorder %s18, 1
    %p78 = por %p76, %p77
    %p79 = scmp.ne.s32.totalorder %s70, %s71
    %p80 = scmp.eq.s32.totalorder %s18, 0
    %p81 = por %p79, %p80
    %p82 = scmp.ne.s32.totalorder %s70, %s71
    %p83 = scmp.eq.s32.totalorder %s19, 1
    %p84 = por %p82, %p83
    %p86 = scmp.ne.s32.totalorder %s71, %s85
    %p87 = scmp.eq.s32.totalorder %s19, 0
    %p88 = por %p86, %p87
    %s90 = sadd.s32 %s89, 1
    %p93 = scmp.eq.s32.totalorder %s13, 1
    %p94 = scmp.ne.s32.totalorder %s89, %s91
    %p95 = scmp.eq.s32.totalorder %s13, 0
    %p96 = por %p94, %p95
    %p97 = scmp.ne.s32.totalorder %s89, %s91
    %p98 = scmp.eq.s32.totalorder %s18, 1
    %p99 = por %p97, %p98
    %p100 = scmp.ne.s32.totalorder %s91, %s92
    %p101 = scmp.eq.s32.totalorder %s18, 0
    %p102 = por %p100, %p101
    %p103 = scmp.ne.s32.totalorder %s91, %s92
    %p104 = scmp.eq.s32.totalorder %s19, 1
    %p105 = por %p103, %p104
    %p107 = scmp.ne.s32.totalorder %s92, %s106
    %p108 = scmp.eq.s32.totalorder %s19, 0
    %p109 = por %p107, %p108
    %s111 = sadd.s32 %s110, 1
    %p114 = scmp.eq.s32.totalorder %s13, 1
    %p115 = scmp.ne.s32.totalorder %s110, %s112
    %p116 = scmp.eq.s32.totalorder %s13, 0
    %p117 = por %p115, %p116
    %p118 = scmp.ne.s32.totalorder %s110, %s112
    %p119 = scmp.eq.s32.totalorder %s18, 1
    %p120 = por %p118, %p119
    %p121 = scmp.ne.s32.totalorder %s112, %s113
    %p122 = scmp.eq.s32.totalorder %s18, 0
    %p123 = por %p121, %p122
    %p124 = scmp.ne.s32.totalorder %s112, %s113
    %p125 = scmp.eq.s32.totalorder %s19, 1
    %p126 = por %p124, %p125
    %p128 = scmp.ne.s32.totalorder %s113, %s127
    %p129 = scmp.eq.s32.totalorder %s19, 0
    %p130 = por %p128, %p129
    %s132 = sadd.s32 %s131, 1
    %p135 = scmp.eq.s32.totalorder %s13, 1
    %p136 = scmp.ne.s32.totalorder %s131, %s133
    %p137 = scmp.eq.s32.totalorder %s13, 0
    %p138 = por %p136, %p137
    %p139 = scmp.ne.s32.totalorder %s131, %s133
    %p140 = scmp.eq.s32.totalorder %s18, 1
    %p141 = por %p139, %p140
    %p142 = scmp.ne.s32.totalorder %s133, %s134
    %p143 = scmp.eq.s32.totalorder %s18, 0
    %p144 = por %p142, %p143
    %p145 = scmp.ne.s32.totalorder %s133, %s134
    %p146 = scmp.eq.s32.totalorder %s19, 1
    %p147 = por %p145, %p146
    %p149 = scmp.ne.s32.totalorder %s134, %s148
    %p150 = scmp.eq.s32.totalorder %s19, 0
    %p151 = por %p149, %p150
    %s153 = sadd.s32 %s152, 1
    %p156 = scmp.eq.s32.totalorder %s13, 1
    %p157 = scmp.ne.s32.totalorder %s152, %s154
    %p158 = scmp.eq.s32.totalorder %s13, 0
    %p159 = por %p157, %p158
    %p160 = scmp.ne.s32.totalorder %s152, %s154
    %p161 = scmp.eq.s32.totalorder %s18, 1
    %p162 = por %p160, %p161
    %p163 = scmp.ne.s32.totalorder %s154, %s155
    %p164 = scmp.eq.s32.totalorder %s18, 0
    %p165 = por %p163, %p164
    %p166 = scmp.ne.s32.totalorder %s154, %s155
    %p167 = scmp.eq.s32.totalorder %s19, 1
    %p168 = por %p166, %p167
    %p170 = scmp.ne.s32.totalorder %s155, %s169
    %p171 = scmp.eq.s32.totalorder %s19, 0
    %p172 = por %p170, %p171
    %s173 = ssub.s32 %s13, %s20
    %p174 = scmp.eq.s32.totalorder %s173, 0
    %s176 = sadd.s32 %s175, 1
    %s177 = scalar_select %p174, %s175, %s176
    %p180 = pneg %p174
    %p181 = scmp.eq.s32.totalorder %s13, 1
    %p182 = por %p180, %p181
    %p183 = scmp.ne.s32.totalorder %s175, %s178
    %p184 = scmp.eq.s32.totalorder %s13, 0
    %p185 = por %p183, %p184
    %p186 = scmp.ne.s32.totalorder %s175, %s178
    %p187 = scmp.eq.s32.totalorder %s18, 1
    %p188 = por %p186, %p187
    %p189 = scmp.ne.s32.totalorder %s178, %s179
    %p190 = scmp.eq.s32.totalorder %s18, 0
    %p191 = por %p189, %p190
    %p192 = scmp.ne.s32.totalorder %s178, %s179
    %p193 = scmp.eq.s32.totalorder %s19, 1
    %p194 = por %p192, %p193
    %p196 = scmp.ne.s32.totalorder %s179, %s195
    %p197 = scmp.eq.s32.totalorder %s19, 0
    %p198 = por %p196, %p197
    %p199 = scmp.le.s32.totalorder 1, %s13
    %p200 = scmp.lt.s32.totalorder %s13, 3
    %p201 = pnand %p199, %p200
    %p202 = pneg %p201
    // Predicated region
    $region9: #{tpu_custom_call.1} parent=5 // pred_check
      _
    $region10: #{tpu_custom_call.1} parent=5 // pred_check_branch
      %204 = sbr.rel (%p201) target = $region12
    $region11: #{tpu_custom_call.1} parent=5 // pred_region
      %s205 = ssub.s32 %s13, 1
      // Predicated region
      $region13: #{tpu_custom_call.1} parent=11 // pred_check
        %p206 = pneg %p60
      $region14: #{tpu_custom_call.1} parent=11 // pred_check_branch
        %208 = sbr.rel (%p206) target = $region16
      $region15: #{tpu_custom_call.1} parent=11 // pred_region
        _
      $region16: #{tpu_custom_call.1} parent=11 // pred_fallthru
        _
      // Predicated region
      $region17: #{tpu_custom_call.1} parent=11 // pred_check
        %p209 = pneg %p81
      $region18: #{tpu_custom_call.1} parent=11 // pred_check_branch
        %211 = sbr.rel (%p209) target = $region20
      $region19: #{tpu_custom_call.1} parent=11 // pred_region
        _
      $region20: #{tpu_custom_call.1} parent=11 // pred_fallthru
        _
      // Predicated region
      $region21: #{tpu_custom_call.1} parent=11 // pred_check
        %p212 = pneg %p102
      $region22: #{tpu_custom_call.1} parent=11 // pred_check_branch
        %214 = sbr.rel (%p212) target = $region24
      $region23: #{tpu_custom_call.1} parent=11 // pred_region
        _
      $region24: #{tpu_custom_call.1} parent=11 // pred_fallthru
        _
      // Predicated region
      $region25: #{tpu_custom_call.1} parent=11 // pred_check
        %p215 = pneg %p123
      $region26: #{tpu_custom_call.1} parent=11 // pred_check_branch
        %217 = sbr.rel (%p215) target = $region28
      $region27: #{tpu_custom_call.1} parent=11 // pred_region
        _
      $region28: #{tpu_custom_call.1} parent=11 // pred_fallthru
        _
      // Predicated region
      $region29: #{tpu_custom_call.1} parent=11 // pred_check
        %p218 = pneg %p144
      $region30: #{tpu_custom_call.1} parent=11 // pred_check_branch
        %220 = sbr.rel (%p218) target = $region32
      $region31: #{tpu_custom_call.1} parent=11 // pred_region
        _
      $region32: #{tpu_custom_call.1} parent=11 // pred_fallthru
        _
      // Predicated region
      $region33: #{tpu_custom_call.1} parent=11 // pred_check
        %p221 = pneg %p165
      $region34: #{tpu_custom_call.1} parent=11 // pred_check_branch
        %223 = sbr.rel (%p221) target = $region36
      $region35: #{tpu_custom_call.1} parent=11 // pred_region
        _
      $region36: #{tpu_custom_call.1} parent=11 // pred_fallthru
        _
    $region12: #{tpu_custom_call.1} parent=5 // pred_fallthru
      _
    %p224 = scmp.lt.s32.totalorder %s13, 2
    // Predicated region
    $region37: #{tpu_custom_call.1} parent=5 // pred_check
      %p225 = pneg %p224
    $region38: #{tpu_custom_call.1} parent=5 // pred_check_branch
      %227 = sbr.rel (%p225) target = $region40
    $region39: #{tpu_custom_call.1} parent=5 // pred_region
      // Predicated region
      $region41: #{tpu_custom_call.1} parent=39 // pred_check
        %p228 = pneg %p33
      $region42: #{tpu_custom_call.1} parent=39 // pred_check_branch
        %230 = sbr.rel (%p228) target = $region44
      $region43: #{tpu_custom_call.1} parent=39 // pred_region
        %p231 = scmp.lt.s32.totalorder %s13, 1
        %s232 = scalar_select %p231, %s13, 1
        %s233 = smul.addr %s232, 8
        %s234 = scalar_lea.vmem %s0, %s233
      $region44: #{tpu_custom_call.1} parent=39 // pred_fallthru
        _
    $region40: #{tpu_custom_call.1} parent=5 // pred_fallthru
      _
    %p235 = scmp.le.s32.totalorder 1, %s13
    %p236 = scmp.lt.s32.totalorder %s13, 3
    %p237 = pnand %p235, %p236
    %p238 = pneg %p237
    // Predicated region
    $region45: #{tpu_custom_call.1} parent=5 // pred_check
      _
    $region46: #{tpu_custom_call.1} parent=5 // pred_check_branch
      %240 = sbr.rel (%p237) target = $region48
    $region47: #{tpu_custom_call.1} parent=5 // pred_region
      %s241 = ssub.s32 %s13, 1
      %p242 = scmp.lt.s32.totalorder %s18, 1
      %s243 = scalar_select %p242, %s18, 1
      %s244 = smul.addr %s243, 8
      %s245 = scalar_lea.vmem %s0, %s244
      %p246 = pneg %p39
      %p247 = pneg %p36
      %p248 = pneg %p60
      %p249 = pneg %p57
      %p250 = pneg %p81
      %p251 = pneg %p78
      %p252 = pneg %p102
      %p253 = pneg %p99
      %p254 = pneg %p123
      %p255 = pneg %p120
      %p256 = pneg %p144
      %p257 = pneg %p141
      %p258 = pneg %p165
      %p259 = pneg %p162
      %p260 = pneg %p191
      %p261 = pneg %p188
      %s262 = smul.u32 8, %s18
      %p263 = scmp.lt.s32.totalorder %s262, 15
      %s264 = scalar_select %p263, %s262, 15
      %s265 = smul.addr %s264, 4
      %s266 = smul.addr %s265, 4
      %s267 = scalar_lea.vmem %s7, %s266
      %p268 = scmp.lt.s32.totalorder %s18, 1
      %s269 = scalar_select %p268, %s18, 1
      %s270 = smul.addr %s269, 8
      %s271 = scalar_lea.vmem %s0, %s270
      %s272 = smul.u32 8, %s18
      %p273 = scmp.lt.s32.totalorder %s272, 15
      %s274 = scalar_select %p273, %s272, 15
      %s275 = smul.addr %s274, 4
      %s276 = smul.addr %s275, 4
      %s277 = scalar_lea.vmem %s7, %s276
      %s278 = smul.u32 8, %s18
      %v280 = vld [vmem:[%s271] sm:$0xff]
      %v281 = vpack.c.bf16 %v280, %v280
      %v282 = vld [vmem:[%s1] sm:$0xf]
      %v283 = vld [vmem:[%s1 + $0x4] sm:$0xf]
      %v284 = vld [vmem:[%s2] sm:$0x1]
      %v286 = vlaneseq
      %v287 = vshrl.u32 %v286, 7
      %v288 = vsub.s32 0, %v287
      %v289 = vrot.slane %v284, %v288
      %v293 = vunpack.c.l.b16 %v282
      %v294 = vunpack.c.l.b16 %v283
      %v295 = vpack.c.b16 %v294, %v293
      %vm297 = vcmask 130048
      %v299 = vsel %vm297, %v281, 0
      %301 = vmatprep.subr.bf16.mxu0 0
      %302 = vmatpush1.bf16.msra.mxu0 0
      %303 = vmatprep.subr.bf16.mxu0 0
      %304 = vmatpush1.bf16.msra.mxu0 0
      %305 = vmatprep.subr.bf16.mxu0 0
      %306 = vmatpush1.bf16.msra.mxu0 0
      %307 = vmatprep.subr.bf16.mxu0 0
      %308 = vmatpush1.bf16.msra.mxu0 0
      %309 = vmatprep.subr.bf16.mxu0 0
      %310 = vmatpush1.bf16.msra.mxu0 0
      %311 = vmatprep.subr.bf16.mxu0 0
      %312 = vmatpush1.bf16.msra.mxu0 0
      %313 = vmatprep.subr.bf16.mxu0 0
      %314 = vmatpush1.bf16.msra.mxu0 0
      %315 = vmatprep.subr.bf16.mxu0 0
      %316 = vmatpush1.bf16.msra.mxu0 %v295
      %317 = vmatprep.subr.bf16.mxu0 0
      %318 = vmatpush2.bf16.msra.mxu0 0
      %319 = vmatprep.subr.bf16.mxu0 0
      %320 = vmatpush2.bf16.msra.mxu0 0
      %321 = vmatprep.subr.bf16.mxu0 0
      %322 = vmatpush2.bf16.msra.mxu0 0
      %323 = vmatprep.subr.bf16.mxu0 0
      %324 = vmatpush2.bf16.msra.mxu0 0
      %325 = vmatprep.subr.bf16.mxu0 0
      %326 = vmatpush2.bf16.msra.mxu0 0
      %327 = vmatprep.subr.bf16.mxu0 0
      %328 = vmatpush2.bf16.msra.mxu0 0
      %329 = vmatprep.subr.bf16.mxu0 0
      %330 = vmatpush2.bf16.msra.mxu0 0
      %331 = vmatprep.subr.bf16.mxu0 0
      %332 = vmatpush2.bf16.msra.mxu0 0
      %333 = vmatprep.mubr.bf16.mxu0 0
      %334 = vmatmul.mubr.bf16.gmra.mxu0 %v299
      %v335 = vpop.f32.mrf.mxu0
      %v336 = vadd.f32 %v289, %v335
      %v337 = vpop.f32.mrf.mxu0
      %v338 = vpop.f32.mrf.mxu0
      %v339 = vpop.f32.mrf.mxu0
      %340 = vdwg.mxu0
      %v341 = vmul.f32 %v336, 0.2
      %v342 = vmax.f32 %v336, %v341
      %v343 = vpack.c.bf16 %v342, %v342
      %v344 = vld [vmem:[%s3] sm:$0xf]
      %v345 = vld [vmem:[%s3 + $0x4] sm:$0xf]
      %v346 = vld [vmem:[%s3 + $0x8] sm:$0xf]
      %v347 = vld [vmem:[%s3 + $0xc] sm:$0xf]
      %v352 = vunpack.c.l.b16 %v344
      %v353 = vunpack.c.l.b16 %v345
      %v354 = vunpack.c.l.b16 %v346
      %v355 = vunpack.c.l.b16 %v347
      %v356 = vpack.c.b16 %v353, %v352
      %v357 = vpack.c.b16 %v355, %v354
      %vm360 = vcmask 261120
      %v362 = vsel %vm360, %v343, 0
      %364 = vmatprep.subr.bf16.mxu0 0
      %365 = vmatpush1.bf16.msra.mxu0 0
      %366 = vmatprep.subr.bf16.mxu0 0
      %367 = vmatpush1.bf16.msra.mxu0 0
      %368 = vmatprep.subr.bf16.mxu0 0
      %369 = vmatpush1.bf16.msra.mxu0 0
      %370 = vmatprep.subr.bf16.mxu0 0
      %371 = vmatpush1.bf16.msra.mxu0 0
      %372 = vmatprep.subr.bf16.mxu0 0
      %373 = vmatpush1.bf16.msra.mxu0 0
      %374 = vmatprep.subr.bf16.mxu0 0
      %375 = vmatpush1.bf16.msra.mxu0 0
      %376 = vmatprep.subr.bf16.mxu0 0
      %377 = vmatpush1.bf16.msra.mxu0 %v357
      %378 = vmatprep.subr.bf16.mxu0 0
      %379 = vmatpush1.bf16.msra.mxu0 %v356
      %380 = vmatprep.subr.bf16.mxu0 0
      %381 = vmatpush2.bf16.msra.mxu0 0
      %382 = vmatprep.subr.bf16.mxu0 0
      %383 = vmatpush2.bf16.msra.mxu0 0
      %384 = vmatprep.subr.bf16.mxu0 0
      %385 = vmatpush2.bf16.msra.mxu0 0
      %386 = vmatprep.subr.bf16.mxu0 0
      %387 = vmatpush2.bf16.msra.mxu0 0
      %388 = vmatprep.subr.bf16.mxu0 0
      %389 = vmatpush2.bf16.msra.mxu0 0
      %390 = vmatprep.subr.bf16.mxu0 0
      %391 = vmatpush2.bf16.msra.mxu0 0
      %392 = vmatprep.subr.bf16.mxu0 0
      %393 = vmatpush2.bf16.msra.mxu0 0
      %394 = vmatprep.subr.bf16.mxu0 0
      %395 = vmatpush2.bf16.msra.mxu0 0
      %396 = vmatprep.mubr.bf16.mxu0 0
      %397 = vmatmul.mubr.bf16.gmra.mxu0 %v362
      %v398 = vpop.f32.mrf.mxu0
      %v399 = vadd.f32 0.0, %v398
      %v400 = vpop.f32.mrf.mxu0
      %v401 = vpop.f32.mrf.mxu0
      %v402 = vpop.f32.mrf.mxu0
      %403 = vdwg.mxu0
      %v404 = vld [vmem:[%s4] sm:$0x1]
      %v406 = vlaneseq
      %v407 = vshrl.u32 %v406, 7
      %v408 = vsub.s32 0, %v407
      %v409 = vrot.slane %v404, %v408
      %v411 = vadd.f32 %v399, %v409
      %v412 = vmul.f32 %v411, 0.2
      %v413 = vmax.f32 %v411, %v412
      %v414 = vpack.c.bf16 %v413, %v413
      %415 = vrot.lane.b32.xlu0 %v409, 16
      %v416 = vpop.permute.xlu0 %415
      %v418 = vadd.f32 %v399, %v416
      %v419 = vmul.f32 %v418, 0.2
      %v420 = vmax.f32 %v418, %v419
      %v421 = vpack.c.bf16 %v420, %v420
      %422 = vrot.lane.b32.xlu0 %v409, 32
      %v423 = vpop.permute.xlu0 %422
      %v425 = vadd.f32 %v399, %v423
      %v426 = vmul.f32 %v425, 0.2
      %v427 = vmax.f32 %v425, %v426
      %v428 = vpack.c.bf16 %v427, %v427
      %429 = vrot.lane.b32.xlu0 %v409, 48
      %v430 = vpop.permute.xlu0 %429
      %v432 = vadd.f32 %v399, %v430
      %v433 = vmul.f32 %v432, 0.2
      %v434 = vmax.f32 %v432, %v433
      %v435 = vpack.c.bf16 %v434, %v434
      %s436 = scalar_lea.vmem %s5, 40
      %v437 = vld [vmem:[%s436] sm:$0xf]
      %v438 = vld [vmem:[%s436 + $0x4] sm:$0xf]
      %v439 = vld [vmem:[%s6] sm:$0x1]
      %v441 = vlaneseq
      %v442 = vshrl.u32 %v441, 7
      %v443 = vsub.s32 0, %v442
      %v444 = vrot.slane %v439, %v443
      %v448 = vunpack.c.l.b16 %v437
      %v449 = vunpack.c.l.b16 %v438
      %v450 = vpack.c.b16 %v449, %v448
      %v453 = vsel %vm297, %v414, 0
      %455 = vmatprep.subr.bf16.mxu0 0
      %456 = vmatpush1.bf16.msra.mxu0 0
      %457 = vmatprep.subr.bf16.mxu0 0
      %458 = vmatpush1.bf16.msra.mxu0 0
      %459 = vmatprep.subr.bf16.mxu0 0
      %460 = vmatpush1.bf16.msra.mxu0 0
      %461 = vmatprep.subr.bf16.mxu0 0
      %462 = vmatpush1.bf16.msra.mxu0 0
      %463 = vmatprep.subr.bf16.mxu0 0
      %464 = vmatpush1.bf16.msra.mxu0 0
      %465 = vmatprep.subr.bf16.mxu0 0
      %466 = vmatpush1.bf16.msra.mxu0 0
      %467 = vmatprep.subr.bf16.mxu0 0
      %468 = vmatpush1.bf16.msra.mxu0 0
      %469 = vmatprep.subr.bf16.mxu0 0
      %470 = vmatpush1.bf16.msra.mxu0 %v450
      %471 = vmatprep.subr.bf16.mxu0 0
      %472 = vmatpush2.bf16.msra.mxu0 0
      %473 = vmatprep.subr.bf16.mxu0 0
      %474 = vmatpush2.bf16.msra.mxu0 0
      %475 = vmatprep.subr.bf16.mxu0 0
      %476 = vmatpush2.bf16.msra.mxu0 0
      %477 = vmatprep.subr.bf16.mxu0 0
      %478 = vmatpush2.bf16.msra.mxu0 0
      %479 = vmatprep.subr.bf16.mxu0 0
      %480 = vmatpush2.bf16.msra.mxu0 0
      %481 = vmatprep.subr.bf16.mxu0 0
      %482 = vmatpush2.bf16.msra.mxu0 0
      %483 = vmatprep.subr.bf16.mxu0 0
      %484 = vmatpush2.bf16.msra.mxu0 0
      %485 = vmatprep.subr.bf16.mxu0 0
      %486 = vmatpush2.bf16.msra.mxu0 0
      %487 = vmatprep.mubr.bf16.mxu0 0
      %488 = vmatmul.mubr.bf16.gmra.mxu0 %v453
      %v489 = vpop.f32.mrf.mxu0
      %v490 = vadd.f32 %v444, %v489
      %v491 = vpop.f32.mrf.mxu0
      %v492 = vpop.f32.mrf.mxu0
      %v493 = vpop.f32.mrf.mxu0
      %494 = vdwg.mxu0
      %v496 = vcombine.high %v490, %v490
      %v498 = vunpack.c.l.s4 1966171168
      %v499 = vunpack.c.0.s8 %v498
      %v500 = vlaneseq
      %v501 = vshrl.u32 %v500, 7
      %v502 = vsub.s32 %v499, %v501
      %v503 = vrot.slane %v490, %v502
      %v505 = vunpack.c.l.s4 1966171168
      %v506 = vunpack.c.0.s8 %v505
      %v507 = vlaneseq
      %v508 = vshrl.u32 %v507, 7
      %v509 = vsub.s32 %v506, %v508
      %v510 = vrot.slane %v496, %v509
      %v511 = vcombine.high %v503, %v503
      %v512 = vcombine.high %v510, %v510
      %v514 = vunpack.c.l.s4 1966171168
      %v515 = vunpack.c.0.s8 %v514
      %v516 = vlaneseq
      %v517 = vshrl.u32 %v516, 7
      %v518 = vsub.s32 %v515, %v517
      %v519 = vrot.slane %v503, %v518
      %v521 = vunpack.c.l.s4 1966171168
      %v522 = vunpack.c.0.s8 %v521
      %v523 = vlaneseq
      %v524 = vshrl.u32 %v523, 7
      %v525 = vsub.s32 %v522, %v524
      %v526 = vrot.slane %v510, %v525
      %v528 = vunpack.c.l.s4 1966171168
      %v529 = vunpack.c.0.s8 %v528
      %v530 = vlaneseq
      %v531 = vshrl.u32 %v530, 7
      %v532 = vsub.s32 %v529, %v531
      %v533 = vrot.slane %v511, %v532
      %v535 = vunpack.c.l.s4 1966171168
      %v536 = vunpack.c.0.s8 %v535
      %v537 = vlaneseq
      %v538 = vshrl.u32 %v537, 7
      %v539 = vsub.s32 %v536, %v538
      %v540 = vrot.slane %v512, %v539
      %v541 = vcombine.high %v519, %v519
      %v542 = vcombine.high %v526, %v526
      %v543 = vcombine.high %v533, %v533
      %v544 = vcombine.high %v540, %v540
      %vm553 = vcmask 65536
      %554 = vst.msk [vmem:[%s277] sm:$0x1] %vm553, %v519
      %555 = vst.msk [vmem:[%s277 + $0x10] sm:$0x1] %vm553, %v533
      %556 = vst.msk [vmem:[%s277 + $0x20] sm:$0x1] %vm553, %v541
      %557 = vst.msk [vmem:[%s277 + $0x30] sm:$0x1] %vm553, %v543
      %558 = vst.msk [vmem:[%s277 + $0x40] sm:$0x1] %vm553, %v526
      %559 = vst.msk [vmem:[%s277 + $0x50] sm:$0x1] %vm553, %v540
      %560 = vst.msk [vmem:[%s277 + $0x60] sm:$0x1] %vm553, %v542
      %561 = vst.msk [vmem:[%s277 + $0x70] sm:$0x1] %vm553, %v544
      %s562 = scalar_lea.vmem %s5, 48
      %v563 = vld [vmem:[%s562] sm:$0xf]
      %v564 = vld [vmem:[%s562 + $0x4] sm:$0xf]
      %s565 = scalar_lea.vmem %s5, 32
      %v566 = vld [vmem:[%s565] sm:$0xf]
      %v567 = vld [vmem:[%s565 + $0x4] sm:$0xf]
      %569 = vrot.lane.b32.xlu0 %v421, 112
      %v570 = vpop.permute.xlu0 %569
      %v573 = vunpack.c.l.b16 %v566
      %v574 = vunpack.c.l.b16 %v567
      %v575 = vpack.c.b16 %v574, %v573
      %v578 = vsel %vm297, %v570, 0
      %580 = vmatprep.subr.bf16.mxu0 0
      %581 = vmatpush1.bf16.msra.mxu0 0
      %582 = vmatprep.subr.bf16.mxu0 0
      %583 = vmatpush1.bf16.msra.mxu0 0
      %584 = vmatprep.subr.bf16.mxu0 0
      %585 = vmatpush1.bf16.msra.mxu0 0
      %586 = vmatprep.subr.bf16.mxu0 0
      %587 = vmatpush1.bf16.msra.mxu0 0
      %588 = vmatprep.subr.bf16.mxu0 0
      %589 = vmatpush1.bf16.msra.mxu0 0
      %590 = vmatprep.subr.bf16.mxu0 0
      %591 = vmatpush1.bf16.msra.mxu0 0
      %592 = vmatprep.subr.bf16.mxu0 0
      %593 = vmatpush1.bf16.msra.mxu0 0
      %594 = vmatprep.subr.bf16.mxu0 0
      %595 = vmatpush1.bf16.msra.mxu0 %v575
      %596 = vmatprep.subr.bf16.mxu0 0
      %597 = vmatpush2.bf16.msra.mxu0 0
      %598 = vmatprep.subr.bf16.mxu0 0
      %599 = vmatpush2.bf16.msra.mxu0 0
      %600 = vmatprep.subr.bf16.mxu0 0
      %601 = vmatpush2.bf16.msra.mxu0 0
      %602 = vmatprep.subr.bf16.mxu0 0
      %603 = vmatpush2.bf16.msra.mxu0 0
      %604 = vmatprep.subr.bf16.mxu0 0
      %605 = vmatpush2.bf16.msra.mxu0 0
      %606 = vmatprep.subr.bf16.mxu0 0
      %607 = vmatpush2.bf16.msra.mxu0 0
      %608 = vmatprep.subr.bf16.mxu0 0
      %609 = vmatpush2.bf16.msra.mxu0 0
      %610 = vmatprep.subr.bf16.mxu0 0
      %611 = vmatpush2.bf16.msra.mxu0 0
      %612 = vmatprep.mubr.bf16.mxu0 0
      %613 = vmatmul.mubr.bf16.gmra.mxu0 %v578
      %v614 = vpop.f32.mrf.mxu0
      %v615 = vadd.f32 0.0, %v614
      %v616 = vpop.f32.mrf.mxu0
      %v617 = vpop.f32.mrf.mxu0
      %v618 = vpop.f32.mrf.mxu0
      %619 = vdwg.mxu0
      %v622 = vunpack.c.l.b16 %v563
      %v623 = vunpack.c.l.b16 %v564
      %v624 = vpack.c.b16 %v623, %v622
      %626 = vmatprep.subr.bf16.mxu0 0
      %627 = vmatpush1.bf16.msra.mxu0 0
      %628 = vmatprep.subr.bf16.mxu0 0
      %629 = vmatpush1.bf16.msra.mxu0 0
      %630 = vmatprep.subr.bf16.mxu0 0
      %631 = vmatpush1.bf16.msra.mxu0 0
      %632 = vmatprep.subr.bf16.mxu0 0
      %633 = vmatpush1.bf16.msra.mxu0 0
      %634 = vmatprep.subr.bf16.mxu0 0
      %635 = vmatpush1.bf16.msra.mxu0 0
      %636 = vmatprep.subr.bf16.mxu0 0
      %637 = vmatpush1.bf16.msra.mxu0 0
      %638 = vmatprep.subr.bf16.mxu0 0
      %639 = vmatpush1.bf16.msra.mxu0 0
      %640 = vmatprep.subr.bf16.mxu0 0
      %641 = vmatpush1.bf16.msra.mxu0 %v624
      %642 = vmatprep.subr.bf16.mxu0 0
      %643 = vmatpush2.bf16.msra.mxu0 0
      %644 = vmatprep.subr.bf16.mxu0 0
      %645 = vmatpush2.bf16.msra.mxu0 0
      %646 = vmatprep.subr.bf16.mxu0 0
      %647 = vmatpush2.bf16.msra.mxu0 0
      %648 = vmatprep.subr.bf16.mxu0 0
      %649 = vmatpush2.bf16.msra.mxu0 0
      %650 = vmatprep.subr.bf16.mxu0 0
      %651 = vmatpush2.bf16.msra.mxu0 0
      %652 = vmatprep.subr.bf16.mxu0 0
      %653 = vmatpush2.bf16.msra.mxu0 0
      %654 = vmatprep.subr.bf16.mxu0 0
      %655 = vmatpush2.bf16.msra.mxu0 0
      %656 = vmatprep.subr.bf16.mxu0 0
      %657 = vmatpush2.bf16.msra.mxu0 0
      %658 = vmatprep.mubr.bf16.mxu0 0
      %659 = vmatmul.mubr.bf16.gmra.mxu0 %v453
      %v660 = vpop.f32.mrf.mxu0
      %v661 = vadd.f32 %v615, %v660
      %v662 = vpop.f32.mrf.mxu0
      %v663 = vpop.f32.mrf.mxu0
      %v664 = vpop.f32.mrf.mxu0
      %665 = vdwg.mxu0
      %v666 = vld [vmem:[%s6] sm:$0x1]
      %v668 = vlaneseq
      %v669 = vshrl.u32 %v668, 7
      %v670 = vsub.s32 0, %v669
      %v671 = vrot.slane %v666, %v670
      %v673 = vadd.f32 %v661, %v671
      %v675 = vcombine.high %v673, %v673
      %v677 = vunpack.c.l.s4 1966171168
      %v678 = vunpack.c.0.s8 %v677
      %v679 = vlaneseq
      %v680 = vshrl.u32 %v679, 7
      %v681 = vsub.s32 %v678, %v680
      %v682 = vrot.slane %v673, %v681
      %v684 = vunpack.c.l.s4 1966171168
      %v685 = vunpack.c.0.s8 %v684
      %v686 = vlaneseq
      %v687 = vshrl.u32 %v686, 7
      %v688 = vsub.s32 %v685, %v687
      %v689 = vrot.slane %v675, %v688
      %v690 = vcombine.high %v682, %v682
      %v691 = vcombine.high %v689, %v689
      %v693 = vunpack.c.l.s4 1966171168
      %v694 = vunpack.c.0.s8 %v693
      %v695 = vlaneseq
      %v696 = vshrl.u32 %v695, 7
      %v697 = vsub.s32 %v694, %v696
      %v698 = vrot.slane %v682, %v697
      %v700 = vunpack.c.l.s4 1966171168
      %v701 = vunpack.c.0.s8 %v700
      %v702 = vlaneseq
      %v703 = vshrl.u32 %v702, 7
      %v704 = vsub.s32 %v701, %v703
      %v705 = vrot.slane %v689, %v704
      %v707 = vunpack.c.l.s4 1966171168
      %v708 = vunpack.c.0.s8 %v707
      %v709 = vlaneseq
      %v710 = vshrl.u32 %v709, 7
      %v711 = vsub.s32 %v708, %v710
      %v712 = vrot.slane %v690, %v711
      %v714 = vunpack.c.l.s4 1966171168
      %v715 = vunpack.c.0.s8 %v714
      %v716 = vlaneseq
      %v717 = vshrl.u32 %v716, 7
      %v718 = vsub.s32 %v715, %v717
      %v719 = vrot.slane %v691, %v718
      %v720 = vcombine.high %v698, %v698
      %v721 = vcombine.high %v705, %v705
      %v722 = vcombine.high %v712, %v712
      %v723 = vcombine.high %v719, %v719
      %732 = vst.msk [vmem:[%s277 + $0x1] sm:$0x1] %vm553, %v698
      %733 = vst.msk [vmem:[%s277 + $0x11] sm:$0x1] %vm553, %v712
      %734 = vst.msk [vmem:[%s277 + $0x21] sm:$0x1] %vm553, %v720
      %735 = vst.msk [vmem:[%s277 + $0x31] sm:$0x1] %vm553, %v722
      %736 = vst.msk [vmem:[%s277 + $0x41] sm:$0x1] %vm553, %v705
      %737 = vst.msk [vmem:[%s277 + $0x51] sm:$0x1] %vm553, %v719
      %738 = vst.msk [vmem:[%s277 + $0x61] sm:$0x1] %vm553, %v721
      %739 = vst.msk [vmem:[%s277 + $0x71] sm:$0x1] %vm553, %v723
      %s740 = scalar_lea.vmem %s5, 56
      %v741 = vld [vmem:[%s740] sm:$0xf]
      %v742 = vld [vmem:[%s740 + $0x4] sm:$0xf]
      %v743 = vld [vmem:[%s436] sm:$0xf]
      %v744 = vld [vmem:[%s436 + $0x4] sm:$0xf]
      %v747 = vunpack.c.l.b16 %v743
      %v748 = vunpack.c.l.b16 %v744
      %v749 = vpack.c.b16 %v748, %v747
      %751 = vmatprep.subr.bf16.mxu0 0
      %752 = vmatpush1.bf16.msra.mxu0 0
      %753 = vmatprep.subr.bf16.mxu0 0
      %754 = vmatpush1.bf16.msra.mxu0 0
      %755 = vmatprep.subr.bf16.mxu0 0
      %756 = vmatpush1.bf16.msra.mxu0 0
      %757 = vmatprep.subr.bf16.mxu0 0
      %758 = vmatpush1.bf16.msra.mxu0 0
      %759 = vmatprep.subr.bf16.mxu0 0
      %760 = vmatpush1.bf16.msra.mxu0 0
      %761 = vmatprep.subr.bf16.mxu0 0
      %762 = vmatpush1.bf16.msra.mxu0 0
      %763 = vmatprep.subr.bf16.mxu0 0
      %764 = vmatpush1.bf16.msra.mxu0 0
      %765 = vmatprep.subr.bf16.mxu0 0
      %766 = vmatpush1.bf16.msra.mxu0 %v749
      %767 = vmatprep.subr.bf16.mxu0 0
      %768 = vmatpush2.bf16.msra.mxu0 0
      %769 = vmatprep.subr.bf16.mxu0 0
      %770 = vmatpush2.bf16.msra.mxu0 0
      %771 = vmatprep.subr.bf16.mxu0 0
      %772 = vmatpush2.bf16.msra.mxu0 0
      %773 = vmatprep.subr.bf16.mxu0 0
      %774 = vmatpush2.bf16.msra.mxu0 0
      %775 = vmatprep.subr.bf16.mxu0 0
      %776 = vmatpush2.bf16.msra.mxu0 0
      %777 = vmatprep.subr.bf16.mxu0 0
      %778 = vmatpush2.bf16.msra.mxu0 0
      %779 = vmatprep.subr.bf16.mxu0 0
      %780 = vmatpush2.bf16.msra.mxu0 0
      %781 = vmatprep.subr.bf16.mxu0 0
      %782 = vmatpush2.bf16.msra.mxu0 0
      %783 = vmatprep.mubr.bf16.mxu0 0
      %784 = vmatmul.mubr.bf16.gmra.mxu0 %v578
      %v785 = vpop.f32.mrf.mxu0
      %v786 = vadd.f32 0.0, %v785
      %v787 = vpop.f32.mrf.mxu0
      %v788 = vpop.f32.mrf.mxu0
      %v789 = vpop.f32.mrf.mxu0
      %790 = vdwg.mxu0
      %v793 = vunpack.c.l.b16 %v741
      %v794 = vunpack.c.l.b16 %v742
      %v795 = vpack.c.b16 %v794, %v793
      %797 = vmatprep.subr.bf16.mxu0 0
      %798 = vmatpush1.bf16.msra.mxu0 0
      %799 = vmatprep.subr.bf16.mxu0 0
      %800 = vmatpush1.bf16.msra.mxu0 0
      %801 = vmatprep.subr.bf16.mxu0 0
      %802 = vmatpush1.bf16.msra.mxu0 0
      %803 = vmatprep.subr.bf16.mxu0 0
      %804 = vmatpush1.bf16.msra.mxu0 0
      %805 = vmatprep.subr.bf16.mxu0 0
      %806 = vmatpush1.bf16.msra.mxu0 0
      %807 = vmatprep.subr.bf16.mxu0 0
      %808 = vmatpush1.bf16.msra.mxu0 0
      %809 = vmatprep.subr.bf16.mxu0 0
      %810 = vmatpush1.bf16.msra.mxu0 0
      %811 = vmatprep.subr.bf16.mxu0 0
      %812 = vmatpush1.bf16.msra.mxu0 %v795
      %813 = vmatprep.subr.bf16.mxu0 0
      %814 = vmatpush2.bf16.msra.mxu0 0
      %815 = vmatprep.subr.bf16.mxu0 0
      %816 = vmatpush2.bf16.msra.mxu0 0
      %817 = vmatprep.subr.bf16.mxu0 0
      %818 = vmatpush2.bf16.msra.mxu0 0
      %819 = vmatprep.subr.bf16.mxu0 0
      %820 = vmatpush2.bf16.msra.mxu0 0
      %821 = vmatprep.subr.bf16.mxu0 0
      %822 = vmatpush2.bf16.msra.mxu0 0
      %823 = vmatprep.subr.bf16.mxu0 0
      %824 = vmatpush2.bf16.msra.mxu0 0
      %825 = vmatprep.subr.bf16.mxu0 0
      %826 = vmatpush2.bf16.msra.mxu0 0
      %827 = vmatprep.subr.bf16.mxu0 0
      %828 = vmatpush2.bf16.msra.mxu0 0
      %829 = vmatprep.mubr.bf16.mxu0 0
      %830 = vmatmul.mubr.bf16.gmra.mxu0 %v453
      %v831 = vpop.f32.mrf.mxu0
      %v832 = vadd.f32 %v786, %v831
      %v833 = vpop.f32.mrf.mxu0
      %v834 = vpop.f32.mrf.mxu0
      %v835 = vpop.f32.mrf.mxu0
      %836 = vdwg.mxu0
      %v837 = vld [vmem:[%s6] sm:$0x1]
      %v839 = vlaneseq
      %v840 = vshrl.u32 %v839, 7
      %v841 = vsub.s32 0, %v840
      %v842 = vrot.slane %v837, %v841
      %v844 = vadd.f32 %v832, %v842
      %v846 = vcombine.high %v844, %v844
      %v848 = vunpack.c.l.s4 1966171168
      %v849 = vunpack.c.0.s8 %v848
      %v850 = vlaneseq
      %v851 = vshrl.u32 %v850, 7
      %v852 = vsub.s32 %v849, %v851
      %v853 = vrot.slane %v844, %v852
      %v855 = vunpack.c.l.s4 1966171168
      %v856 = vunpack.c.0.s8 %v855
      %v857 = vlaneseq
      %v858 = vshrl.u32 %v857, 7
      %v859 = vsub.s32 %v856, %v858
      %v860 = vrot.slane %v846, %v859
      %v861 = vcombine.high %v853, %v853
      %v862 = vcombine.high %v860, %v860
      %v864 = vunpack.c.l.s4 1966171168
      %v865 = vunpack.c.0.s8 %v864
      %v866 = vlaneseq
      %v867 = vshrl.u32 %v866, 7
      %v868 = vsub.s32 %v865, %v867
      %v869 = vrot.slane %v853, %v868
      %v871 = vunpack.c.l.s4 1966171168
      %v872 = vunpack.c.0.s8 %v871
      %v873 = vlaneseq
      %v874 = vshrl.u32 %v873, 7
      %v875 = vsub.s32 %v872, %v874
      %v876 = vrot.slane %v860, %v875
      %v878 = vunpack.c.l.s4 1966171168
      %v879 = vunpack.c.0.s8 %v878
      %v880 = vlaneseq
      %v881 = vshrl.u32 %v880, 7
      %v882 = vsub.s32 %v879, %v881
      %v883 = vrot.slane %v861, %v882
      %v885 = vunpack.c.l.s4 1966171168
      %v886 = vunpack.c.0.s8 %v885
      %v887 = vlaneseq
      %v888 = vshrl.u32 %v887, 7
      %v889 = vsub.s32 %v886, %v888
      %v890 = vrot.slane %v862, %v889
      %v891 = vcombine.high %v869, %v869
      %v892 = vcombine.high %v876, %v876
      %v893 = vcombine.high %v883, %v883
      %v894 = vcombine.high %v890, %v890
      %903 = vst.msk [vmem:[%s277 + $0x2] sm:$0x1] %vm553, %v869
      %904 = vst.msk [vmem:[%s277 + $0x12] sm:$0x1] %vm553, %v883
      %905 = vst.msk [vmem:[%s277 + $0x22] sm:$0x1] %vm553, %v891
      %906 = vst.msk [vmem:[%s277 + $0x32] sm:$0x1] %vm553, %v893
      %907 = vst.msk [vmem:[%s277 + $0x42] sm:$0x1] %vm553, %v876
      %908 = vst.msk [vmem:[%s277 + $0x52] sm:$0x1] %vm553, %v890
      %909 = vst.msk [vmem:[%s277 + $0x62] sm:$0x1] %vm553, %v892
      %910 = vst.msk [vmem:[%s277 + $0x72] sm:$0x1] %vm553, %v894
      %v911 = vld [vmem:[%s562] sm:$0xf]
      %v912 = vld [vmem:[%s562 + $0x4] sm:$0xf]
      %v913 = vld [vmem:[%s6] sm:$0x1]
      %v915 = vlaneseq
      %v916 = vshrl.u32 %v915, 7
      %v917 = vsub.s32 0, %v916
      %v918 = vrot.slane %v913, %v917
      %v922 = vunpack.c.l.b16 %v911
      %v923 = vunpack.c.l.b16 %v912
      %v924 = vpack.c.b16 %v923, %v922
      %926 = vmatprep.subr.bf16.mxu0 0
      %927 = vmatpush1.bf16.msra.mxu0 0
      %928 = vmatprep.subr.bf16.mxu0 0
      %929 = vmatpush1.bf16.msra.mxu0 0
      %930 = vmatprep.subr.bf16.mxu0 0
      %931 = vmatpush1.bf16.msra.mxu0 0
      %932 = vmatprep.subr.bf16.mxu0 0
      %933 = vmatpush1.bf16.msra.mxu0 0
      %934 = vmatprep.subr.bf16.mxu0 0
      %935 = vmatpush1.bf16.msra.mxu0 0
      %936 = vmatprep.subr.bf16.mxu0 0
      %937 = vmatpush1.bf16.msra.mxu0 0
      %938 = vmatprep.subr.bf16.mxu0 0
      %939 = vmatpush1.bf16.msra.mxu0 0
      %940 = vmatprep.subr.bf16.mxu0 0
      %941 = vmatpush1.bf16.msra.mxu0 %v924
      %942 = vmatprep.subr.bf16.mxu0 0
      %943 = vmatpush2.bf16.msra.mxu0 0
      %944 = vmatprep.subr.bf16.mxu0 0
      %945 = vmatpush2.bf16.msra.mxu0 0
      %946 = vmatprep.subr.bf16.mxu0 0
      %947 = vmatpush2.bf16.msra.mxu0 0
      %948 = vmatprep.subr.bf16.mxu0 0
      %949 = vmatpush2.bf16.msra.mxu0 0
      %950 = vmatprep.subr.bf16.mxu0 0
      %951 = vmatpush2.bf16.msra.mxu0 0
      %952 = vmatprep.subr.bf16.mxu0 0
      %953 = vmatpush2.bf16.msra.mxu0 0
      %954 = vmatprep.subr.bf16.mxu0 0
      %955 = vmatpush2.bf16.msra.mxu0 0
      %956 = vmatprep.subr.bf16.mxu0 0
      %957 = vmatpush2.bf16.msra.mxu0 0
      %958 = vmatprep.mubr.bf16.mxu0 0
      %959 = vmatmul.mubr.bf16.gmra.mxu0 %v578
      %v960 = vpop.f32.mrf.mxu0
      %v961 = vadd.f32 %v918, %v960
      %v962 = vpop.f32.mrf.mxu0
      %v963 = vpop.f32.mrf.mxu0
      %v964 = vpop.f32.mrf.mxu0
      %965 = vdwg.mxu0
      %v967 = vcombine.high %v961, %v961
      %v969 = vunpack.c.l.s4 1966171168
      %v970 = vunpack.c.0.s8 %v969
      %v971 = vlaneseq
      %v972 = vshrl.u32 %v971, 7
      %v973 = vsub.s32 %v970, %v972
      %v974 = vrot.slane %v961, %v973
      %v976 = vunpack.c.l.s4 1966171168
      %v977 = vunpack.c.0.s8 %v976
      %v978 = vlaneseq
      %v979 = vshrl.u32 %v978, 7
      %v980 = vsub.s32 %v977, %v979
      %v981 = vrot.slane %v967, %v980
      %v982 = vcombine.high %v974, %v974
      %v983 = vcombine.high %v981, %v981
      %v985 = vunpack.c.l.s4 1966171168
      %v986 = vunpack.c.0.s8 %v985
      %v987 = vlaneseq
      %v988 = vshrl.u32 %v987, 7
      %v989 = vsub.s32 %v986, %v988
      %v990 = vrot.slane %v974, %v989
      %v992 = vunpack.c.l.s4 1966171168
      %v993 = vunpack.c.0.s8 %v992
      %v994 = vlaneseq
      %v995 = vshrl.u32 %v994, 7
      %v996 = vsub.s32 %v993, %v995
      %v997 = vrot.slane %v981, %v996
      %v999 = vunpack.c.l.s4 1966171168
      %v1000 = vunpack.c.0.s8 %v999
      %v1001 = vlaneseq
      %v1002 = vshrl.u32 %v1001, 7
      %v1003 = vsub.s32 %v1000, %v1002
      %v1004 = vrot.slane %v982, %v1003
      %v1006 = vunpack.c.l.s4 1966171168
      %v1007 = vunpack.c.0.s8 %v1006
      %v1008 = vlaneseq
      %v1009 = vshrl.u32 %v1008, 7
      %v1010 = vsub.s32 %v1007, %v1009
      %v1011 = vrot.slane %v983, %v1010
      %v1012 = vcombine.high %v990, %v990
      %v1013 = vcombine.high %v997, %v997
      %v1014 = vcombine.high %v1004, %v1004
      %v1015 = vcombine.high %v1011, %v1011
      %1024 = vst.msk [vmem:[%s277 + $0x3] sm:$0x1] %vm553, %v990
      %1025 = vst.msk [vmem:[%s277 + $0x13] sm:$0x1] %vm553, %v1004
      %1026 = vst.msk [vmem:[%s277 + $0x23] sm:$0x1] %vm553, %v1012
      %1027 = vst.msk [vmem:[%s277 + $0x33] sm:$0x1] %vm553, %v1014
      %1028 = vst.msk [vmem:[%s277 + $0x43] sm:$0x1] %vm553, %v997
      %1029 = vst.msk [vmem:[%s277 + $0x53] sm:$0x1] %vm553, %v1011
      %1030 = vst.msk [vmem:[%s277 + $0x63] sm:$0x1] %vm553, %v1013
      %1031 = vst.msk [vmem:[%s277 + $0x73] sm:$0x1] %vm553, %v1015
      %s1032 = scalar_lea.vmem %s5, 72
      %v1033 = vld [vmem:[%s1032] sm:$0xf]
      %v1034 = vld [vmem:[%s1032 + $0x4] sm:$0xf]
      %s1035 = scalar_lea.vmem %s5, 8
      %v1036 = vld [vmem:[%s1035] sm:$0xf]
      %v1037 = vld [vmem:[%s1035 + $0x4] sm:$0xf]
      %1039 = vrot.lane.b32.xlu0 %v428, 96
      %v1040 = vpop.permute.xlu0 %1039
      %v1043 = vunpack.c.l.b16 %v1036
      %v1044 = vunpack.c.l.b16 %v1037
      %v1045 = vpack.c.b16 %v1044, %v1043
      %v1048 = vsel %vm297, %v1040, 0
      %1050 = vmatprep.subr.bf16.mxu0 0
      %1051 = vmatpush1.bf16.msra.mxu0 0
      %1052 = vmatprep.subr.bf16.mxu0 0
      %1053 = vmatpush1.bf16.msra.mxu0 0
      %1054 = vmatprep.subr.bf16.mxu0 0
      %1055 = vmatpush1.bf16.msra.mxu0 0
      %1056 = vmatprep.subr.bf16.mxu0 0
      %1057 = vmatpush1.bf16.msra.mxu0 0
      %1058 = vmatprep.subr.bf16.mxu0 0
      %1059 = vmatpush1.bf16.msra.mxu0 0
      %1060 = vmatprep.subr.bf16.mxu0 0
      %1061 = vmatpush1.bf16.msra.mxu0 0
      %1062 = vmatprep.subr.bf16.mxu0 0
      %1063 = vmatpush1.bf16.msra.mxu0 0
      %1064 = vmatprep.subr.bf16.mxu0 0
      %1065 = vmatpush1.bf16.msra.mxu0 %v1045
      %1066 = vmatprep.subr.bf16.mxu0 0
      %1067 = vmatpush2.bf16.msra.mxu0 0
      %1068 = vmatprep.subr.bf16.mxu0 0
      %1069 = vmatpush2.bf16.msra.mxu0 0
      %1070 = vmatprep.subr.bf16.mxu0 0
      %1071 = vmatpush2.bf16.msra.mxu0 0
      %1072 = vmatprep.subr.bf16.mxu0 0
      %1073 = vmatpush2.bf16.msra.mxu0 0
      %1074 = vmatprep.subr.bf16.mxu0 0
      %1075 = vmatpush2.bf16.msra.mxu0 0
      %1076 = vmatprep.subr.bf16.mxu0 0
      %1077 = vmatpush2.bf16.msra.mxu0 0
      %1078 = vmatprep.subr.bf16.mxu0 0
      %1079 = vmatpush2.bf16.msra.mxu0 0
      %1080 = vmatprep.subr.bf16.mxu0 0
      %1081 = vmatpush2.bf16.msra.mxu0 0
      %1082 = vmatprep.mubr.bf16.mxu0 0
      %1083 = vmatmul.mubr.bf16.gmra.mxu0 %v1048
      %v1084 = vpop.f32.mrf.mxu0
      %v1085 = vadd.f32 0.0, %v1084
      %v1086 = vpop.f32.mrf.mxu0
      %v1087 = vpop.f32.mrf.mxu0
      %v1088 = vpop.f32.mrf.mxu0
      %1089 = vdwg.mxu0
      %v1092 = vunpack.c.l.b16 %v1033
      %v1093 = vunpack.c.l.b16 %v1034
      %v1094 = vpack.c.b16 %v1093, %v1092
      %1096 = vmatprep.subr.bf16.mxu0 0
      %1097 = vmatpush1.bf16.msra.mxu0 0
      %1098 = vmatprep.subr.bf16.mxu0 0
      %1099 = vmatpush1.bf16.msra.mxu0 0
      %1100 = vmatprep.subr.bf16.mxu0 0
      %1101 = vmatpush1.bf16.msra.mxu0 0
      %1102 = vmatprep.subr.bf16.mxu0 0
      %1103 = vmatpush1.bf16.msra.mxu0 0
      %1104 = vmatprep.subr.bf16.mxu0 0
      %1105 = vmatpush1.bf16.msra.mxu0 0
      %1106 = vmatprep.subr.bf16.mxu0 0
      %1107 = vmatpush1.bf16.msra.mxu0 0
      %1108 = vmatprep.subr.bf16.mxu0 0
      %1109 = vmatpush1.bf16.msra.mxu0 0
      %1110 = vmatprep.subr.bf16.mxu0 0
      %1111 = vmatpush1.bf16.msra.mxu0 %v1094
      %1112 = vmatprep.subr.bf16.mxu0 0
      %1113 = vmatpush2.bf16.msra.mxu0 0
      %1114 = vmatprep.subr.bf16.mxu0 0
      %1115 = vmatpush2.bf16.msra.mxu0 0
      %1116 = vmatprep.subr.bf16.mxu0 0
      %1117 = vmatpush2.bf16.msra.mxu0 0
      %1118 = vmatprep.subr.bf16.mxu0 0
      %1119 = vmatpush2.bf16.msra.mxu0 0
      %1120 = vmatprep.subr.bf16.mxu0 0
      %1121 = vmatpush2.bf16.msra.mxu0 0
      %1122 = vmatprep.subr.bf16.mxu0 0
      %1123 = vmatpush2.bf16.msra.mxu0 0
      %1124 = vmatprep.subr.bf16.mxu0 0
      %1125 = vmatpush2.bf16.msra.mxu0 0
      %1126 = vmatprep.subr.bf16.mxu0 0
      %1127 = vmatpush2.bf16.msra.mxu0 0
      %1128 = vmatprep.mubr.bf16.mxu0 0
      %1129 = vmatmul.mubr.bf16.gmra.mxu0 %v453
      %v1130 = vpop.f32.mrf.mxu0
      %v1131 = vadd.f32 %v1085, %v1130
      %v1132 = vpop.f32.mrf.mxu0
      %v1133 = vpop.f32.mrf.mxu0
      %v1134 = vpop.f32.mrf.mxu0
      %1135 = vdwg.mxu0
      %v1136 = vld [vmem:[%s6] sm:$0x1]
      %v1138 = vlaneseq
      %v1139 = vshrl.u32 %v1138, 7
      %v1140 = vsub.s32 0, %v1139
      %v1141 = vrot.slane %v1136, %v1140
      %v1143 = vadd.f32 %v1131, %v1141
      %v1145 = vcombine.high %v1143, %v1143
      %v1147 = vunpack.c.l.s4 1966171168
      %v1148 = vunpack.c.0.s8 %v1147
      %v1149 = vlaneseq
      %v1150 = vshrl.u32 %v1149, 7
      %v1151 = vsub.s32 %v1148, %v1150
      %v1152 = vrot.slane %v1143, %v1151
      %v1154 = vunpack.c.l.s4 1966171168
      %v1155 = vunpack.c.0.s8 %v1154
      %v1156 = vlaneseq
      %v1157 = vshrl.u32 %v1156, 7
      %v1158 = vsub.s32 %v1155, %v1157
      %v1159 = vrot.slane %v1145, %v1158
      %v1160 = vcombine.high %v1152, %v1152
      %v1161 = vcombine.high %v1159, %v1159
      %v1163 = vunpack.c.l.s4 1966171168
      %v1164 = vunpack.c.0.s8 %v1163
      %v1165 = vlaneseq
      %v1166 = vshrl.u32 %v1165, 7
      %v1167 = vsub.s32 %v1164, %v1166
      %v1168 = vrot.slane %v1152, %v1167
      %v1170 = vunpack.c.l.s4 1966171168
      %v1171 = vunpack.c.0.s8 %v1170
      %v1172 = vlaneseq
      %v1173 = vshrl.u32 %v1172, 7
      %v1174 = vsub.s32 %v1171, %v1173
      %v1175 = vrot.slane %v1159, %v1174
      %v1177 = vunpack.c.l.s4 1966171168
      %v1178 = vunpack.c.0.s8 %v1177
      %v1179 = vlaneseq
      %v1180 = vshrl.u32 %v1179, 7
      %v1181 = vsub.s32 %v1178, %v1180
      %v1182 = vrot.slane %v1160, %v1181
      %v1184 = vunpack.c.l.s4 1966171168
      %v1185 = vunpack.c.0.s8 %v1184
      %v1186 = vlaneseq
      %v1187 = vshrl.u32 %v1186, 7
      %v1188 = vsub.s32 %v1185, %v1187
      %v1189 = vrot.slane %v1161, %v1188
      %v1190 = vcombine.high %v1168, %v1168
      %v1191 = vcombine.high %v1175, %v1175
      %v1192 = vcombine.high %v1182, %v1182
      %v1193 = vcombine.high %v1189, %v1189
      %s1202 = scalar_lea.vmem %s277, 4
      %1203 = vst.msk [vmem:[%s1202] sm:$0x1] %vm553, %v1168
      %1204 = vst.msk [vmem:[%s1202 + $0x10] sm:$0x1] %vm553, %v1182
      %1205 = vst.msk [vmem:[%s1202 + $0x20] sm:$0x1] %vm553, %v1190
      %1206 = vst.msk [vmem:[%s1202 + $0x30] sm:$0x1] %vm553, %v1192
      %1207 = vst.msk [vmem:[%s1202 + $0x40] sm:$0x1] %vm553, %v1175
      %1208 = vst.msk [vmem:[%s1202 + $0x50] sm:$0x1] %vm553, %v1189
      %1209 = vst.msk [vmem:[%s1202 + $0x60] sm:$0x1] %vm553, %v1191
      %1210 = vst.msk [vmem:[%s1202 + $0x70] sm:$0x1] %vm553, %v1193
      %s1211 = scalar_lea.vmem %s5, 80
      %v1212 = vld [vmem:[%s1211] sm:$0xf]
      %v1213 = vld [vmem:[%s1211 + $0x4] sm:$0xf]
      %s1214 = scalar_lea.vmem %s5, 64
      %v1215 = vld [vmem:[%s1214] sm:$0xf]
      %v1216 = vld [vmem:[%s1214 + $0x4] sm:$0xf]
      %v1219 = vunpack.c.l.b16 %v1215
      %v1220 = vunpack.c.l.b16 %v1216
      %v1221 = vpack.c.b16 %v1220, %v1219
      %1223 = vmatprep.subr.bf16.mxu0 0
      %1224 = vmatpush1.bf16.msra.mxu0 0
      %1225 = vmatprep.subr.bf16.mxu0 0
      %1226 = vmatpush1.bf16.msra.mxu0 0
      %1227 = vmatprep.subr.bf16.mxu0 0
      %1228 = vmatpush1.bf16.msra.mxu0 0
      %1229 = vmatprep.subr.bf16.mxu0 0
      %1230 = vmatpush1.bf16.msra.mxu0 0
      %1231 = vmatprep.subr.bf16.mxu0 0
      %1232 = vmatpush1.bf16.msra.mxu0 0
      %1233 = vmatprep.subr.bf16.mxu0 0
      %1234 = vmatpush1.bf16.msra.mxu0 0
      %1235 = vmatprep.subr.bf16.mxu0 0
      %1236 = vmatpush1.bf16.msra.mxu0 0
      %1237 = vmatprep.subr.bf16.mxu0 0
      %1238 = vmatpush1.bf16.msra.mxu0 %v1221
      %1239 = vmatprep.subr.bf16.mxu0 0
      %1240 = vmatpush2.bf16.msra.mxu0 0
      %1241 = vmatprep.subr.bf16.mxu0 0
      %1242 = vmatpush2.bf16.msra.mxu0 0
      %1243 = vmatprep.subr.bf16.mxu0 0
      %1244 = vmatpush2.bf16.msra.mxu0 0
      %1245 = vmatprep.subr.bf16.mxu0 0
      %1246 = vmatpush2.bf16.msra.mxu0 0
      %1247 = vmatprep.subr.bf16.mxu0 0
      %1248 = vmatpush2.bf16.msra.mxu0 0
      %1249 = vmatprep.subr.bf16.mxu0 0
      %1250 = vmatpush2.bf16.msra.mxu0 0
      %1251 = vmatprep.subr.bf16.mxu0 0
      %1252 = vmatpush2.bf16.msra.mxu0 0
      %1253 = vmatprep.subr.bf16.mxu0 0
      %1254 = vmatpush2.bf16.msra.mxu0 0
      %1255 = vmatprep.mubr.bf16.mxu0 0
      %1256 = vmatmul.mubr.bf16.gmra.mxu0 %v578
      %v1257 = vpop.f32.mrf.mxu0
      %v1258 = vadd.f32 0.0, %v1257
      %v1259 = vpop.f32.mrf.mxu0
      %v1260 = vpop.f32.mrf.mxu0
      %v1261 = vpop.f32.mrf.mxu0
      %1262 = vdwg.mxu0
      %v1265 = vunpack.c.l.b16 %v1212
      %v1266 = vunpack.c.l.b16 %v1213
      %v1267 = vpack.c.b16 %v1266, %v1265
      %1269 = vmatprep.subr.bf16.mxu0 0
      %1270 = vmatpush1.bf16.msra.mxu0 0
      %1271 = vmatprep.subr.bf16.mxu0 0
      %1272 = vmatpush1.bf16.msra.mxu0 0
      %1273 = vmatprep.subr.bf16.mxu0 0
      %1274 = vmatpush1.bf16.msra.mxu0 0
      %1275 = vmatprep.subr.bf16.mxu0 0
      %1276 = vmatpush1.bf16.msra.mxu0 0
      %1277 = vmatprep.subr.bf16.mxu0 0
      %1278 = vmatpush1.bf16.msra.mxu0 0
      %1279 = vmatprep.subr.bf16.mxu0 0
      %1280 = vmatpush1.bf16.msra.mxu0 0
      %1281 = vmatprep.subr.bf16.mxu0 0
      %1282 = vmatpush1.bf16.msra.mxu0 0
      %1283 = vmatprep.subr.bf16.mxu0 0
      %1284 = vmatpush1.bf16.msra.mxu0 %v1267
      %1285 = vmatprep.subr.bf16.mxu0 0
      %1286 = vmatpush2.bf16.msra.mxu0 0
      %1287 = vmatprep.subr.bf16.mxu0 0
      %1288 = vmatpush2.bf16.msra.mxu0 0
      %1289 = vmatprep.subr.bf16.mxu0 0
      %1290 = vmatpush2.bf16.msra.mxu0 0
      %1291 = vmatprep.subr.bf16.mxu0 0
      %1292 = vmatpush2.bf16.msra.mxu0 0
      %1293 = vmatprep.subr.bf16.mxu0 0
      %1294 = vmatpush2.bf16.msra.mxu0 0
      %1295 = vmatprep.subr.bf16.mxu0 0
      %1296 = vmatpush2.bf16.msra.mxu0 0
      %1297 = vmatprep.subr.bf16.mxu0 0
      %1298 = vmatpush2.bf16.msra.mxu0 0
      %1299 = vmatprep.subr.bf16.mxu0 0
      %1300 = vmatpush2.bf16.msra.mxu0 0
      %1301 = vmatprep.mubr.bf16.mxu0 0
      %1302 = vmatmul.mubr.bf16.gmra.mxu0 %v453
      %v1303 = vpop.f32.mrf.mxu0
      %v1304 = vadd.f32 %v1258, %v1303
      %v1305 = vpop.f32.mrf.mxu0
      %v1306 = vpop.f32.mrf.mxu0
      %v1307 = vpop.f32.mrf.mxu0
      %1308 = vdwg.mxu0
      %s1309 = scalar_lea.vmem %s5, 16
      %v1310 = vld [vmem:[%s1309] sm:$0xf]
      %v1311 = vld [vmem:[%s1309 + $0x4] sm:$0xf]
      %v1314 = vunpack.c.l.b16 %v1310
      %v1315 = vunpack.c.l.b16 %v1311
      %v1316 = vpack.c.b16 %v1315, %v1314
      %1318 = vmatprep.subr.bf16.mxu0 0
      %1319 = vmatpush1.bf16.msra.mxu0 0
      %1320 = vmatprep.subr.bf16.mxu0 0
      %1321 = vmatpush1.bf16.msra.mxu0 0
      %1322 = vmatprep.subr.bf16.mxu0 0
      %1323 = vmatpush1.bf16.msra.mxu0 0
      %1324 = vmatprep.subr.bf16.mxu0 0
      %1325 = vmatpush1.bf16.msra.mxu0 0
      %1326 = vmatprep.subr.bf16.mxu0 0
      %1327 = vmatpush1.bf16.msra.mxu0 0
      %1328 = vmatprep.subr.bf16.mxu0 0
      %1329 = vmatpush1.bf16.msra.mxu0 0
      %1330 = vmatprep.subr.bf16.mxu0 0
      %1331 = vmatpush1.bf16.msra.mxu0 0
      %1332 = vmatprep.subr.bf16.mxu0 0
      %1333 = vmatpush1.bf16.msra.mxu0 %v1316
      %1334 = vmatprep.subr.bf16.mxu0 0
      %1335 = vmatpush2.bf16.msra.mxu0 0
      %1336 = vmatprep.subr.bf16.mxu0 0
      %1337 = vmatpush2.bf16.msra.mxu0 0
      %1338 = vmatprep.subr.bf16.mxu0 0
      %1339 = vmatpush2.bf16.msra.mxu0 0
      %1340 = vmatprep.subr.bf16.mxu0 0
      %1341 = vmatpush2.bf16.msra.mxu0 0
      %1342 = vmatprep.subr.bf16.mxu0 0
      %1343 = vmatpush2.bf16.msra.mxu0 0
      %1344 = vmatprep.subr.bf16.mxu0 0
      %1345 = vmatpush2.bf16.msra.mxu0 0
      %1346 = vmatprep.subr.bf16.mxu0 0
      %1347 = vmatpush2.bf16.msra.mxu0 0
      %1348 = vmatprep.subr.bf16.mxu0 0
      %1349 = vmatpush2.bf16.msra.mxu0 0
      %1350 = vmatprep.mubr.bf16.mxu0 0
      %1351 = vmatmul.mubr.bf16.gmra.mxu0 %v1048
      %v1352 = vpop.f32.mrf.mxu0
      %v1353 = vadd.f32 0.0, %v1352
      %v1354 = vpop.f32.mrf.mxu0
      %v1355 = vpop.f32.mrf.mxu0
      %v1356 = vpop.f32.mrf.mxu0
      %1357 = vdwg.mxu0
      %v1358 = vadd.f32 %v1304, %v1353
      %v1359 = vld [vmem:[%s5] sm:$0xf]
      %v1360 = vld [vmem:[%s5 + $0x4] sm:$0xf]
      %1362 = vrot.lane.b32.xlu0 %v435, 80
      %v1363 = vpop.permute.xlu0 %1362
      %v1366 = vunpack.c.l.b16 %v1359
      %v1367 = vunpack.c.l.b16 %v1360
      %v1368 = vpack.c.b16 %v1367, %v1366
      %v1371 = vsel %vm297, %v1363, 0
      %1373 = vmatprep.subr.bf16.mxu0 0
      %1374 = vmatpush1.bf16.msra.mxu0 0
      %1375 = vmatprep.subr.bf16.mxu0 0
      %1376 = vmatpush1.bf16.msra.mxu0 0
      %1377 = vmatprep.subr.bf16.mxu0 0
      %1378 = vmatpush1.bf16.msra.mxu0 0
      %1379 = vmatprep.subr.bf16.mxu0 0
      %1380 = vmatpush1.bf16.msra.mxu0 0
      %1381 = vmatprep.subr.bf16.mxu0 0
      %1382 = vmatpush1.bf16.msra.mxu0 0
      %1383 = vmatprep.subr.bf16.mxu0 0
      %1384 = vmatpush1.bf16.msra.mxu0 0
      %1385 = vmatprep.subr.bf16.mxu0 0
      %1386 = vmatpush1.bf16.msra.mxu0 0
      %1387 = vmatprep.subr.bf16.mxu0 0
      %1388 = vmatpush1.bf16.msra.mxu0 %v1368
      %1389 = vmatprep.subr.bf16.mxu0 0
      %1390 = vmatpush2.bf16.msra.mxu0 0
      %1391 = vmatprep.subr.bf16.mxu0 0
      %1392 = vmatpush2.bf16.msra.mxu0 0
      %1393 = vmatprep.subr.bf16.mxu0 0
      %1394 = vmatpush2.bf16.msra.mxu0 0
      %1395 = vmatprep.subr.bf16.mxu0 0
      %1396 = vmatpush2.bf16.msra.mxu0 0
      %1397 = vmatprep.subr.bf16.mxu0 0
      %1398 = vmatpush2.bf16.msra.mxu0 0
      %1399 = vmatprep.subr.bf16.mxu0 0
      %1400 = vmatpush2.bf16.msra.mxu0 0
      %1401 = vmatprep.subr.bf16.mxu0 0
      %1402 = vmatpush2.bf16.msra.mxu0 0
      %1403 = vmatprep.subr.bf16.mxu0 0
      %1404 = vmatpush2.bf16.msra.mxu0 0
      %1405 = vmatprep.mubr.bf16.mxu0 0
      %1406 = vmatmul.mubr.bf16.gmra.mxu0 %v1371
      %v1407 = vpop.f32.mrf.mxu0
      %v1408 = vadd.f32 0.0, %v1407
      %v1409 = vpop.f32.mrf.mxu0
      %v1410 = vpop.f32.mrf.mxu0
      %v1411 = vpop.f32.mrf.mxu0
      %1412 = vdwg.mxu0
      %v1413 = vadd.f32 %v1358, %v1408
      %v1414 = vld [vmem:[%s6] sm:$0x1]
      %v1416 = vlaneseq
      %v1417 = vshrl.u32 %v1416, 7
      %v1418 = vsub.s32 0, %v1417
      %v1419 = vrot.slane %v1414, %v1418
      %v1421 = vadd.f32 %v1413, %v1419
      %v1423 = vcombine.high %v1421, %v1421
      %v1425 = vunpack.c.l.s4 1966171168
      %v1426 = vunpack.c.0.s8 %v1425
      %v1427 = vlaneseq
      %v1428 = vshrl.u32 %v1427, 7
      %v1429 = vsub.s32 %v1426, %v1428
      %v1430 = vrot.slane %v1421, %v1429
      %v1432 = vunpack.c.l.s4 1966171168
      %v1433 = vunpack.c.0.s8 %v1432
      %v1434 = vlaneseq
      %v1435 = vshrl.u32 %v1434, 7
      %v1436 = vsub.s32 %v1433, %v1435
      %v1437 = vrot.slane %v1423, %v1436
      %v1438 = vcombine.high %v1430, %v1430
      %v1439 = vcombine.high %v1437, %v1437
      %v1441 = vunpack.c.l.s4 1966171168
      %v1442 = vunpack.c.0.s8 %v1441
      %v1443 = vlaneseq
      %v1444 = vshrl.u32 %v1443, 7
      %v1445 = vsub.s32 %v1442, %v1444
      %v1446 = vrot.slane %v1430, %v1445
      %v1448 = vunpack.c.l.s4 1966171168
      %v1449 = vunpack.c.0.s8 %v1448
      %v1450 = vlaneseq
      %v1451 = vshrl.u32 %v1450, 7
      %v1452 = vsub.s32 %v1449, %v1451
      %v1453 = vrot.slane %v1437, %v1452
      %v1455 = vunpack.c.l.s4 1966171168
      %v1456 = vunpack.c.0.s8 %v1455
      %v1457 = vlaneseq
      %v1458 = vshrl.u32 %v1457, 7
      %v1459 = vsub.s32 %v1456, %v1458
      %v1460 = vrot.slane %v1438, %v1459
      %v1462 = vunpack.c.l.s4 1966171168
      %v1463 = vunpack.c.0.s8 %v1462
      %v1464 = vlaneseq
      %v1465 = vshrl.u32 %v1464, 7
      %v1466 = vsub.s32 %v1463, %v1465
      %v1467 = vrot.slane %v1439, %v1466
      %v1468 = vcombine.high %v1446, %v1446
      %v1469 = vcombine.high %v1453, %v1453
      %v1470 = vcombine.high %v1460, %v1460
      %v1471 = vcombine.high %v1467, %v1467
      %1480 = vst.msk [vmem:[%s1202 + $0x1] sm:$0x1] %vm553, %v1446
      %1481 = vst.msk [vmem:[%s1202 + $0x11] sm:$0x1] %vm553, %v1460
      %1482 = vst.msk [vmem:[%s1202 + $0x21] sm:$0x1] %vm553, %v1468
      %1483 = vst.msk [vmem:[%s1202 + $0x31] sm:$0x1] %vm553, %v1470
      %1484 = vst.msk [vmem:[%s1202 + $0x41] sm:$0x1] %vm553, %v1453
      %1485 = vst.msk [vmem:[%s1202 + $0x51] sm:$0x1] %vm553, %v1467
      %1486 = vst.msk [vmem:[%s1202 + $0x61] sm:$0x1] %vm553, %v1469
      %1487 = vst.msk [vmem:[%s1202 + $0x71] sm:$0x1] %vm553, %v1471
      %s1488 = scalar_lea.vmem %s5, 88
      %v1489 = vld [vmem:[%s1488] sm:$0xf]
      %v1490 = vld [vmem:[%s1488 + $0x4] sm:$0xf]
      %v1491 = vld [vmem:[%s1032] sm:$0xf]
      %v1492 = vld [vmem:[%s1032 + $0x4] sm:$0xf]
      %v1495 = vunpack.c.l.b16 %v1491
      %v1496 = vunpack.c.l.b16 %v1492
      %v1497 = vpack.c.b16 %v1496, %v1495
      %1499 = vmatprep.subr.bf16.mxu0 0
      %1500 = vmatpush1.bf16.msra.mxu0 0
      %1501 = vmatprep.subr.bf16.mxu0 0
      %1502 = vmatpush1.bf16.msra.mxu0 0
      %1503 = vmatprep.subr.bf16.mxu0 0
      %1504 = vmatpush1.bf16.msra.mxu0 0
      %1505 = vmatprep.subr.bf16.mxu0 0
      %1506 = vmatpush1.bf16.msra.mxu0 0
      %1507 = vmatprep.subr.bf16.mxu0 0
      %1508 = vmatpush1.bf16.msra.mxu0 0
      %1509 = vmatprep.subr.bf16.mxu0 0
      %1510 = vmatpush1.bf16.msra.mxu0 0
      %1511 = vmatprep.subr.bf16.mxu0 0
      %1512 = vmatpush1.bf16.msra.mxu0 0
      %1513 = vmatprep.subr.bf16.mxu0 0
      %1514 = vmatpush1.bf16.msra.mxu0 %v1497
      %1515 = vmatprep.subr.bf16.mxu0 0
      %1516 = vmatpush2.bf16.msra.mxu0 0
      %1517 = vmatprep.subr.bf16.mxu0 0
      %1518 = vmatpush2.bf16.msra.mxu0 0
      %1519 = vmatprep.subr.bf16.mxu0 0
      %1520 = vmatpush2.bf16.msra.mxu0 0
      %1521 = vmatprep.subr.bf16.mxu0 0
      %1522 = vmatpush2.bf16.msra.mxu0 0
      %1523 = vmatprep.subr.bf16.mxu0 0
      %1524 = vmatpush2.bf16.msra.mxu0 0
      %1525 = vmatprep.subr.bf16.mxu0 0
      %1526 = vmatpush2.bf16.msra.mxu0 0
      %1527 = vmatprep.subr.bf16.mxu0 0
      %1528 = vmatpush2.bf16.msra.mxu0 0
      %1529 = vmatprep.subr.bf16.mxu0 0
      %1530 = vmatpush2.bf16.msra.mxu0 0
      %1531 = vmatprep.mubr.bf16.mxu0 0
      %1532 = vmatmul.mubr.bf16.gmra.mxu0 %v578
      %v1533 = vpop.f32.mrf.mxu0
      %v1534 = vadd.f32 0.0, %v1533
      %v1535 = vpop.f32.mrf.mxu0
      %v1536 = vpop.f32.mrf.mxu0
      %v1537 = vpop.f32.mrf.mxu0
      %1538 = vdwg.mxu0
      %v1541 = vunpack.c.l.b16 %v1489
      %v1542 = vunpack.c.l.b16 %v1490
      %v1543 = vpack.c.b16 %v1542, %v1541
      %1545 = vmatprep.subr.bf16.mxu0 0
      %1546 = vmatpush1.bf16.msra.mxu0 0
      %1547 = vmatprep.subr.bf16.mxu0 0
      %1548 = vmatpush1.bf16.msra.mxu0 0
      %1549 = vmatprep.subr.bf16.mxu0 0
      %1550 = vmatpush1.bf16.msra.mxu0 0
      %1551 = vmatprep.subr.bf16.mxu0 0
      %1552 = vmatpush1.bf16.msra.mxu0 0
      %1553 = vmatprep.subr.bf16.mxu0 0
      %1554 = vmatpush1.bf16.msra.mxu0 0
      %1555 = vmatprep.subr.bf16.mxu0 0
      %1556 = vmatpush1.bf16.msra.mxu0 0
      %1557 = vmatprep.subr.bf16.mxu0 0
      %1558 = vmatpush1.bf16.msra.mxu0 0
      %1559 = vmatprep.subr.bf16.mxu0 0
      %1560 = vmatpush1.bf16.msra.mxu0 %v1543
      %1561 = vmatprep.subr.bf16.mxu0 0
      %1562 = vmatpush2.bf16.msra.mxu0 0
      %1563 = vmatprep.subr.bf16.mxu0 0
      %1564 = vmatpush2.bf16.msra.mxu0 0
      %1565 = vmatprep.subr.bf16.mxu0 0
      %1566 = vmatpush2.bf16.msra.mxu0 0
      %1567 = vmatprep.subr.bf16.mxu0 0
      %1568 = vmatpush2.bf16.msra.mxu0 0
      %1569 = vmatprep.subr.bf16.mxu0 0
      %1570 = vmatpush2.bf16.msra.mxu0 0
      %1571 = vmatprep.subr.bf16.mxu0 0
      %1572 = vmatpush2.bf16.msra.mxu0 0
      %1573 = vmatprep.subr.bf16.mxu0 0
      %1574 = vmatpush2.bf16.msra.mxu0 0
      %1575 = vmatprep.subr.bf16.mxu0 0
      %1576 = vmatpush2.bf16.msra.mxu0 0
      %1577 = vmatprep.mubr.bf16.mxu0 0
      %1578 = vmatmul.mubr.bf16.gmra.mxu0 %v453
      %v1579 = vpop.f32.mrf.mxu0
      %v1580 = vadd.f32 %v1534, %v1579
      %v1581 = vpop.f32.mrf.mxu0
      %v1582 = vpop.f32.mrf.mxu0
      %v1583 = vpop.f32.mrf.mxu0
      %1584 = vdwg.mxu0
      %s1585 = scalar_lea.vmem %s5, 24
      %v1586 = vld [vmem:[%s1585] sm:$0xf]
      %v1587 = vld [vmem:[%s1585 + $0x4] sm:$0xf]
      %v1590 = vunpack.c.l.b16 %v1586
      %v1591 = vunpack.c.l.b16 %v1587
      %v1592 = vpack.c.b16 %v1591, %v1590
      %1594 = vmatprep.subr.bf16.mxu0 0
      %1595 = vmatpush1.bf16.msra.mxu0 0
      %1596 = vmatprep.subr.bf16.mxu0 0
      %1597 = vmatpush1.bf16.msra.mxu0 0
      %1598 = vmatprep.subr.bf16.mxu0 0
      %1599 = vmatpush1.bf16.msra.mxu0 0
      %1600 = vmatprep.subr.bf16.mxu0 0
      %1601 = vmatpush1.bf16.msra.mxu0 0
      %1602 = vmatprep.subr.bf16.mxu0 0
      %1603 = vmatpush1.bf16.msra.mxu0 0
      %1604 = vmatprep.subr.bf16.mxu0 0
      %1605 = vmatpush1.bf16.msra.mxu0 0
      %1606 = vmatprep.subr.bf16.mxu0 0
      %1607 = vmatpush1.bf16.msra.mxu0 0
      %1608 = vmatprep.subr.bf16.mxu0 0
      %1609 = vmatpush1.bf16.msra.mxu0 %v1592
      %1610 = vmatprep.subr.bf16.mxu0 0
      %1611 = vmatpush2.bf16.msra.mxu0 0
      %1612 = vmatprep.subr.bf16.mxu0 0
      %1613 = vmatpush2.bf16.msra.mxu0 0
      %1614 = vmatprep.subr.bf16.mxu0 0
      %1615 = vmatpush2.bf16.msra.mxu0 0
      %1616 = vmatprep.subr.bf16.mxu0 0
      %1617 = vmatpush2.bf16.msra.mxu0 0
      %1618 = vmatprep.subr.bf16.mxu0 0
      %1619 = vmatpush2.bf16.msra.mxu0 0
      %1620 = vmatprep.subr.bf16.mxu0 0
      %1621 = vmatpush2.bf16.msra.mxu0 0
      %1622 = vmatprep.subr.bf16.mxu0 0
      %1623 = vmatpush2.bf16.msra.mxu0 0
      %1624 = vmatprep.subr.bf16.mxu0 0
      %1625 = vmatpush2.bf16.msra.mxu0 0
      %1626 = vmatprep.mubr.bf16.mxu0 0
      %1627 = vmatmul.mubr.bf16.gmra.mxu0 %v1048
      %v1628 = vpop.f32.mrf.mxu0
      %v1629 = vadd.f32 0.0, %v1628
      %v1630 = vpop.f32.mrf.mxu0
      %v1631 = vpop.f32.mrf.mxu0
      %v1632 = vpop.f32.mrf.mxu0
      %1633 = vdwg.mxu0
      %v1634 = vadd.f32 %v1580, %v1629
      %v1635 = vld [vmem:[%s1035] sm:$0xf]
      %v1636 = vld [vmem:[%s1035 + $0x4] sm:$0xf]
      %v1639 = vunpack.c.l.b16 %v1635
      %v1640 = vunpack.c.l.b16 %v1636
      %v1641 = vpack.c.b16 %v1640, %v1639
      %1643 = vmatprep.subr.bf16.mxu0 0
      %1644 = vmatpush1.bf16.msra.mxu0 0
      %1645 = vmatprep.subr.bf16.mxu0 0
      %1646 = vmatpush1.bf16.msra.mxu0 0
      %1647 = vmatprep.subr.bf16.mxu0 0
      %1648 = vmatpush1.bf16.msra.mxu0 0
      %1649 = vmatprep.subr.bf16.mxu0 0
      %1650 = vmatpush1.bf16.msra.mxu0 0
      %1651 = vmatprep.subr.bf16.mxu0 0
      %1652 = vmatpush1.bf16.msra.mxu0 0
      %1653 = vmatprep.subr.bf16.mxu0 0
      %1654 = vmatpush1.bf16.msra.mxu0 0
      %1655 = vmatprep.subr.bf16.mxu0 0
      %1656 = vmatpush1.bf16.msra.mxu0 0
      %1657 = vmatprep.subr.bf16.mxu0 0
      %1658 = vmatpush1.bf16.msra.mxu0 %v1641
      %1659 = vmatprep.subr.bf16.mxu0 0
      %1660 = vmatpush2.bf16.msra.mxu0 0
      %1661 = vmatprep.subr.bf16.mxu0 0
      %1662 = vmatpush2.bf16.msra.mxu0 0
      %1663 = vmatprep.subr.bf16.mxu0 0
      %1664 = vmatpush2.bf16.msra.mxu0 0
      %1665 = vmatprep.subr.bf16.mxu0 0
      %1666 = vmatpush2.bf16.msra.mxu0 0
      %1667 = vmatprep.subr.bf16.mxu0 0
      %1668 = vmatpush2.bf16.msra.mxu0 0
      %1669 = vmatprep.subr.bf16.mxu0 0
      %1670 = vmatpush2.bf16.msra.mxu0 0
      %1671 = vmatprep.subr.bf16.mxu0 0
      %1672 = vmatpush2.bf16.msra.mxu0 0
      %1673 = vmatprep.subr.bf16.mxu0 0
      %1674 = vmatpush2.bf16.msra.mxu0 0
      %1675 = vmatprep.mubr.bf16.mxu0 0
      %1676 = vmatmul.mubr.bf16.gmra.mxu0 %v1371
      %v1677 = vpop.f32.mrf.mxu0
      %v1678 = vadd.f32 0.0, %v1677
      %v1679 = vpop.f32.mrf.mxu0
      %v1680 = vpop.f32.mrf.mxu0
      %v1681 = vpop.f32.mrf.mxu0
      %1682 = vdwg.mxu0
      %v1683 = vadd.f32 %v1634, %v1678
      %v1684 = vld [vmem:[%s6] sm:$0x1]
      %v1686 = vlaneseq
      %v1687 = vshrl.u32 %v1686, 7
      %v1688 = vsub.s32 0, %v1687
      %v1689 = vrot.slane %v1684, %v1688
      %v1691 = vadd.f32 %v1683, %v1689
      %v1693 = vcombine.high %v1691, %v1691
      %v1695 = vunpack.c.l.s4 1966171168
      %v1696 = vunpack.c.0.s8 %v1695
      %v1697 = vlaneseq
      %v1698 = vshrl.u32 %v1697, 7
      %v1699 = vsub.s32 %v1696, %v1698
      %v1700 = vrot.slane %v1691, %v1699
      %v1702 = vunpack.c.l.s4 1966171168
      %v1703 = vunpack.c.0.s8 %v1702
      %v1704 = vlaneseq
      %v1705 = vshrl.u32 %v1704, 7
      %v1706 = vsub.s32 %v1703, %v1705
      %v1707 = vrot.slane %v1693, %v1706
      %v1708 = vcombine.high %v1700, %v1700
      %v1709 = vcombine.high %v1707, %v1707
      %v1711 = vunpack.c.l.s4 1966171168
      %v1712 = vunpack.c.0.s8 %v1711
      %v1713 = vlaneseq
      %v1714 = vshrl.u32 %v1713, 7
      %v1715 = vsub.s32 %v1712, %v1714
      %v1716 = vrot.slane %v1700, %v1715
      %v1718 = vunpack.c.l.s4 1966171168
      %v1719 = vunpack.c.0.s8 %v1718
      %v1720 = vlaneseq
      %v1721 = vshrl.u32 %v1720, 7
      %v1722 = vsub.s32 %v1719, %v1721
      %v1723 = vrot.slane %v1707, %v1722
      %v1725 = vunpack.c.l.s4 1966171168
      %v1726 = vunpack.c.0.s8 %v1725
      %v1727 = vlaneseq
      %v1728 = vshrl.u32 %v1727, 7
      %v1729 = vsub.s32 %v1726, %v1728
      %v1730 = vrot.slane %v1708, %v1729
      %v1732 = vunpack.c.l.s4 1966171168
      %v1733 = vunpack.c.0.s8 %v1732
      %v1734 = vlaneseq
      %v1735 = vshrl.u32 %v1734, 7
      %v1736 = vsub.s32 %v1733, %v1735
      %v1737 = vrot.slane %v1709, %v1736
      %v1738 = vcombine.high %v1716, %v1716
      %v1739 = vcombine.high %v1723, %v1723
      %v1740 = vcombine.high %v1730, %v1730
      %v1741 = vcombine.high %v1737, %v1737
      %1750 = vst.msk [vmem:[%s1202 + $0x2] sm:$0x1] %vm553, %v1716
      %1751 = vst.msk [vmem:[%s1202 + $0x12] sm:$0x1] %vm553, %v1730
      %1752 = vst.msk [vmem:[%s1202 + $0x22] sm:$0x1] %vm553, %v1738
      %1753 = vst.msk [vmem:[%s1202 + $0x32] sm:$0x1] %vm553, %v1740
      %1754 = vst.msk [vmem:[%s1202 + $0x42] sm:$0x1] %vm553, %v1723
      %1755 = vst.msk [vmem:[%s1202 + $0x52] sm:$0x1] %vm553, %v1737
      %1756 = vst.msk [vmem:[%s1202 + $0x62] sm:$0x1] %vm553, %v1739
      %1757 = vst.msk [vmem:[%s1202 + $0x72] sm:$0x1] %vm553, %v1741
      %v1758 = vld [vmem:[%s1211] sm:$0xf]
      %v1759 = vld [vmem:[%s1211 + $0x4] sm:$0xf]
      %v1760 = vld [vmem:[%s1309] sm:$0xf]
      %v1761 = vld [vmem:[%s1309 + $0x4] sm:$0xf]
      %v1764 = vunpack.c.l.b16 %v1760
      %v1765 = vunpack.c.l.b16 %v1761
      %v1766 = vpack.c.b16 %v1765, %v1764
      %1768 = vmatprep.subr.bf16.mxu0 0
      %1769 = vmatpush1.bf16.msra.mxu0 0
      %1770 = vmatprep.subr.bf16.mxu0 0
      %1771 = vmatpush1.bf16.msra.mxu0 0
      %1772 = vmatprep.subr.bf16.mxu0 0
      %1773 = vmatpush1.bf16.msra.mxu0 0
      %1774 = vmatprep.subr.bf16.mxu0 0
      %1775 = vmatpush1.bf16.msra.mxu0 0
      %1776 = vmatprep.subr.bf16.mxu0 0
      %1777 = vmatpush1.bf16.msra.mxu0 0
      %1778 = vmatprep.subr.bf16.mxu0 0
      %1779 = vmatpush1.bf16.msra.mxu0 0
      %1780 = vmatprep.subr.bf16.mxu0 0
      %1781 = vmatpush1.bf16.msra.mxu0 0
      %1782 = vmatprep.subr.bf16.mxu0 0
      %1783 = vmatpush1.bf16.msra.mxu0 %v1766
      %1784 = vmatprep.subr.bf16.mxu0 0
      %1785 = vmatpush2.bf16.msra.mxu0 0
      %1786 = vmatprep.subr.bf16.mxu0 0
      %1787 = vmatpush2.bf16.msra.mxu0 0
      %1788 = vmatprep.subr.bf16.mxu0 0
      %1789 = vmatpush2.bf16.msra.mxu0 0
      %1790 = vmatprep.subr.bf16.mxu0 0
      %1791 = vmatpush2.bf16.msra.mxu0 0
      %1792 = vmatprep.subr.bf16.mxu0 0
      %1793 = vmatpush2.bf16.msra.mxu0 0
      %1794 = vmatprep.subr.bf16.mxu0 0
      %1795 = vmatpush2.bf16.msra.mxu0 0
      %1796 = vmatprep.subr.bf16.mxu0 0
      %1797 = vmatpush2.bf16.msra.mxu0 0
      %1798 = vmatprep.subr.bf16.mxu0 0
      %1799 = vmatpush2.bf16.msra.mxu0 0
      %1800 = vmatprep.mubr.bf16.mxu0 0
      %1801 = vmatmul.mubr.bf16.gmra.mxu0 %v1371
      %v1802 = vpop.f32.mrf.mxu0
      %v1803 = vadd.f32 0.0, %v1802
      %v1804 = vpop.f32.mrf.mxu0
      %v1805 = vpop.f32.mrf.mxu0
      %v1806 = vpop.f32.mrf.mxu0
      %1807 = vdwg.mxu0
      %v1810 = vunpack.c.l.b16 %v1758
      %v1811 = vunpack.c.l.b16 %v1759
      %v1812 = vpack.c.b16 %v1811, %v1810
      %1814 = vmatprep.subr.bf16.mxu0 0
      %1815 = vmatpush1.bf16.msra.mxu0 0
      %1816 = vmatprep.subr.bf16.mxu0 0
      %1817 = vmatpush1.bf16.msra.mxu0 0
      %1818 = vmatprep.subr.bf16.mxu0 0
      %1819 = vmatpush1.bf16.msra.mxu0 0
      %1820 = vmatprep.subr.bf16.mxu0 0
      %1821 = vmatpush1.bf16.msra.mxu0 0
      %1822 = vmatprep.subr.bf16.mxu0 0
      %1823 = vmatpush1.bf16.msra.mxu0 0
      %1824 = vmatprep.subr.bf16.mxu0 0
      %1825 = vmatpush1.bf16.msra.mxu0 0
      %1826 = vmatprep.subr.bf16.mxu0 0
      %1827 = vmatpush1.bf16.msra.mxu0 0
      %1828 = vmatprep.subr.bf16.mxu0 0
      %1829 = vmatpush1.bf16.msra.mxu0 %v1812
      %1830 = vmatprep.subr.bf16.mxu0 0
      %1831 = vmatpush2.bf16.msra.mxu0 0
      %1832 = vmatprep.subr.bf16.mxu0 0
      %1833 = vmatpush2.bf16.msra.mxu0 0
      %1834 = vmatprep.subr.bf16.mxu0 0
      %1835 = vmatpush2.bf16.msra.mxu0 0
      %1836 = vmatprep.subr.bf16.mxu0 0
      %1837 = vmatpush2.bf16.msra.mxu0 0
      %1838 = vmatprep.subr.bf16.mxu0 0
      %1839 = vmatpush2.bf16.msra.mxu0 0
      %1840 = vmatprep.subr.bf16.mxu0 0
      %1841 = vmatpush2.bf16.msra.mxu0 0
      %1842 = vmatprep.subr.bf16.mxu0 0
      %1843 = vmatpush2.bf16.msra.mxu0 0
      %1844 = vmatprep.subr.bf16.mxu0 0
      %1845 = vmatpush2.bf16.msra.mxu0 0
      %1846 = vmatprep.mubr.bf16.mxu0 0
      %1847 = vmatmul.mubr.bf16.gmra.mxu0 %v578
      %v1848 = vpop.f32.mrf.mxu0
      %v1849 = vadd.f32 %v1803, %v1848
      %v1850 = vpop.f32.mrf.mxu0
      %v1851 = vpop.f32.mrf.mxu0
      %v1852 = vpop.f32.mrf.mxu0
      %1853 = vdwg.mxu0
      %v1854 = vld [vmem:[%s6] sm:$0x1]
      %v1856 = vlaneseq
      %v1857 = vshrl.u32 %v1856, 7
      %v1858 = vsub.s32 0, %v1857
      %v1859 = vrot.slane %v1854, %v1858
      %v1861 = vadd.f32 %v1849, %v1859
      %v1863 = vcombine.high %v1861, %v1861
      %v1865 = vunpack.c.l.s4 1966171168
      %v1866 = vunpack.c.0.s8 %v1865
      %v1867 = vlaneseq
      %v1868 = vshrl.u32 %v1867, 7
      %v1869 = vsub.s32 %v1866, %v1868
      %v1870 = vrot.slane %v1861, %v1869
      %v1872 = vunpack.c.l.s4 1966171168
      %v1873 = vunpack.c.0.s8 %v1872
      %v1874 = vlaneseq
      %v1875 = vshrl.u32 %v1874, 7
      %v1876 = vsub.s32 %v1873, %v1875
      %v1877 = vrot.slane %v1863, %v1876
      %v1878 = vcombine.high %v1870, %v1870
      %v1879 = vcombine.high %v1877, %v1877
      %v1881 = vunpack.c.l.s4 1966171168
      %v1882 = vunpack.c.0.s8 %v1881
      %v1883 = vlaneseq
      %v1884 = vshrl.u32 %v1883, 7
      %v1885 = vsub.s32 %v1882, %v1884
      %v1886 = vrot.slane %v1870, %v1885
      %v1888 = vunpack.c.l.s4 1966171168
      %v1889 = vunpack.c.0.s8 %v1888
      %v1890 = vlaneseq
      %v1891 = vshrl.u32 %v1890, 7
      %v1892 = vsub.s32 %v1889, %v1891
      %v1893 = vrot.slane %v1877, %v1892
      %v1895 = vunpack.c.l.s4 1966171168
      %v1896 = vunpack.c.0.s8 %v1895
      %v1897 = vlaneseq
      %v1898 = vshrl.u32 %v1897, 7
      %v1899 = vsub.s32 %v1896, %v1898
      %v1900 = vrot.slane %v1878, %v1899
      %v1902 = vunpack.c.l.s4 1966171168
      %v1903 = vunpack.c.0.s8 %v1902
      %v1904 = vlaneseq
      %v1905 = vshrl.u32 %v1904, 7
      %v1906 = vsub.s32 %v1903, %v1905
      %v1907 = vrot.slane %v1879, %v1906
      %v1908 = vcombine.high %v1886, %v1886
      %v1909 = vcombine.high %v1893, %v1893
      %v1910 = vcombine.high %v1900, %v1900
      %v1911 = vcombine.high %v1907, %v1907
      %1920 = vst.msk [vmem:[%s1202 + $0x3] sm:$0x1] %vm553, %v1886
      %1921 = vst.msk [vmem:[%s1202 + $0x13] sm:$0x1] %vm553, %v1900
      %1922 = vst.msk [vmem:[%s1202 + $0x23] sm:$0x1] %vm553, %v1908
      %1923 = vst.msk [vmem:[%s1202 + $0x33] sm:$0x1] %vm553, %v1910
      %1924 = vst.msk [vmem:[%s1202 + $0x43] sm:$0x1] %vm553, %v1893
      %1925 = vst.msk [vmem:[%s1202 + $0x53] sm:$0x1] %vm553, %v1907
      %1926 = vst.msk [vmem:[%s1202 + $0x63] sm:$0x1] %vm553, %v1909
      %1927 = vst.msk [vmem:[%s1202 + $0x73] sm:$0x1] %vm553, %v1911
      %s1928 = scalar_lea.vmem %s5, 104
      %v1929 = vld [vmem:[%s1928] sm:$0xf]
      %v1930 = vld [vmem:[%s1928 + $0x4] sm:$0xf]
      %v1931 = vld [vmem:[%s436] sm:$0xf]
      %v1932 = vld [vmem:[%s436 + $0x4] sm:$0xf]
      %v1935 = vunpack.c.l.b16 %v1931
      %v1936 = vunpack.c.l.b16 %v1932
      %v1937 = vpack.c.b16 %v1936, %v1935
      %1939 = vmatprep.subr.bf16.mxu0 0
      %1940 = vmatpush1.bf16.msra.mxu0 0
      %1941 = vmatprep.subr.bf16.mxu0 0
      %1942 = vmatpush1.bf16.msra.mxu0 0
      %1943 = vmatprep.subr.bf16.mxu0 0
      %1944 = vmatpush1.bf16.msra.mxu0 0
      %1945 = vmatprep.subr.bf16.mxu0 0
      %1946 = vmatpush1.bf16.msra.mxu0 0
      %1947 = vmatprep.subr.bf16.mxu0 0
      %1948 = vmatpush1.bf16.msra.mxu0 0
      %1949 = vmatprep.subr.bf16.mxu0 0
      %1950 = vmatpush1.bf16.msra.mxu0 0
      %1951 = vmatprep.subr.bf16.mxu0 0
      %1952 = vmatpush1.bf16.msra.mxu0 0
      %1953 = vmatprep.subr.bf16.mxu0 0
      %1954 = vmatpush1.bf16.msra.mxu0 %v1937
      %1955 = vmatprep.subr.bf16.mxu0 0
      %1956 = vmatpush2.bf16.msra.mxu0 0
      %1957 = vmatprep.subr.bf16.mxu0 0
      %1958 = vmatpush2.bf16.msra.mxu0 0
      %1959 = vmatprep.subr.bf16.mxu0 0
      %1960 = vmatpush2.bf16.msra.mxu0 0
      %1961 = vmatprep.subr.bf16.mxu0 0
      %1962 = vmatpush2.bf16.msra.mxu0 0
      %1963 = vmatprep.subr.bf16.mxu0 0
      %1964 = vmatpush2.bf16.msra.mxu0 0
      %1965 = vmatprep.subr.bf16.mxu0 0
      %1966 = vmatpush2.bf16.msra.mxu0 0
      %1967 = vmatprep.subr.bf16.mxu0 0
      %1968 = vmatpush2.bf16.msra.mxu0 0
      %1969 = vmatprep.subr.bf16.mxu0 0
      %1970 = vmatpush2.bf16.msra.mxu0 0
      %1971 = vmatprep.mubr.bf16.mxu0 0
      %1972 = vmatmul.mubr.bf16.gmra.mxu0 %v1048
      %v1973 = vpop.f32.mrf.mxu0
      %v1974 = vadd.f32 0.0, %v1973
      %v1975 = vpop.f32.mrf.mxu0
      %v1976 = vpop.f32.mrf.mxu0
      %v1977 = vpop.f32.mrf.mxu0
      %1978 = vdwg.mxu0
      %v1981 = vunpack.c.l.b16 %v1929
      %v1982 = vunpack.c.l.b16 %v1930
      %v1983 = vpack.c.b16 %v1982, %v1981
      %1985 = vmatprep.subr.bf16.mxu0 0
      %1986 = vmatpush1.bf16.msra.mxu0 0
      %1987 = vmatprep.subr.bf16.mxu0 0
      %1988 = vmatpush1.bf16.msra.mxu0 0
      %1989 = vmatprep.subr.bf16.mxu0 0
      %1990 = vmatpush1.bf16.msra.mxu0 0
      %1991 = vmatprep.subr.bf16.mxu0 0
      %1992 = vmatpush1.bf16.msra.mxu0 0
      %1993 = vmatprep.subr.bf16.mxu0 0
      %1994 = vmatpush1.bf16.msra.mxu0 0
      %1995 = vmatprep.subr.bf16.mxu0 0
      %1996 = vmatpush1.bf16.msra.mxu0 0
      %1997 = vmatprep.subr.bf16.mxu0 0
      %1998 = vmatpush1.bf16.msra.mxu0 0
      %1999 = vmatprep.subr.bf16.mxu0 0
      %2000 = vmatpush1.bf16.msra.mxu0 %v1983
      %2001 = vmatprep.subr.bf16.mxu0 0
      %2002 = vmatpush2.bf16.msra.mxu0 0
      %2003 = vmatprep.subr.bf16.mxu0 0
      %2004 = vmatpush2.bf16.msra.mxu0 0
      %2005 = vmatprep.subr.bf16.mxu0 0
      %2006 = vmatpush2.bf16.msra.mxu0 0
      %2007 = vmatprep.subr.bf16.mxu0 0
      %2008 = vmatpush2.bf16.msra.mxu0 0
      %2009 = vmatprep.subr.bf16.mxu0 0
      %2010 = vmatpush2.bf16.msra.mxu0 0
      %2011 = vmatprep.subr.bf16.mxu0 0
      %2012 = vmatpush2.bf16.msra.mxu0 0
      %2013 = vmatprep.subr.bf16.mxu0 0
      %2014 = vmatpush2.bf16.msra.mxu0 0
      %2015 = vmatprep.subr.bf16.mxu0 0
      %2016 = vmatpush2.bf16.msra.mxu0 0
      %2017 = vmatprep.mubr.bf16.mxu0 0
      %2018 = vmatmul.mubr.bf16.gmra.mxu0 %v453
      %v2019 = vpop.f32.mrf.mxu0
      %v2020 = vadd.f32 %v1974, %v2019
      %v2021 = vpop.f32.mrf.mxu0
      %v2022 = vpop.f32.mrf.mxu0
      %v2023 = vpop.f32.mrf.mxu0
      %2024 = vdwg.mxu0
      %v2025 = vld [vmem:[%s6] sm:$0x1]
      %v2027 = vlaneseq
      %v2028 = vshrl.u32 %v2027, 7
      %v2029 = vsub.s32 0, %v2028
      %v2030 = vrot.slane %v2025, %v2029
      %v2032 = vadd.f32 %v2020, %v2030
      %v2034 = vcombine.high %v2032, %v2032
      %v2036 = vunpack.c.l.s4 1966171168
      %v2037 = vunpack.c.0.s8 %v2036
      %v2038 = vlaneseq
      %v2039 = vshrl.u32 %v2038, 7
      %v2040 = vsub.s32 %v2037, %v2039
      %v2041 = vrot.slane %v2032, %v2040
      %v2043 = vunpack.c.l.s4 1966171168
      %v2044 = vunpack.c.0.s8 %v2043
      %v2045 = vlaneseq
      %v2046 = vshrl.u32 %v2045, 7
      %v2047 = vsub.s32 %v2044, %v2046
      %v2048 = vrot.slane %v2034, %v2047
      %v2049 = vcombine.high %v2041, %v2041
      %v2050 = vcombine.high %v2048, %v2048
      %v2052 = vunpack.c.l.s4 1966171168
      %v2053 = vunpack.c.0.s8 %v2052
      %v2054 = vlaneseq
      %v2055 = vshrl.u32 %v2054, 7
      %v2056 = vsub.s32 %v2053, %v2055
      %v2057 = vrot.slane %v2041, %v2056
      %v2059 = vunpack.c.l.s4 1966171168
      %v2060 = vunpack.c.0.s8 %v2059
      %v2061 = vlaneseq
      %v2062 = vshrl.u32 %v2061, 7
      %v2063 = vsub.s32 %v2060, %v2062
      %v2064 = vrot.slane %v2048, %v2063
      %v2066 = vunpack.c.l.s4 1966171168
      %v2067 = vunpack.c.0.s8 %v2066
      %v2068 = vlaneseq
      %v2069 = vshrl.u32 %v2068, 7
      %v2070 = vsub.s32 %v2067, %v2069
      %v2071 = vrot.slane %v2049, %v2070
      %v2073 = vunpack.c.l.s4 1966171168
      %v2074 = vunpack.c.0.s8 %v2073
      %v2075 = vlaneseq
      %v2076 = vshrl.u32 %v2075, 7
      %v2077 = vsub.s32 %v2074, %v2076
      %v2078 = vrot.slane %v2050, %v2077
      %v2079 = vcombine.high %v2057, %v2057
      %v2080 = vcombine.high %v2064, %v2064
      %v2081 = vcombine.high %v2071, %v2071
      %v2082 = vcombine.high %v2078, %v2078
      %s2091 = scalar_lea.vmem %s277, 8
      %2092 = vst.msk [vmem:[%s2091] sm:$0x1] %vm553, %v2057
      %2093 = vst.msk [vmem:[%s2091 + $0x10] sm:$0x1] %vm553, %v2071
      %2094 = vst.msk [vmem:[%s2091 + $0x20] sm:$0x1] %vm553, %v2079
      %2095 = vst.msk [vmem:[%s2091 + $0x30] sm:$0x1] %vm553, %v2081
      %2096 = vst.msk [vmem:[%s2091 + $0x40] sm:$0x1] %vm553, %v2064
      %2097 = vst.msk [vmem:[%s2091 + $0x50] sm:$0x1] %vm553, %v2078
      %2098 = vst.msk [vmem:[%s2091 + $0x60] sm:$0x1] %vm553, %v2080
      %2099 = vst.msk [vmem:[%s2091 + $0x70] sm:$0x1] %vm553, %v2082
      %s2100 = scalar_lea.vmem %s5, 112
      %v2101 = vld [vmem:[%s2100] sm:$0xf]
      %v2102 = vld [vmem:[%s2100 + $0x4] sm:$0xf]
      %s2103 = scalar_lea.vmem %s5, 96
      %v2104 = vld [vmem:[%s2103] sm:$0xf]
      %v2105 = vld [vmem:[%s2103 + $0x4] sm:$0xf]
      %v2108 = vunpack.c.l.b16 %v2104
      %v2109 = vunpack.c.l.b16 %v2105
      %v2110 = vpack.c.b16 %v2109, %v2108
      %2112 = vmatprep.subr.bf16.mxu0 0
      %2113 = vmatpush1.bf16.msra.mxu0 0
      %2114 = vmatprep.subr.bf16.mxu0 0
      %2115 = vmatpush1.bf16.msra.mxu0 0
      %2116 = vmatprep.subr.bf16.mxu0 0
      %2117 = vmatpush1.bf16.msra.mxu0 0
      %2118 = vmatprep.subr.bf16.mxu0 0
      %2119 = vmatpush1.bf16.msra.mxu0 0
      %2120 = vmatprep.subr.bf16.mxu0 0
      %2121 = vmatpush1.bf16.msra.mxu0 0
      %2122 = vmatprep.subr.bf16.mxu0 0
      %2123 = vmatpush1.bf16.msra.mxu0 0
      %2124 = vmatprep.subr.bf16.mxu0 0
      %2125 = vmatpush1.bf16.msra.mxu0 0
      %2126 = vmatprep.subr.bf16.mxu0 0
      %2127 = vmatpush1.bf16.msra.mxu0 %v2110
      %2128 = vmatprep.subr.bf16.mxu0 0
      %2129 = vmatpush2.bf16.msra.mxu0 0
      %2130 = vmatprep.subr.bf16.mxu0 0
      %2131 = vmatpush2.bf16.msra.mxu0 0
      %2132 = vmatprep.subr.bf16.mxu0 0
      %2133 = vmatpush2.bf16.msra.mxu0 0
      %2134 = vmatprep.subr.bf16.mxu0 0
      %2135 = vmatpush2.bf16.msra.mxu0 0
      %2136 = vmatprep.subr.bf16.mxu0 0
      %2137 = vmatpush2.bf16.msra.mxu0 0
      %2138 = vmatprep.subr.bf16.mxu0 0
      %2139 = vmatpush2.bf16.msra.mxu0 0
      %2140 = vmatprep.subr.bf16.mxu0 0
      %2141 = vmatpush2.bf16.msra.mxu0 0
      %2142 = vmatprep.subr.bf16.mxu0 0
      %2143 = vmatpush2.bf16.msra.mxu0 0
      %2144 = vmatprep.mubr.bf16.mxu0 0
      %2145 = vmatmul.mubr.bf16.gmra.mxu0 %v578
      %v2146 = vpop.f32.mrf.mxu0
      %v2147 = vadd.f32 0.0, %v2146
      %v2148 = vpop.f32.mrf.mxu0
      %v2149 = vpop.f32.mrf.mxu0
      %v2150 = vpop.f32.mrf.mxu0
      %2151 = vdwg.mxu0
      %v2154 = vunpack.c.l.b16 %v2101
      %v2155 = vunpack.c.l.b16 %v2102
      %v2156 = vpack.c.b16 %v2155, %v2154
      %2158 = vmatprep.subr.bf16.mxu0 0
      %2159 = vmatpush1.bf16.msra.mxu0 0
      %2160 = vmatprep.subr.bf16.mxu0 0
      %2161 = vmatpush1.bf16.msra.mxu0 0
      %2162 = vmatprep.subr.bf16.mxu0 0
      %2163 = vmatpush1.bf16.msra.mxu0 0
      %2164 = vmatprep.subr.bf16.mxu0 0
      %2165 = vmatpush1.bf16.msra.mxu0 0
      %2166 = vmatprep.subr.bf16.mxu0 0
      %2167 = vmatpush1.bf16.msra.mxu0 0
      %2168 = vmatprep.subr.bf16.mxu0 0
      %2169 = vmatpush1.bf16.msra.mxu0 0
      %2170 = vmatprep.subr.bf16.mxu0 0
      %2171 = vmatpush1.bf16.msra.mxu0 0
      %2172 = vmatprep.subr.bf16.mxu0 0
      %2173 = vmatpush1.bf16.msra.mxu0 %v2156
      %2174 = vmatprep.subr.bf16.mxu0 0
      %2175 = vmatpush2.bf16.msra.mxu0 0
      %2176 = vmatprep.subr.bf16.mxu0 0
      %2177 = vmatpush2.bf16.msra.mxu0 0
      %2178 = vmatprep.subr.bf16.mxu0 0
      %2179 = vmatpush2.bf16.msra.mxu0 0
      %2180 = vmatprep.subr.bf16.mxu0 0
      %2181 = vmatpush2.bf16.msra.mxu0 0
      %2182 = vmatprep.subr.bf16.mxu0 0
      %2183 = vmatpush2.bf16.msra.mxu0 0
      %2184 = vmatprep.subr.bf16.mxu0 0
      %2185 = vmatpush2.bf16.msra.mxu0 0
      %2186 = vmatprep.subr.bf16.mxu0 0
      %2187 = vmatpush2.bf16.msra.mxu0 0
      %2188 = vmatprep.subr.bf16.mxu0 0
      %2189 = vmatpush2.bf16.msra.mxu0 0
      %2190 = vmatprep.mubr.bf16.mxu0 0
      %2191 = vmatmul.mubr.bf16.gmra.mxu0 %v453
      %v2192 = vpop.f32.mrf.mxu0
      %v2193 = vadd.f32 %v2147, %v2192
      %v2194 = vpop.f32.mrf.mxu0
      %v2195 = vpop.f32.mrf.mxu0
      %v2196 = vpop.f32.mrf.mxu0
      %2197 = vdwg.mxu0
      %v2198 = vld [vmem:[%s562] sm:$0xf]
      %v2199 = vld [vmem:[%s562 + $0x4] sm:$0xf]
      %v2202 = vunpack.c.l.b16 %v2198
      %v2203 = vunpack.c.l.b16 %v2199
      %v2204 = vpack.c.b16 %v2203, %v2202
      %2206 = vmatprep.subr.bf16.mxu0 0
      %2207 = vmatpush1.bf16.msra.mxu0 0
      %2208 = vmatprep.subr.bf16.mxu0 0
      %2209 = vmatpush1.bf16.msra.mxu0 0
      %2210 = vmatprep.subr.bf16.mxu0 0
      %2211 = vmatpush1.bf16.msra.mxu0 0
      %2212 = vmatprep.subr.bf16.mxu0 0
      %2213 = vmatpush1.bf16.msra.mxu0 0
      %2214 = vmatprep.subr.bf16.mxu0 0
      %2215 = vmatpush1.bf16.msra.mxu0 0
      %2216 = vmatprep.subr.bf16.mxu0 0
      %2217 = vmatpush1.bf16.msra.mxu0 0
      %2218 = vmatprep.subr.bf16.mxu0 0
      %2219 = vmatpush1.bf16.msra.mxu0 0
      %2220 = vmatprep.subr.bf16.mxu0 0
      %2221 = vmatpush1.bf16.msra.mxu0 %v2204
      %2222 = vmatprep.subr.bf16.mxu0 0
      %2223 = vmatpush2.bf16.msra.mxu0 0
      %2224 = vmatprep.subr.bf16.mxu0 0
      %2225 = vmatpush2.bf16.msra.mxu0 0
      %2226 = vmatprep.subr.bf16.mxu0 0
      %2227 = vmatpush2.bf16.msra.mxu0 0
      %2228 = vmatprep.subr.bf16.mxu0 0
      %2229 = vmatpush2.bf16.msra.mxu0 0
      %2230 = vmatprep.subr.bf16.mxu0 0
      %2231 = vmatpush2.bf16.msra.mxu0 0
      %2232 = vmatprep.subr.bf16.mxu0 0
      %2233 = vmatpush2.bf16.msra.mxu0 0
      %2234 = vmatprep.subr.bf16.mxu0 0
      %2235 = vmatpush2.bf16.msra.mxu0 0
      %2236 = vmatprep.subr.bf16.mxu0 0
      %2237 = vmatpush2.bf16.msra.mxu0 0
      %2238 = vmatprep.mubr.bf16.mxu0 0
      %2239 = vmatmul.mubr.bf16.gmra.mxu0 %v1048
      %v2240 = vpop.f32.mrf.mxu0
      %v2241 = vadd.f32 0.0, %v2240
      %v2242 = vpop.f32.mrf.mxu0
      %v2243 = vpop.f32.mrf.mxu0
      %v2244 = vpop.f32.mrf.mxu0
      %2245 = vdwg.mxu0
      %v2246 = vadd.f32 %v2193, %v2241
      %v2247 = vld [vmem:[%s565] sm:$0xf]
      %v2248 = vld [vmem:[%s565 + $0x4] sm:$0xf]
      %v2251 = vunpack.c.l.b16 %v2247
      %v2252 = vunpack.c.l.b16 %v2248
      %v2253 = vpack.c.b16 %v2252, %v2251
      %2255 = vmatprep.subr.bf16.mxu0 0
      %2256 = vmatpush1.bf16.msra.mxu0 0
      %2257 = vmatprep.subr.bf16.mxu0 0
      %2258 = vmatpush1.bf16.msra.mxu0 0
      %2259 = vmatprep.subr.bf16.mxu0 0
      %2260 = vmatpush1.bf16.msra.mxu0 0
      %2261 = vmatprep.subr.bf16.mxu0 0
      %2262 = vmatpush1.bf16.msra.mxu0 0
      %2263 = vmatprep.subr.bf16.mxu0 0
      %2264 = vmatpush1.bf16.msra.mxu0 0
      %2265 = vmatprep.subr.bf16.mxu0 0
      %2266 = vmatpush1.bf16.msra.mxu0 0
      %2267 = vmatprep.subr.bf16.mxu0 0
      %2268 = vmatpush1.bf16.msra.mxu0 0
      %2269 = vmatprep.subr.bf16.mxu0 0
      %2270 = vmatpush1.bf16.msra.mxu0 %v2253
      %2271 = vmatprep.subr.bf16.mxu0 0
      %2272 = vmatpush2.bf16.msra.mxu0 0
      %2273 = vmatprep.subr.bf16.mxu0 0
      %2274 = vmatpush2.bf16.msra.mxu0 0
      %2275 = vmatprep.subr.bf16.mxu0 0
      %2276 = vmatpush2.bf16.msra.mxu0 0
      %2277 = vmatprep.subr.bf16.mxu0 0
      %2278 = vmatpush2.bf16.msra.mxu0 0
      %2279 = vmatprep.subr.bf16.mxu0 0
      %2280 = vmatpush2.bf16.msra.mxu0 0
      %2281 = vmatprep.subr.bf16.mxu0 0
      %2282 = vmatpush2.bf16.msra.mxu0 0
      %2283 = vmatprep.subr.bf16.mxu0 0
      %2284 = vmatpush2.bf16.msra.mxu0 0
      %2285 = vmatprep.subr.bf16.mxu0 0
      %2286 = vmatpush2.bf16.msra.mxu0 0
      %2287 = vmatprep.mubr.bf16.mxu0 0
      %2288 = vmatmul.mubr.bf16.gmra.mxu0 %v1371
      %v2289 = vpop.f32.mrf.mxu0
      %v2290 = vadd.f32 0.0, %v2289
      %v2291 = vpop.f32.mrf.mxu0
      %v2292 = vpop.f32.mrf.mxu0
      %v2293 = vpop.f32.mrf.mxu0
      %2294 = vdwg.mxu0
      %v2295 = vadd.f32 %v2246, %v2290
      %v2296 = vld [vmem:[%s6] sm:$0x1]
      %v2298 = vlaneseq
      %v2299 = vshrl.u32 %v2298, 7
      %v2300 = vsub.s32 0, %v2299
      %v2301 = vrot.slane %v2296, %v2300
      %v2303 = vadd.f32 %v2295, %v2301
      %v2305 = vcombine.high %v2303, %v2303
      %v2307 = vunpack.c.l.s4 1966171168
      %v2308 = vunpack.c.0.s8 %v2307
      %v2309 = vlaneseq
      %v2310 = vshrl.u32 %v2309, 7
      %v2311 = vsub.s32 %v2308, %v2310
      %v2312 = vrot.slane %v2303, %v2311
      %v2314 = vunpack.c.l.s4 1966171168
      %v2315 = vunpack.c.0.s8 %v2314
      %v2316 = vlaneseq
      %v2317 = vshrl.u32 %v2316, 7
      %v2318 = vsub.s32 %v2315, %v2317
      %v2319 = vrot.slane %v2305, %v2318
      %v2320 = vcombine.high %v2312, %v2312
      %v2321 = vcombine.high %v2319, %v2319
      %v2323 = vunpack.c.l.s4 1966171168
      %v2324 = vunpack.c.0.s8 %v2323
      %v2325 = vlaneseq
      %v2326 = vshrl.u32 %v2325, 7
      %v2327 = vsub.s32 %v2324, %v2326
      %v2328 = vrot.slane %v2312, %v2327
      %v2330 = vunpack.c.l.s4 1966171168
      %v2331 = vunpack.c.0.s8 %v2330
      %v2332 = vlaneseq
      %v2333 = vshrl.u32 %v2332, 7
      %v2334 = vsub.s32 %v2331, %v2333
      %v2335 = vrot.slane %v2319, %v2334
      %v2337 = vunpack.c.l.s4 1966171168
      %v2338 = vunpack.c.0.s8 %v2337
      %v2339 = vlaneseq
      %v2340 = vshrl.u32 %v2339, 7
      %v2341 = vsub.s32 %v2338, %v2340
      %v2342 = vrot.slane %v2320, %v2341
      %v2344 = vunpack.c.l.s4 1966171168
      %v2345 = vunpack.c.0.s8 %v2344
      %v2346 = vlaneseq
      %v2347 = vshrl.u32 %v2346, 7
      %v2348 = vsub.s32 %v2345, %v2347
      %v2349 = vrot.slane %v2321, %v2348
      %v2350 = vcombine.high %v2328, %v2328
      %v2351 = vcombine.high %v2335, %v2335
      %v2352 = vcombine.high %v2342, %v2342
      %v2353 = vcombine.high %v2349, %v2349
      %2362 = vst.msk [vmem:[%s2091 + $0x1] sm:$0x1] %vm553, %v2328
      %2363 = vst.msk [vmem:[%s2091 + $0x11] sm:$0x1] %vm553, %v2342
      %2364 = vst.msk [vmem:[%s2091 + $0x21] sm:$0x1] %vm553, %v2350
      %2365 = vst.msk [vmem:[%s2091 + $0x31] sm:$0x1] %vm553, %v2352
      %2366 = vst.msk [vmem:[%s2091 + $0x41] sm:$0x1] %vm553, %v2335
      %2367 = vst.msk [vmem:[%s2091 + $0x51] sm:$0x1] %vm553, %v2349
      %2368 = vst.msk [vmem:[%s2091 + $0x61] sm:$0x1] %vm553, %v2351
      %2369 = vst.msk [vmem:[%s2091 + $0x71] sm:$0x1] %vm553, %v2353
      %s2370 = scalar_lea.vmem %s5, 120
      %v2371 = vld [vmem:[%s2370] sm:$0xf]
      %v2372 = vld [vmem:[%s2370 + $0x4] sm:$0xf]
      %v2373 = vld [vmem:[%s1928] sm:$0xf]
      %v2374 = vld [vmem:[%s1928 + $0x4] sm:$0xf]
      %v2377 = vunpack.c.l.b16 %v2373
      %v2378 = vunpack.c.l.b16 %v2374
      %v2379 = vpack.c.b16 %v2378, %v2377
      %2381 = vmatprep.subr.bf16.mxu0 0
      %2382 = vmatpush1.bf16.msra.mxu0 0
      %2383 = vmatprep.subr.bf16.mxu0 0
      %2384 = vmatpush1.bf16.msra.mxu0 0
      %2385 = vmatprep.subr.bf16.mxu0 0
      %2386 = vmatpush1.bf16.msra.mxu0 0
      %2387 = vmatprep.subr.bf16.mxu0 0
      %2388 = vmatpush1.bf16.msra.mxu0 0
      %2389 = vmatprep.subr.bf16.mxu0 0
      %2390 = vmatpush1.bf16.msra.mxu0 0
      %2391 = vmatprep.subr.bf16.mxu0 0
      %2392 = vmatpush1.bf16.msra.mxu0 0
      %2393 = vmatprep.subr.bf16.mxu0 0
      %2394 = vmatpush1.bf16.msra.mxu0 0
      %2395 = vmatprep.subr.bf16.mxu0 0
      %2396 = vmatpush1.bf16.msra.mxu0 %v2379
      %2397 = vmatprep.subr.bf16.mxu0 0
      %2398 = vmatpush2.bf16.msra.mxu0 0
      %2399 = vmatprep.subr.bf16.mxu0 0
      %2400 = vmatpush2.bf16.msra.mxu0 0
      %2401 = vmatprep.subr.bf16.mxu0 0
      %2402 = vmatpush2.bf16.msra.mxu0 0
      %2403 = vmatprep.subr.bf16.mxu0 0
      %2404 = vmatpush2.bf16.msra.mxu0 0
      %2405 = vmatprep.subr.bf16.mxu0 0
      %2406 = vmatpush2.bf16.msra.mxu0 0
      %2407 = vmatprep.subr.bf16.mxu0 0
      %2408 = vmatpush2.bf16.msra.mxu0 0
      %2409 = vmatprep.subr.bf16.mxu0 0
      %2410 = vmatpush2.bf16.msra.mxu0 0
      %2411 = vmatprep.subr.bf16.mxu0 0
      %2412 = vmatpush2.bf16.msra.mxu0 0
      %2413 = vmatprep.mubr.bf16.mxu0 0
      %2414 = vmatmul.mubr.bf16.gmra.mxu0 %v578
      %v2415 = vpop.f32.mrf.mxu0
      %v2416 = vadd.f32 0.0, %v2415
      %v2417 = vpop.f32.mrf.mxu0
      %v2418 = vpop.f32.mrf.mxu0
      %v2419 = vpop.f32.mrf.mxu0
      %2420 = vdwg.mxu0
      %v2423 = vunpack.c.l.b16 %v2371
      %v2424 = vunpack.c.l.b16 %v2372
      %v2425 = vpack.c.b16 %v2424, %v2423
      %2427 = vmatprep.subr.bf16.mxu0 0
      %2428 = vmatpush1.bf16.msra.mxu0 0
      %2429 = vmatprep.subr.bf16.mxu0 0
      %2430 = vmatpush1.bf16.msra.mxu0 0
      %2431 = vmatprep.subr.bf16.mxu0 0
      %2432 = vmatpush1.bf16.msra.mxu0 0
      %2433 = vmatprep.subr.bf16.mxu0 0
      %2434 = vmatpush1.bf16.msra.mxu0 0
      %2435 = vmatprep.subr.bf16.mxu0 0
      %2436 = vmatpush1.bf16.msra.mxu0 0
      %2437 = vmatprep.subr.bf16.mxu0 0
      %2438 = vmatpush1.bf16.msra.mxu0 0
      %2439 = vmatprep.subr.bf16.mxu0 0
      %2440 = vmatpush1.bf16.msra.mxu0 0
      %2441 = vmatprep.subr.bf16.mxu0 0
      %2442 = vmatpush1.bf16.msra.mxu0 %v2425
      %2443 = vmatprep.subr.bf16.mxu0 0
      %2444 = vmatpush2.bf16.msra.mxu0 0
      %2445 = vmatprep.subr.bf16.mxu0 0
      %2446 = vmatpush2.bf16.msra.mxu0 0
      %2447 = vmatprep.subr.bf16.mxu0 0
      %2448 = vmatpush2.bf16.msra.mxu0 0
      %2449 = vmatprep.subr.bf16.mxu0 0
      %2450 = vmatpush2.bf16.msra.mxu0 0
      %2451 = vmatprep.subr.bf16.mxu0 0
      %2452 = vmatpush2.bf16.msra.mxu0 0
      %2453 = vmatprep.subr.bf16.mxu0 0
      %2454 = vmatpush2.bf16.msra.mxu0 0
      %2455 = vmatprep.subr.bf16.mxu0 0
      %2456 = vmatpush2.bf16.msra.mxu0 0
      %2457 = vmatprep.subr.bf16.mxu0 0
      %2458 = vmatpush2.bf16.msra.mxu0 0
      %2459 = vmatprep.mubr.bf16.mxu0 0
      %2460 = vmatmul.mubr.bf16.gmra.mxu0 %v453
      %v2461 = vpop.f32.mrf.mxu0
      %v2462 = vadd.f32 %v2416, %v2461
      %v2463 = vpop.f32.mrf.mxu0
      %v2464 = vpop.f32.mrf.mxu0
      %v2465 = vpop.f32.mrf.mxu0
      %2466 = vdwg.mxu0
      %v2467 = vld [vmem:[%s740] sm:$0xf]
      %v2468 = vld [vmem:[%s740 + $0x4] sm:$0xf]
      %v2471 = vunpack.c.l.b16 %v2467
      %v2472 = vunpack.c.l.b16 %v2468
      %v2473 = vpack.c.b16 %v2472, %v2471
      %2475 = vmatprep.subr.bf16.mxu0 0
      %2476 = vmatpush1.bf16.msra.mxu0 0
      %2477 = vmatprep.subr.bf16.mxu0 0
      %2478 = vmatpush1.bf16.msra.mxu0 0
      %2479 = vmatprep.subr.bf16.mxu0 0
      %2480 = vmatpush1.bf16.msra.mxu0 0
      %2481 = vmatprep.subr.bf16.mxu0 0
      %2482 = vmatpush1.bf16.msra.mxu0 0
      %2483 = vmatprep.subr.bf16.mxu0 0
      %2484 = vmatpush1.bf16.msra.mxu0 0
      %2485 = vmatprep.subr.bf16.mxu0 0
      %2486 = vmatpush1.bf16.msra.mxu0 0
      %2487 = vmatprep.subr.bf16.mxu0 0
      %2488 = vmatpush1.bf16.msra.mxu0 0
      %2489 = vmatprep.subr.bf16.mxu0 0
      %2490 = vmatpush1.bf16.msra.mxu0 %v2473
      %2491 = vmatprep.subr.bf16.mxu0 0
      %2492 = vmatpush2.bf16.msra.mxu0 0
      %2493 = vmatprep.subr.bf16.mxu0 0
      %2494 = vmatpush2.bf16.msra.mxu0 0
      %2495 = vmatprep.subr.bf16.mxu0 0
      %2496 = vmatpush2.bf16.msra.mxu0 0
      %2497 = vmatprep.subr.bf16.mxu0 0
      %2498 = vmatpush2.bf16.msra.mxu0 0
      %2499 = vmatprep.subr.bf16.mxu0 0
      %2500 = vmatpush2.bf16.msra.mxu0 0
      %2501 = vmatprep.subr.bf16.mxu0 0
      %2502 = vmatpush2.bf16.msra.mxu0 0
      %2503 = vmatprep.subr.bf16.mxu0 0
      %2504 = vmatpush2.bf16.msra.mxu0 0
      %2505 = vmatprep.subr.bf16.mxu0 0
      %2506 = vmatpush2.bf16.msra.mxu0 0
      %2507 = vmatprep.mubr.bf16.mxu0 0
      %2508 = vmatmul.mubr.bf16.gmra.mxu0 %v1048
      %v2509 = vpop.f32.mrf.mxu0
      %v2510 = vadd.f32 0.0, %v2509
      %v2511 = vpop.f32.mrf.mxu0
      %v2512 = vpop.f32.mrf.mxu0
      %v2513 = vpop.f32.mrf.mxu0
      %2514 = vdwg.mxu0
      %v2515 = vadd.f32 %v2462, %v2510
      %v2516 = vld [vmem:[%s436] sm:$0xf]
      %v2517 = vld [vmem:[%s436 + $0x4] sm:$0xf]
      %v2520 = vunpack.c.l.b16 %v2516
      %v2521 = vunpack.c.l.b16 %v2517
      %v2522 = vpack.c.b16 %v2521, %v2520
      %2524 = vmatprep.subr.bf16.mxu0 0
      %2525 = vmatpush1.bf16.msra.mxu0 0
      %2526 = vmatprep.subr.bf16.mxu0 0
      %2527 = vmatpush1.bf16.msra.mxu0 0
      %2528 = vmatprep.subr.bf16.mxu0 0
      %2529 = vmatpush1.bf16.msra.mxu0 0
      %2530 = vmatprep.subr.bf16.mxu0 0
      %2531 = vmatpush1.bf16.msra.mxu0 0
      %2532 = vmatprep.subr.bf16.mxu0 0
      %2533 = vmatpush1.bf16.msra.mxu0 0
      %2534 = vmatprep.subr.bf16.mxu0 0
      %2535 = vmatpush1.bf16.msra.mxu0 0
      %2536 = vmatprep.subr.bf16.mxu0 0
      %2537 = vmatpush1.bf16.msra.mxu0 0
      %2538 = vmatprep.subr.bf16.mxu0 0
      %2539 = vmatpush1.bf16.msra.mxu0 %v2522
      %2540 = vmatprep.subr.bf16.mxu0 0
      %2541 = vmatpush2.bf16.msra.mxu0 0
      %2542 = vmatprep.subr.bf16.mxu0 0
      %2543 = vmatpush2.bf16.msra.mxu0 0
      %2544 = vmatprep.subr.bf16.mxu0 0
      %2545 = vmatpush2.bf16.msra.mxu0 0
      %2546 = vmatprep.subr.bf16.mxu0 0
      %2547 = vmatpush2.bf16.msra.mxu0 0
      %2548 = vmatprep.subr.bf16.mxu0 0
      %2549 = vmatpush2.bf16.msra.mxu0 0
      %2550 = vmatprep.subr.bf16.mxu0 0
      %2551 = vmatpush2.bf16.msra.mxu0 0
      %2552 = vmatprep.subr.bf16.mxu0 0
      %2553 = vmatpush2.bf16.msra.mxu0 0
      %2554 = vmatprep.subr.bf16.mxu0 0
      %2555 = vmatpush2.bf16.msra.mxu0 0
      %2556 = vmatprep.mubr.bf16.mxu0 0
      %2557 = vmatmul.mubr.bf16.gmra.mxu0 %v1371
      %v2558 = vpop.f32.mrf.mxu0
      %v2559 = vadd.f32 0.0, %v2558
      %v2560 = vpop.f32.mrf.mxu0
      %v2561 = vpop.f32.mrf.mxu0
      %v2562 = vpop.f32.mrf.mxu0
      %2563 = vdwg.mxu0
      %v2564 = vadd.f32 %v2515, %v2559
      %v2565 = vld [vmem:[%s6] sm:$0x1]
      %v2567 = vlaneseq
      %v2568 = vshrl.u32 %v2567, 7
      %v2569 = vsub.s32 0, %v2568
      %v2570 = vrot.slane %v2565, %v2569
      %v2572 = vadd.f32 %v2564, %v2570
      %v2574 = vcombine.high %v2572, %v2572
      %v2576 = vunpack.c.l.s4 1966171168
      %v2577 = vunpack.c.0.s8 %v2576
      %v2578 = vlaneseq
      %v2579 = vshrl.u32 %v2578, 7
      %v2580 = vsub.s32 %v2577, %v2579
      %v2581 = vrot.slane %v2572, %v2580
      %v2583 = vunpack.c.l.s4 1966171168
      %v2584 = vunpack.c.0.s8 %v2583
      %v2585 = vlaneseq
      %v2586 = vshrl.u32 %v2585, 7
      %v2587 = vsub.s32 %v2584, %v2586
      %v2588 = vrot.slane %v2574, %v2587
      %v2589 = vcombine.high %v2581, %v2581
      %v2590 = vcombine.high %v2588, %v2588
      %v2592 = vunpack.c.l.s4 1966171168
      %v2593 = vunpack.c.0.s8 %v2592
      %v2594 = vlaneseq
      %v2595 = vshrl.u32 %v2594, 7
      %v2596 = vsub.s32 %v2593, %v2595
      %v2597 = vrot.slane %v2581, %v2596
      %v2599 = vunpack.c.l.s4 1966171168
      %v2600 = vunpack.c.0.s8 %v2599
      %v2601 = vlaneseq
      %v2602 = vshrl.u32 %v2601, 7
      %v2603 = vsub.s32 %v2600, %v2602
      %v2604 = vrot.slane %v2588, %v2603
      %v2606 = vunpack.c.l.s4 1966171168
      %v2607 = vunpack.c.0.s8 %v2606
      %v2608 = vlaneseq
      %v2609 = vshrl.u32 %v2608, 7
      %v2610 = vsub.s32 %v2607, %v2609
      %v2611 = vrot.slane %v2589, %v2610
      %v2613 = vunpack.c.l.s4 1966171168
      %v2614 = vunpack.c.0.s8 %v2613
      %v2615 = vlaneseq
      %v2616 = vshrl.u32 %v2615, 7
      %v2617 = vsub.s32 %v2614, %v2616
      %v2618 = vrot.slane %v2590, %v2617
      %v2619 = vcombine.high %v2597, %v2597
      %v2620 = vcombine.high %v2604, %v2604
      %v2621 = vcombine.high %v2611, %v2611
      %v2622 = vcombine.high %v2618, %v2618
      %2631 = vst.msk [vmem:[%s2091 + $0x2] sm:$0x1] %vm553, %v2597
      %2632 = vst.msk [vmem:[%s2091 + $0x12] sm:$0x1] %vm553, %v2611
      %2633 = vst.msk [vmem:[%s2091 + $0x22] sm:$0x1] %vm553, %v2619
      %2634 = vst.msk [vmem:[%s2091 + $0x32] sm:$0x1] %vm553, %v2621
      %2635 = vst.msk [vmem:[%s2091 + $0x42] sm:$0x1] %vm553, %v2604
      %2636 = vst.msk [vmem:[%s2091 + $0x52] sm:$0x1] %vm553, %v2618
      %2637 = vst.msk [vmem:[%s2091 + $0x62] sm:$0x1] %vm553, %v2620
      %2638 = vst.msk [vmem:[%s2091 + $0x72] sm:$0x1] %vm553, %v2622
      %v2639 = vld [vmem:[%s2100] sm:$0xf]
      %v2640 = vld [vmem:[%s2100 + $0x4] sm:$0xf]
      %v2641 = vld [vmem:[%s562] sm:$0xf]
      %v2642 = vld [vmem:[%s562 + $0x4] sm:$0xf]
      %v2645 = vunpack.c.l.b16 %v2641
      %v2646 = vunpack.c.l.b16 %v2642
      %v2647 = vpack.c.b16 %v2646, %v2645
      %2649 = vmatprep.subr.bf16.mxu0 0
      %2650 = vmatpush1.bf16.msra.mxu0 0
      %2651 = vmatprep.subr.bf16.mxu0 0
      %2652 = vmatpush1.bf16.msra.mxu0 0
      %2653 = vmatprep.subr.bf16.mxu0 0
      %2654 = vmatpush1.bf16.msra.mxu0 0
      %2655 = vmatprep.subr.bf16.mxu0 0
      %2656 = vmatpush1.bf16.msra.mxu0 0
      %2657 = vmatprep.subr.bf16.mxu0 0
      %2658 = vmatpush1.bf16.msra.mxu0 0
      %2659 = vmatprep.subr.bf16.mxu0 0
      %2660 = vmatpush1.bf16.msra.mxu0 0
      %2661 = vmatprep.subr.bf16.mxu0 0
      %2662 = vmatpush1.bf16.msra.mxu0 0
      %2663 = vmatprep.subr.bf16.mxu0 0
      %2664 = vmatpush1.bf16.msra.mxu0 %v2647
      %2665 = vmatprep.subr.bf16.mxu0 0
      %2666 = vmatpush2.bf16.msra.mxu0 0
      %2667 = vmatprep.subr.bf16.mxu0 0
      %2668 = vmatpush2.bf16.msra.mxu0 0
      %2669 = vmatprep.subr.bf16.mxu0 0
      %2670 = vmatpush2.bf16.msra.mxu0 0
      %2671 = vmatprep.subr.bf16.mxu0 0
      %2672 = vmatpush2.bf16.msra.mxu0 0
      %2673 = vmatprep.subr.bf16.mxu0 0
      %2674 = vmatpush2.bf16.msra.mxu0 0
      %2675 = vmatprep.subr.bf16.mxu0 0
      %2676 = vmatpush2.bf16.msra.mxu0 0
      %2677 = vmatprep.subr.bf16.mxu0 0
      %2678 = vmatpush2.bf16.msra.mxu0 0
      %2679 = vmatprep.subr.bf16.mxu0 0
      %2680 = vmatpush2.bf16.msra.mxu0 0
      %2681 = vmatprep.mubr.bf16.mxu0 0
      %2682 = vmatmul.mubr.bf16.gmra.mxu0 %v1371
      %v2683 = vpop.f32.mrf.mxu0
      %v2684 = vadd.f32 0.0, %v2683
      %v2685 = vpop.f32.mrf.mxu0
      %v2686 = vpop.f32.mrf.mxu0
      %v2687 = vpop.f32.mrf.mxu0
      %2688 = vdwg.mxu0
      %v2691 = vunpack.c.l.b16 %v2639
      %v2692 = vunpack.c.l.b16 %v2640
      %v2693 = vpack.c.b16 %v2692, %v2691
      %2695 = vmatprep.subr.bf16.mxu0 0
      %2696 = vmatpush1.bf16.msra.mxu0 0
      %2697 = vmatprep.subr.bf16.mxu0 0
      %2698 = vmatpush1.bf16.msra.mxu0 0
      %2699 = vmatprep.subr.bf16.mxu0 0
      %2700 = vmatpush1.bf16.msra.mxu0 0
      %2701 = vmatprep.subr.bf16.mxu0 0
      %2702 = vmatpush1.bf16.msra.mxu0 0
      %2703 = vmatprep.subr.bf16.mxu0 0
      %2704 = vmatpush1.bf16.msra.mxu0 0
      %2705 = vmatprep.subr.bf16.mxu0 0
      %2706 = vmatpush1.bf16.msra.mxu0 0
      %2707 = vmatprep.subr.bf16.mxu0 0
      %2708 = vmatpush1.bf16.msra.mxu0 0
      %2709 = vmatprep.subr.bf16.mxu0 0
      %2710 = vmatpush1.bf16.msra.mxu0 %v2693
      %2711 = vmatprep.subr.bf16.mxu0 0
      %2712 = vmatpush2.bf16.msra.mxu0 0
      %2713 = vmatprep.subr.bf16.mxu0 0
      %2714 = vmatpush2.bf16.msra.mxu0 0
      %2715 = vmatprep.subr.bf16.mxu0 0
      %2716 = vmatpush2.bf16.msra.mxu0 0
      %2717 = vmatprep.subr.bf16.mxu0 0
      %2718 = vmatpush2.bf16.msra.mxu0 0
      %2719 = vmatprep.subr.bf16.mxu0 0
      %2720 = vmatpush2.bf16.msra.mxu0 0
      %2721 = vmatprep.subr.bf16.mxu0 0
      %2722 = vmatpush2.bf16.msra.mxu0 0
      %2723 = vmatprep.subr.bf16.mxu0 0
      %2724 = vmatpush2.bf16.msra.mxu0 0
      %2725 = vmatprep.subr.bf16.mxu0 0
      %2726 = vmatpush2.bf16.msra.mxu0 0
      %2727 = vmatprep.mubr.bf16.mxu0 0
      %2728 = vmatmul.mubr.bf16.gmra.mxu0 %v578
      %v2729 = vpop.f32.mrf.mxu0
      %v2730 = vadd.f32 %v2684, %v2729
      %v2731 = vpop.f32.mrf.mxu0
      %v2732 = vpop.f32.mrf.mxu0
      %v2733 = vpop.f32.mrf.mxu0
      %2734 = vdwg.mxu0
      %v2735 = vld [vmem:[%s6] sm:$0x1]
      %v2737 = vlaneseq
      %v2738 = vshrl.u32 %v2737, 7
      %v2739 = vsub.s32 0, %v2738
      %v2740 = vrot.slane %v2735, %v2739
      %v2742 = vadd.f32 %v2730, %v2740
      %v2744 = vcombine.high %v2742, %v2742
      %v2746 = vunpack.c.l.s4 1966171168
      %v2747 = vunpack.c.0.s8 %v2746
      %v2748 = vlaneseq
      %v2749 = vshrl.u32 %v2748, 7
      %v2750 = vsub.s32 %v2747, %v2749
      %v2751 = vrot.slane %v2742, %v2750
      %v2753 = vunpack.c.l.s4 1966171168
      %v2754 = vunpack.c.0.s8 %v2753
      %v2755 = vlaneseq
      %v2756 = vshrl.u32 %v2755, 7
      %v2757 = vsub.s32 %v2754, %v2756
      %v2758 = vrot.slane %v2744, %v2757
      %v2759 = vcombine.high %v2751, %v2751
      %v2760 = vcombine.high %v2758, %v2758
      %v2762 = vunpack.c.l.s4 1966171168
      %v2763 = vunpack.c.0.s8 %v2762
      %v2764 = vlaneseq
      %v2765 = vshrl.u32 %v2764, 7
      %v2766 = vsub.s32 %v2763, %v2765
      %v2767 = vrot.slane %v2751, %v2766
      %v2769 = vunpack.c.l.s4 1966171168
      %v2770 = vunpack.c.0.s8 %v2769
      %v2771 = vlaneseq
      %v2772 = vshrl.u32 %v2771, 7
      %v2773 = vsub.s32 %v2770, %v2772
      %v2774 = vrot.slane %v2758, %v2773
      %v2776 = vunpack.c.l.s4 1966171168
      %v2777 = vunpack.c.0.s8 %v2776
      %v2778 = vlaneseq
      %v2779 = vshrl.u32 %v2778, 7
      %v2780 = vsub.s32 %v2777, %v2779
      %v2781 = vrot.slane %v2759, %v2780
      %v2783 = vunpack.c.l.s4 1966171168
      %v2784 = vunpack.c.0.s8 %v2783
      %v2785 = vlaneseq
      %v2786 = vshrl.u32 %v2785, 7
      %v2787 = vsub.s32 %v2784, %v2786
      %v2788 = vrot.slane %v2760, %v2787
      %v2789 = vcombine.high %v2767, %v2767
      %v2790 = vcombine.high %v2774, %v2774
      %v2791 = vcombine.high %v2781, %v2781
      %v2792 = vcombine.high %v2788, %v2788
      %2801 = vst.msk [vmem:[%s2091 + $0x3] sm:$0x1] %vm553, %v2767
      %2802 = vst.msk [vmem:[%s2091 + $0x13] sm:$0x1] %vm553, %v2781
      %2803 = vst.msk [vmem:[%s2091 + $0x23] sm:$0x1] %vm553, %v2789
      %2804 = vst.msk [vmem:[%s2091 + $0x33] sm:$0x1] %vm553, %v2791
      %2805 = vst.msk [vmem:[%s2091 + $0x43] sm:$0x1] %vm553, %v2774
      %2806 = vst.msk [vmem:[%s2091 + $0x53] sm:$0x1] %vm553, %v2788
      %2807 = vst.msk [vmem:[%s2091 + $0x63] sm:$0x1] %vm553, %v2790
      %2808 = vst.msk [vmem:[%s2091 + $0x73] sm:$0x1] %vm553, %v2792
      %v2809 = vld [vmem:[%s1032] sm:$0xf]
      %v2810 = vld [vmem:[%s1032 + $0x4] sm:$0xf]
      %v2811 = vld [vmem:[%s6] sm:$0x1]
      %v2813 = vlaneseq
      %v2814 = vshrl.u32 %v2813, 7
      %v2815 = vsub.s32 0, %v2814
      %v2816 = vrot.slane %v2811, %v2815
      %v2820 = vunpack.c.l.b16 %v2809
      %v2821 = vunpack.c.l.b16 %v2810
      %v2822 = vpack.c.b16 %v2821, %v2820
      %2824 = vmatprep.subr.bf16.mxu0 0
      %2825 = vmatpush1.bf16.msra.mxu0 0
      %2826 = vmatprep.subr.bf16.mxu0 0
      %2827 = vmatpush1.bf16.msra.mxu0 0
      %2828 = vmatprep.subr.bf16.mxu0 0
      %2829 = vmatpush1.bf16.msra.mxu0 0
      %2830 = vmatprep.subr.bf16.mxu0 0
      %2831 = vmatpush1.bf16.msra.mxu0 0
      %2832 = vmatprep.subr.bf16.mxu0 0
      %2833 = vmatpush1.bf16.msra.mxu0 0
      %2834 = vmatprep.subr.bf16.mxu0 0
      %2835 = vmatpush1.bf16.msra.mxu0 0
      %2836 = vmatprep.subr.bf16.mxu0 0
      %2837 = vmatpush1.bf16.msra.mxu0 0
      %2838 = vmatprep.subr.bf16.mxu0 0
      %2839 = vmatpush1.bf16.msra.mxu0 %v2822
      %2840 = vmatprep.subr.bf16.mxu0 0
      %2841 = vmatpush2.bf16.msra.mxu0 0
      %2842 = vmatprep.subr.bf16.mxu0 0
      %2843 = vmatpush2.bf16.msra.mxu0 0
      %2844 = vmatprep.subr.bf16.mxu0 0
      %2845 = vmatpush2.bf16.msra.mxu0 0
      %2846 = vmatprep.subr.bf16.mxu0 0
      %2847 = vmatpush2.bf16.msra.mxu0 0
      %2848 = vmatprep.subr.bf16.mxu0 0
      %2849 = vmatpush2.bf16.msra.mxu0 0
      %2850 = vmatprep.subr.bf16.mxu0 0
      %2851 = vmatpush2.bf16.msra.mxu0 0
      %2852 = vmatprep.subr.bf16.mxu0 0
      %2853 = vmatpush2.bf16.msra.mxu0 0
      %2854 = vmatprep.subr.bf16.mxu0 0
      %2855 = vmatpush2.bf16.msra.mxu0 0
      %2856 = vmatprep.mubr.bf16.mxu0 0
      %2857 = vmatmul.mubr.bf16.gmra.mxu0 %v1048
      %v2858 = vpop.f32.mrf.mxu0
      %v2859 = vadd.f32 %v2816, %v2858
      %v2860 = vpop.f32.mrf.mxu0
      %v2861 = vpop.f32.mrf.mxu0
      %v2862 = vpop.f32.mrf.mxu0
      %2863 = vdwg.mxu0
      %v2865 = vcombine.high %v2859, %v2859
      %v2867 = vunpack.c.l.s4 1966171168
      %v2868 = vunpack.c.0.s8 %v2867
      %v2869 = vlaneseq
      %v2870 = vshrl.u32 %v2869, 7
      %v2871 = vsub.s32 %v2868, %v2870
      %v2872 = vrot.slane %v2859, %v2871
      %v2874 = vunpack.c.l.s4 1966171168
      %v2875 = vunpack.c.0.s8 %v2874
      %v2876 = vlaneseq
      %v2877 = vshrl.u32 %v2876, 7
      %v2878 = vsub.s32 %v2875, %v2877
      %v2879 = vrot.slane %v2865, %v2878
      %v2880 = vcombine.high %v2872, %v2872
      %v2881 = vcombine.high %v2879, %v2879
      %v2883 = vunpack.c.l.s4 1966171168
      %v2884 = vunpack.c.0.s8 %v2883
      %v2885 = vlaneseq
      %v2886 = vshrl.u32 %v2885, 7
      %v2887 = vsub.s32 %v2884, %v2886
      %v2888 = vrot.slane %v2872, %v2887
      %v2890 = vunpack.c.l.s4 1966171168
      %v2891 = vunpack.c.0.s8 %v2890
      %v2892 = vlaneseq
      %v2893 = vshrl.u32 %v2892, 7
      %v2894 = vsub.s32 %v2891, %v2893
      %v2895 = vrot.slane %v2879, %v2894
      %v2897 = vunpack.c.l.s4 1966171168
      %v2898 = vunpack.c.0.s8 %v2897
      %v2899 = vlaneseq
      %v2900 = vshrl.u32 %v2899, 7
      %v2901 = vsub.s32 %v2898, %v2900
      %v2902 = vrot.slane %v2880, %v2901
      %v2904 = vunpack.c.l.s4 1966171168
      %v2905 = vunpack.c.0.s8 %v2904
      %v2906 = vlaneseq
      %v2907 = vshrl.u32 %v2906, 7
      %v2908 = vsub.s32 %v2905, %v2907
      %v2909 = vrot.slane %v2881, %v2908
      %v2910 = vcombine.high %v2888, %v2888
      %v2911 = vcombine.high %v2895, %v2895
      %v2912 = vcombine.high %v2902, %v2902
      %v2913 = vcombine.high %v2909, %v2909
      %s2922 = scalar_lea.vmem %s277, 12
      %2923 = vst.msk [vmem:[%s2922] sm:$0x1] %vm553, %v2888
      %2924 = vst.msk [vmem:[%s2922 + $0x10] sm:$0x1] %vm553, %v2902
      %2925 = vst.msk [vmem:[%s2922 + $0x20] sm:$0x1] %vm553, %v2910
      %2926 = vst.msk [vmem:[%s2922 + $0x30] sm:$0x1] %vm553, %v2912
      %2927 = vst.msk [vmem:[%s2922 + $0x40] sm:$0x1] %vm553, %v2895
      %2928 = vst.msk [vmem:[%s2922 + $0x50] sm:$0x1] %vm553, %v2909
      %2929 = vst.msk [vmem:[%s2922 + $0x60] sm:$0x1] %vm553, %v2911
      %2930 = vst.msk [vmem:[%s2922 + $0x70] sm:$0x1] %vm553, %v2913
      %v2931 = vld [vmem:[%s1211] sm:$0xf]
      %v2932 = vld [vmem:[%s1211 + $0x4] sm:$0xf]
      %v2933 = vld [vmem:[%s1214] sm:$0xf]
      %v2934 = vld [vmem:[%s1214 + $0x4] sm:$0xf]
      %v2937 = vunpack.c.l.b16 %v2933
      %v2938 = vunpack.c.l.b16 %v2934
      %v2939 = vpack.c.b16 %v2938, %v2937
      %2941 = vmatprep.subr.bf16.mxu0 0
      %2942 = vmatpush1.bf16.msra.mxu0 0
      %2943 = vmatprep.subr.bf16.mxu0 0
      %2944 = vmatpush1.bf16.msra.mxu0 0
      %2945 = vmatprep.subr.bf16.mxu0 0
      %2946 = vmatpush1.bf16.msra.mxu0 0
      %2947 = vmatprep.subr.bf16.mxu0 0
      %2948 = vmatpush1.bf16.msra.mxu0 0
      %2949 = vmatprep.subr.bf16.mxu0 0
      %2950 = vmatpush1.bf16.msra.mxu0 0
      %2951 = vmatprep.subr.bf16.mxu0 0
      %2952 = vmatpush1.bf16.msra.mxu0 0
      %2953 = vmatprep.subr.bf16.mxu0 0
      %2954 = vmatpush1.bf16.msra.mxu0 0
      %2955 = vmatprep.subr.bf16.mxu0 0
      %2956 = vmatpush1.bf16.msra.mxu0 %v2939
      %2957 = vmatprep.subr.bf16.mxu0 0
      %2958 = vmatpush2.bf16.msra.mxu0 0
      %2959 = vmatprep.subr.bf16.mxu0 0
      %2960 = vmatpush2.bf16.msra.mxu0 0
      %2961 = vmatprep.subr.bf16.mxu0 0
      %2962 = vmatpush2.bf16.msra.mxu0 0
      %2963 = vmatprep.subr.bf16.mxu0 0
      %2964 = vmatpush2.bf16.msra.mxu0 0
      %2965 = vmatprep.subr.bf16.mxu0 0
      %2966 = vmatpush2.bf16.msra.mxu0 0
      %2967 = vmatprep.subr.bf16.mxu0 0
      %2968 = vmatpush2.bf16.msra.mxu0 0
      %2969 = vmatprep.subr.bf16.mxu0 0
      %2970 = vmatpush2.bf16.msra.mxu0 0
      %2971 = vmatprep.subr.bf16.mxu0 0
      %2972 = vmatpush2.bf16.msra.mxu0 0
      %2973 = vmatprep.mubr.bf16.mxu0 0
      %2974 = vmatmul.mubr.bf16.gmra.mxu0 %v1371
      %v2975 = vpop.f32.mrf.mxu0
      %v2976 = vadd.f32 0.0, %v2975
      %v2977 = vpop.f32.mrf.mxu0
      %v2978 = vpop.f32.mrf.mxu0
      %v2979 = vpop.f32.mrf.mxu0
      %2980 = vdwg.mxu0
      %v2983 = vunpack.c.l.b16 %v2931
      %v2984 = vunpack.c.l.b16 %v2932
      %v2985 = vpack.c.b16 %v2984, %v2983
      %2987 = vmatprep.subr.bf16.mxu0 0
      %2988 = vmatpush1.bf16.msra.mxu0 0
      %2989 = vmatprep.subr.bf16.mxu0 0
      %2990 = vmatpush1.bf16.msra.mxu0 0
      %2991 = vmatprep.subr.bf16.mxu0 0
      %2992 = vmatpush1.bf16.msra.mxu0 0
      %2993 = vmatprep.subr.bf16.mxu0 0
      %2994 = vmatpush1.bf16.msra.mxu0 0
      %2995 = vmatprep.subr.bf16.mxu0 0
      %2996 = vmatpush1.bf16.msra.mxu0 0
      %2997 = vmatprep.subr.bf16.mxu0 0
      %2998 = vmatpush1.bf16.msra.mxu0 0
      %2999 = vmatprep.subr.bf16.mxu0 0
      %3000 = vmatpush1.bf16.msra.mxu0 0
      %3001 = vmatprep.subr.bf16.mxu0 0
      %3002 = vmatpush1.bf16.msra.mxu0 %v2985
      %3003 = vmatprep.subr.bf16.mxu0 0
      %3004 = vmatpush2.bf16.msra.mxu0 0
      %3005 = vmatprep.subr.bf16.mxu0 0
      %3006 = vmatpush2.bf16.msra.mxu0 0
      %3007 = vmatprep.subr.bf16.mxu0 0
      %3008 = vmatpush2.bf16.msra.mxu0 0
      %3009 = vmatprep.subr.bf16.mxu0 0
      %3010 = vmatpush2.bf16.msra.mxu0 0
      %3011 = vmatprep.subr.bf16.mxu0 0
      %3012 = vmatpush2.bf16.msra.mxu0 0
      %3013 = vmatprep.subr.bf16.mxu0 0
      %3014 = vmatpush2.bf16.msra.mxu0 0
      %3015 = vmatprep.subr.bf16.mxu0 0
      %3016 = vmatpush2.bf16.msra.mxu0 0
      %3017 = vmatprep.subr.bf16.mxu0 0
      %3018 = vmatpush2.bf16.msra.mxu0 0
      %3019 = vmatprep.mubr.bf16.mxu0 0
      %3020 = vmatmul.mubr.bf16.gmra.mxu0 %v1048
      %v3021 = vpop.f32.mrf.mxu0
      %v3022 = vadd.f32 %v2976, %v3021
      %v3023 = vpop.f32.mrf.mxu0
      %v3024 = vpop.f32.mrf.mxu0
      %v3025 = vpop.f32.mrf.mxu0
      %3026 = vdwg.mxu0
      %v3027 = vld [vmem:[%s6] sm:$0x1]
      %v3029 = vlaneseq
      %v3030 = vshrl.u32 %v3029, 7
      %v3031 = vsub.s32 0, %v3030
      %v3032 = vrot.slane %v3027, %v3031
      %v3034 = vadd.f32 %v3022, %v3032
      %v3036 = vcombine.high %v3034, %v3034
      %v3038 = vunpack.c.l.s4 1966171168
      %v3039 = vunpack.c.0.s8 %v3038
      %v3040 = vlaneseq
      %v3041 = vshrl.u32 %v3040, 7
      %v3042 = vsub.s32 %v3039, %v3041
      %v3043 = vrot.slane %v3034, %v3042
      %v3045 = vunpack.c.l.s4 1966171168
      %v3046 = vunpack.c.0.s8 %v3045
      %v3047 = vlaneseq
      %v3048 = vshrl.u32 %v3047, 7
      %v3049 = vsub.s32 %v3046, %v3048
      %v3050 = vrot.slane %v3036, %v3049
      %v3051 = vcombine.high %v3043, %v3043
      %v3052 = vcombine.high %v3050, %v3050
      %v3054 = vunpack.c.l.s4 1966171168
      %v3055 = vunpack.c.0.s8 %v3054
      %v3056 = vlaneseq
      %v3057 = vshrl.u32 %v3056, 7
      %v3058 = vsub.s32 %v3055, %v3057
      %v3059 = vrot.slane %v3043, %v3058
      %v3061 = vunpack.c.l.s4 1966171168
      %v3062 = vunpack.c.0.s8 %v3061
      %v3063 = vlaneseq
      %v3064 = vshrl.u32 %v3063, 7
      %v3065 = vsub.s32 %v3062, %v3064
      %v3066 = vrot.slane %v3050, %v3065
      %v3068 = vunpack.c.l.s4 1966171168
      %v3069 = vunpack.c.0.s8 %v3068
      %v3070 = vlaneseq
      %v3071 = vshrl.u32 %v3070, 7
      %v3072 = vsub.s32 %v3069, %v3071
      %v3073 = vrot.slane %v3051, %v3072
      %v3075 = vunpack.c.l.s4 1966171168
      %v3076 = vunpack.c.0.s8 %v3075
      %v3077 = vlaneseq
      %v3078 = vshrl.u32 %v3077, 7
      %v3079 = vsub.s32 %v3076, %v3078
      %v3080 = vrot.slane %v3052, %v3079
      %v3081 = vcombine.high %v3059, %v3059
      %v3082 = vcombine.high %v3066, %v3066
      %v3083 = vcombine.high %v3073, %v3073
      %v3084 = vcombine.high %v3080, %v3080
      %3093 = vst.msk [vmem:[%s2922 + $0x1] sm:$0x1] %vm553, %v3059
      %3094 = vst.msk [vmem:[%s2922 + $0x11] sm:$0x1] %vm553, %v3073
      %3095 = vst.msk [vmem:[%s2922 + $0x21] sm:$0x1] %vm553, %v3081
      %3096 = vst.msk [vmem:[%s2922 + $0x31] sm:$0x1] %vm553, %v3083
      %3097 = vst.msk [vmem:[%s2922 + $0x41] sm:$0x1] %vm553, %v3066
      %3098 = vst.msk [vmem:[%s2922 + $0x51] sm:$0x1] %vm553, %v3080
      %3099 = vst.msk [vmem:[%s2922 + $0x61] sm:$0x1] %vm553, %v3082
      %3100 = vst.msk [vmem:[%s2922 + $0x71] sm:$0x1] %vm553, %v3084
      %v3101 = vld [vmem:[%s1488] sm:$0xf]
      %v3102 = vld [vmem:[%s1488 + $0x4] sm:$0xf]
      %v3103 = vld [vmem:[%s1032] sm:$0xf]
      %v3104 = vld [vmem:[%s1032 + $0x4] sm:$0xf]
      %v3107 = vunpack.c.l.b16 %v3103
      %v3108 = vunpack.c.l.b16 %v3104
      %v3109 = vpack.c.b16 %v3108, %v3107
      %3111 = vmatprep.subr.bf16.mxu0 0
      %3112 = vmatpush1.bf16.msra.mxu0 0
      %3113 = vmatprep.subr.bf16.mxu0 0
      %3114 = vmatpush1.bf16.msra.mxu0 0
      %3115 = vmatprep.subr.bf16.mxu0 0
      %3116 = vmatpush1.bf16.msra.mxu0 0
      %3117 = vmatprep.subr.bf16.mxu0 0
      %3118 = vmatpush1.bf16.msra.mxu0 0
      %3119 = vmatprep.subr.bf16.mxu0 0
      %3120 = vmatpush1.bf16.msra.mxu0 0
      %3121 = vmatprep.subr.bf16.mxu0 0
      %3122 = vmatpush1.bf16.msra.mxu0 0
      %3123 = vmatprep.subr.bf16.mxu0 0
      %3124 = vmatpush1.bf16.msra.mxu0 0
      %3125 = vmatprep.subr.bf16.mxu0 0
      %3126 = vmatpush1.bf16.msra.mxu0 %v3109
      %3127 = vmatprep.subr.bf16.mxu0 0
      %3128 = vmatpush2.bf16.msra.mxu0 0
      %3129 = vmatprep.subr.bf16.mxu0 0
      %3130 = vmatpush2.bf16.msra.mxu0 0
      %3131 = vmatprep.subr.bf16.mxu0 0
      %3132 = vmatpush2.bf16.msra.mxu0 0
      %3133 = vmatprep.subr.bf16.mxu0 0
      %3134 = vmatpush2.bf16.msra.mxu0 0
      %3135 = vmatprep.subr.bf16.mxu0 0
      %3136 = vmatpush2.bf16.msra.mxu0 0
      %3137 = vmatprep.subr.bf16.mxu0 0
      %3138 = vmatpush2.bf16.msra.mxu0 0
      %3139 = vmatprep.subr.bf16.mxu0 0
      %3140 = vmatpush2.bf16.msra.mxu0 0
      %3141 = vmatprep.subr.bf16.mxu0 0
      %3142 = vmatpush2.bf16.msra.mxu0 0
      %3143 = vmatprep.mubr.bf16.mxu0 0
      %3144 = vmatmul.mubr.bf16.gmra.mxu0 %v1371
      %v3145 = vpop.f32.mrf.mxu0
      %v3146 = vadd.f32 0.0, %v3145
      %v3147 = vpop.f32.mrf.mxu0
      %v3148 = vpop.f32.mrf.mxu0
      %v3149 = vpop.f32.mrf.mxu0
      %3150 = vdwg.mxu0
      %v3153 = vunpack.c.l.b16 %v3101
      %v3154 = vunpack.c.l.b16 %v3102
      %v3155 = vpack.c.b16 %v3154, %v3153
      %3157 = vmatprep.subr.bf16.mxu0 0
      %3158 = vmatpush1.bf16.msra.mxu0 0
      %3159 = vmatprep.subr.bf16.mxu0 0
      %3160 = vmatpush1.bf16.msra.mxu0 0
      %3161 = vmatprep.subr.bf16.mxu0 0
      %3162 = vmatpush1.bf16.msra.mxu0 0
      %3163 = vmatprep.subr.bf16.mxu0 0
      %3164 = vmatpush1.bf16.msra.mxu0 0
      %3165 = vmatprep.subr.bf16.mxu0 0
      %3166 = vmatpush1.bf16.msra.mxu0 0
      %3167 = vmatprep.subr.bf16.mxu0 0
      %3168 = vmatpush1.bf16.msra.mxu0 0
      %3169 = vmatprep.subr.bf16.mxu0 0
      %3170 = vmatpush1.bf16.msra.mxu0 0
      %3171 = vmatprep.subr.bf16.mxu0 0
      %3172 = vmatpush1.bf16.msra.mxu0 %v3155
      %3173 = vmatprep.subr.bf16.mxu0 0
      %3174 = vmatpush2.bf16.msra.mxu0 0
      %3175 = vmatprep.subr.bf16.mxu0 0
      %3176 = vmatpush2.bf16.msra.mxu0 0
      %3177 = vmatprep.subr.bf16.mxu0 0
      %3178 = vmatpush2.bf16.msra.mxu0 0
      %3179 = vmatprep.subr.bf16.mxu0 0
      %3180 = vmatpush2.bf16.msra.mxu0 0
      %3181 = vmatprep.subr.bf16.mxu0 0
      %3182 = vmatpush2.bf16.msra.mxu0 0
      %3183 = vmatprep.subr.bf16.mxu0 0
      %3184 = vmatpush2.bf16.msra.mxu0 0
      %3185 = vmatprep.subr.bf16.mxu0 0
      %3186 = vmatpush2.bf16.msra.mxu0 0
      %3187 = vmatprep.subr.bf16.mxu0 0
      %3188 = vmatpush2.bf16.msra.mxu0 0
      %3189 = vmatprep.mubr.bf16.mxu0 0
      %3190 = vmatmul.mubr.bf16.gmra.mxu0 %v1048
      %v3191 = vpop.f32.mrf.mxu0
      %v3192 = vadd.f32 %v3146, %v3191
      %v3193 = vpop.f32.mrf.mxu0
      %v3194 = vpop.f32.mrf.mxu0
      %v3195 = vpop.f32.mrf.mxu0
      %3196 = vdwg.mxu0
      %v3197 = vld [vmem:[%s6] sm:$0x1]
      %v3199 = vlaneseq
      %v3200 = vshrl.u32 %v3199, 7
      %v3201 = vsub.s32 0, %v3200
      %v3202 = vrot.slane %v3197, %v3201
      %v3204 = vadd.f32 %v3192, %v3202
      %v3206 = vcombine.high %v3204, %v3204
      %v3208 = vunpack.c.l.s4 1966171168
      %v3209 = vunpack.c.0.s8 %v3208
      %v3210 = vlaneseq
      %v3211 = vshrl.u32 %v3210, 7
      %v3212 = vsub.s32 %v3209, %v3211
      %v3213 = vrot.slane %v3204, %v3212
      %v3215 = vunpack.c.l.s4 1966171168
      %v3216 = vunpack.c.0.s8 %v3215
      %v3217 = vlaneseq
      %v3218 = vshrl.u32 %v3217, 7
      %v3219 = vsub.s32 %v3216, %v3218
      %v3220 = vrot.slane %v3206, %v3219
      %v3221 = vcombine.high %v3213, %v3213
      %v3222 = vcombine.high %v3220, %v3220
      %v3224 = vunpack.c.l.s4 1966171168
      %v3225 = vunpack.c.0.s8 %v3224
      %v3226 = vlaneseq
      %v3227 = vshrl.u32 %v3226, 7
      %v3228 = vsub.s32 %v3225, %v3227
      %v3229 = vrot.slane %v3213, %v3228
      %v3231 = vunpack.c.l.s4 1966171168
      %v3232 = vunpack.c.0.s8 %v3231
      %v3233 = vlaneseq
      %v3234 = vshrl.u32 %v3233, 7
      %v3235 = vsub.s32 %v3232, %v3234
      %v3236 = vrot.slane %v3220, %v3235
      %v3238 = vunpack.c.l.s4 1966171168
      %v3239 = vunpack.c.0.s8 %v3238
      %v3240 = vlaneseq
      %v3241 = vshrl.u32 %v3240, 7
      %v3242 = vsub.s32 %v3239, %v3241
      %v3243 = vrot.slane %v3221, %v3242
      %v3245 = vunpack.c.l.s4 1966171168
      %v3246 = vunpack.c.0.s8 %v3245
      %v3247 = vlaneseq
      %v3248 = vshrl.u32 %v3247, 7
      %v3249 = vsub.s32 %v3246, %v3248
      %v3250 = vrot.slane %v3222, %v3249
      %v3251 = vcombine.high %v3229, %v3229
      %v3252 = vcombine.high %v3236, %v3236
      %v3253 = vcombine.high %v3243, %v3243
      %v3254 = vcombine.high %v3250, %v3250
      %3263 = vst.msk [vmem:[%s2922 + $0x2] sm:$0x1] %vm553, %v3229
      %3264 = vst.msk [vmem:[%s2922 + $0x12] sm:$0x1] %vm553, %v3243
      %3265 = vst.msk [vmem:[%s2922 + $0x22] sm:$0x1] %vm553, %v3251
      %3266 = vst.msk [vmem:[%s2922 + $0x32] sm:$0x1] %vm553, %v3253
      %3267 = vst.msk [vmem:[%s2922 + $0x42] sm:$0x1] %vm553, %v3236
      %3268 = vst.msk [vmem:[%s2922 + $0x52] sm:$0x1] %vm553, %v3250
      %3269 = vst.msk [vmem:[%s2922 + $0x62] sm:$0x1] %vm553, %v3252
      %3270 = vst.msk [vmem:[%s2922 + $0x72] sm:$0x1] %vm553, %v3254
      %v3271 = vld [vmem:[%s1211] sm:$0xf]
      %v3272 = vld [vmem:[%s1211 + $0x4] sm:$0xf]
      %v3273 = vld [vmem:[%s6] sm:$0x1]
      %v3275 = vlaneseq
      %v3276 = vshrl.u32 %v3275, 7
      %v3277 = vsub.s32 0, %v3276
      %v3278 = vrot.slane %v3273, %v3277
      %v3282 = vunpack.c.l.b16 %v3271
      %v3283 = vunpack.c.l.b16 %v3272
      %v3284 = vpack.c.b16 %v3283, %v3282
      %3286 = vmatprep.subr.bf16.mxu0 0
      %3287 = vmatpush1.bf16.msra.mxu0 0
      %3288 = vmatprep.subr.bf16.mxu0 0
      %3289 = vmatpush1.bf16.msra.mxu0 0
      %3290 = vmatprep.subr.bf16.mxu0 0
      %3291 = vmatpush1.bf16.msra.mxu0 0
      %3292 = vmatprep.subr.bf16.mxu0 0
      %3293 = vmatpush1.bf16.msra.mxu0 0
      %3294 = vmatprep.subr.bf16.mxu0 0
      %3295 = vmatpush1.bf16.msra.mxu0 0
      %3296 = vmatprep.subr.bf16.mxu0 0
      %3297 = vmatpush1.bf16.msra.mxu0 0
      %3298 = vmatprep.subr.bf16.mxu0 0
      %3299 = vmatpush1.bf16.msra.mxu0 0
      %3300 = vmatprep.subr.bf16.mxu0 0
      %3301 = vmatpush1.bf16.msra.mxu0 %v3284
      %3302 = vmatprep.subr.bf16.mxu0 0
      %3303 = vmatpush2.bf16.msra.mxu0 0
      %3304 = vmatprep.subr.bf16.mxu0 0
      %3305 = vmatpush2.bf16.msra.mxu0 0
      %3306 = vmatprep.subr.bf16.mxu0 0
      %3307 = vmatpush2.bf16.msra.mxu0 0
      %3308 = vmatprep.subr.bf16.mxu0 0
      %3309 = vmatpush2.bf16.msra.mxu0 0
      %3310 = vmatprep.subr.bf16.mxu0 0
      %3311 = vmatpush2.bf16.msra.mxu0 0
      %3312 = vmatprep.subr.bf16.mxu0 0
      %3313 = vmatpush2.bf16.msra.mxu0 0
      %3314 = vmatprep.subr.bf16.mxu0 0
      %3315 = vmatpush2.bf16.msra.mxu0 0
      %3316 = vmatprep.subr.bf16.mxu0 0
      %3317 = vmatpush2.bf16.msra.mxu0 0
      %3318 = vmatprep.mubr.bf16.mxu0 0
      %3319 = vmatmul.mubr.bf16.gmra.mxu0 %v1371
      %v3320 = vpop.f32.mrf.mxu0
      %v3321 = vadd.f32 %v3278, %v3320
      %v3322 = vpop.f32.mrf.mxu0
      %v3323 = vpop.f32.mrf.mxu0
      %v3324 = vpop.f32.mrf.mxu0
      %3325 = vdwg.mxu0
      %v3327 = vcombine.high %v3321, %v3321
      %v3329 = vunpack.c.l.s4 1966171168
      %v3330 = vunpack.c.0.s8 %v3329
      %v3331 = vlaneseq
      %v3332 = vshrl.u32 %v3331, 7
      %v3333 = vsub.s32 %v3330, %v3332
      %v3334 = vrot.slane %v3321, %v3333
      %v3336 = vunpack.c.l.s4 1966171168
      %v3337 = vunpack.c.0.s8 %v3336
      %v3338 = vlaneseq
      %v3339 = vshrl.u32 %v3338, 7
      %v3340 = vsub.s32 %v3337, %v3339
      %v3341 = vrot.slane %v3327, %v3340
      %v3342 = vcombine.high %v3334, %v3334
      %v3343 = vcombine.high %v3341, %v3341
      %v3345 = vunpack.c.l.s4 1966171168
      %v3346 = vunpack.c.0.s8 %v3345
      %v3347 = vlaneseq
      %v3348 = vshrl.u32 %v3347, 7
      %v3349 = vsub.s32 %v3346, %v3348
      %v3350 = vrot.slane %v3334, %v3349
      %v3352 = vunpack.c.l.s4 1966171168
      %v3353 = vunpack.c.0.s8 %v3352
      %v3354 = vlaneseq
      %v3355 = vshrl.u32 %v3354, 7
      %v3356 = vsub.s32 %v3353, %v3355
      %v3357 = vrot.slane %v3341, %v3356
      %v3359 = vunpack.c.l.s4 1966171168
      %v3360 = vunpack.c.0.s8 %v3359
      %v3361 = vlaneseq
      %v3362 = vshrl.u32 %v3361, 7
      %v3363 = vsub.s32 %v3360, %v3362
      %v3364 = vrot.slane %v3342, %v3363
      %v3366 = vunpack.c.l.s4 1966171168
      %v3367 = vunpack.c.0.s8 %v3366
      %v3368 = vlaneseq
      %v3369 = vshrl.u32 %v3368, 7
      %v3370 = vsub.s32 %v3367, %v3369
      %v3371 = vrot.slane %v3343, %v3370
      %v3372 = vcombine.high %v3350, %v3350
      %v3373 = vcombine.high %v3357, %v3357
      %v3374 = vcombine.high %v3364, %v3364
      %v3375 = vcombine.high %v3371, %v3371
      %3384 = vst.msk [vmem:[%s2922 + $0x3] sm:$0x1] %vm553, %v3350
      %3385 = vst.msk [vmem:[%s2922 + $0x13] sm:$0x1] %vm553, %v3364
      %3386 = vst.msk [vmem:[%s2922 + $0x23] sm:$0x1] %vm553, %v3372
      %3387 = vst.msk [vmem:[%s2922 + $0x33] sm:$0x1] %vm553, %v3374
      %3388 = vst.msk [vmem:[%s2922 + $0x43] sm:$0x1] %vm553, %v3357
      %3389 = vst.msk [vmem:[%s2922 + $0x53] sm:$0x1] %vm553, %v3371
      %3390 = vst.msk [vmem:[%s2922 + $0x63] sm:$0x1] %vm553, %v3373
      %3391 = vst.msk [vmem:[%s2922 + $0x73] sm:$0x1] %vm553, %v3375
      %s3392 = smul.u32 8, %s18
      %p3393 = scmp.lt.s32.totalorder %s3392, 15
      %s3394 = scalar_select %p3393, %s3392, 15
      %s3395 = smul.addr %s3394, 4
      %s3396 = smul.addr %s3395, 4
      %s3397 = scalar_lea.vmem %s7, %s3396
      // Predicated region
      $region49: #{tpu_custom_call.1} parent=47 // pred_check
        %p3398 = pneg %p188
      $region50: #{tpu_custom_call.1} parent=47 // pred_check_branch
        %3400 = sbr.rel (%p3398) target = $region52
      $region51: #{tpu_custom_call.1} parent=47 // pred_region
        %s3401 = smul.u32 8, %s18
      $region52: #{tpu_custom_call.1} parent=47 // pred_fallthru
        _
    $region48: #{tpu_custom_call.1} parent=5 // pred_fallthru
      _
    %p3402 = scmp.le.s32.totalorder 2, %s13
    // Predicated region
    $region53: #{tpu_custom_call.1} parent=5 // pred_check
      %p3403 = pneg %p3402
    $region54: #{tpu_custom_call.1} parent=5 // pred_check_branch
      %3405 = sbr.rel (%p3403) target = $region56
    $region55: #{tpu_custom_call.1} parent=5 // pred_region
      %s3406 = ssub.s32 %s13, 2
      // Predicated region
      $region57: #{tpu_custom_call.1} parent=55 // pred_check
        %p3407 = pneg %p194
      $region58: #{tpu_custom_call.1} parent=55 // pred_check_branch
        %3409 = sbr.rel (%p3407) target = $region60
      $region59: #{tpu_custom_call.1} parent=55 // pred_region
        %s3410 = smul.u32 8, %s19
        %p3411 = scmp.lt.s32.totalorder %s3410, 15
        %s3412 = scalar_select %p3411, %s3410, 15
        %s3413 = smul.addr %s3412, 4
        %s3414 = smul.addr %s3413, 4
        %s3415 = scalar_lea.vmem %s7, %s3414
      $region60: #{tpu_custom_call.1} parent=55 // pred_fallthru
        _
    $region56: #{tpu_custom_call.1} parent=5 // pred_fallthru
      _
  $region6: #{tpu_custom_call.1} parent=0 // loop_footer
    %s17 = sadd.s32 1, %s13
  $region7: #{tpu_custom_call.1} parent=0 // loop_footer_branch
    %12 = sbr.rel target = $region3
  $region8: #{tpu_custom_call.1} parent=0 // loop_exit
    _

</llo_original>
